<compile_context>
chip_gen: v7x
topology: tpu7x:2x2x1
jax: 0.10.0
libtpu: 0.0.40
codegen_flags: <defaults>
</compile_context>

<pallas_src>
import math

import jax
import jax.numpy as jnp
import numpy as np
from jax import lax
from jax.experimental import pallas as pl
from jax.experimental.pallas import tpu as pltpu

LN_EPS = 1e-6
NEG_INF = -1e9

# Rows of the packed (R, d_model) vector-parameter array.
_VEC_ROWS = ("ln1_g", "ln1_b", "ln2_g", "ln2_b", "ln3_g", "ln3_b",
             "sa_bo", "ca_bo", "ff_b2")
_VR = {name: i for i, name in enumerate(_VEC_ROWS)}

# Slots of the packed attention projection stacks.
#   attn_w: (6, H, D, d_k)    attn_b: (6, H, 1, d_k)
_SA_Q, _SA_K, _SA_V, _CA_Q, _CA_K, _CA_V = range(6)
#   wo_w:   (2, H, d_k, D)
_SA_O, _CA_O = range(2)


def _make_decoder_layer_kernel(n_heads, mm_dtype):
    mm_dtype = jnp.dtype(mm_dtype)
    approx_recip = mm_dtype == jnp.dtype(jnp.bfloat16)

    def kernel(x_ref, mem_ref, tgt_bias_ref, src_bias_ref, vecs_ref,
               attn_w_ref, attn_b_ref, wo_w_ref, ff_w1_ref, ff_b1_ref,
               ff_w2_ref, out_ref):
        x = x_ref[0].astype(jnp.float32)        # (S_t, D)
        mem = mem_ref[0].astype(jnp.float32)    # (S_s, D)
        vecs = vecs_ref[...]                    # (R, D) f32
        d_model = x.shape[-1]

        def vrow(name):
            i = _VR[name]
            return vecs[i:i + 1, :]             # (1, D)

        def layer_norm(v, g_name, b_name):
            mean = jnp.mean(v, axis=-1, keepdims=True)
            c = v - mean
            # torch.Tensor.std is the unbiased (n-1) estimator; eps added to std.
            var = jnp.sum(c * c, axis=-1, keepdims=True) * (1.0 / (d_model - 1))
            inv_std = 1.0 / (jnp.sqrt(var) + LN_EPS)   # exact; (S, 1) column
            return vrow(g_name) * (c * inv_std) + vrow(b_name)

        def attention(q_in, kv_in, w_slots, b_slots, wo_slot, bo_name, bias2d):
            """Head-batched attention. q_in (Sq, D), kv_in (Sk, D), both f32."""
            q_slot, k_slot, v_slot = w_slots
            qb_slot, kb_slot, vb_slot = b_slots
            sq, sk = q_in.shape[0], kv_in.shape[0]
            # Broadcast the normed activations across heads once so every
            # matmul below is a plain batched 3-D x 3-D dot_general.
            q_b = jnp.broadcast_to(q_in.astype(mm_dtype)[None],
                                   (n_heads, sq, d_model))
            if kv_in is q_in:                       # self-attention: reuse
                kv_b = q_b
            else:
                kv_b = jnp.broadcast_to(kv_in.astype(mm_dtype)[None],
                                        (n_heads, sk, d_model))

            proj = (((2,), (1,)), ((0,), (0,)))     # 'hsd,hdk->hsk'
            qh = lax.dot_general(q_b, attn_w_ref[q_slot], proj,
                                 preferred_element_type=jnp.float32)
            qh = qh + attn_b_ref[qb_slot]           # (H, Sq, d_k); scale pre-folded
            kh = lax.dot_general(kv_b, attn_w_ref[k_slot], proj,
                                 preferred_element_type=jnp.float32)
            kh = kh + attn_b_ref[kb_slot]           # (H, Sk, d_k)
            vh = lax.dot_general(kv_b, attn_w_ref[v_slot], proj,
                                 preferred_element_type=jnp.float32)
            vh = vh + attn_b_ref[vb_slot]           # (H, Sk, d_k)

            # scores: 'hqe,hke->hqk'  (f32 accumulation)
            s = lax.dot_general(qh.astype(mm_dtype), kh.astype(mm_dtype),
                                (((2,), (2,)), ((0,), (0,))),
                                preferred_element_type=jnp.float32)
            s = s + bias2d[None, :, :]              # additive mask bias, once
            s = s - jnp.max(s, axis=-1, keepdims=True)
            p = jnp.exp(s)
            denom = jnp.sum(p, axis=-1, keepdims=True)
            if approx_recip:
                p = p * pl.reciprocal(denom, approx=True)   # EUP, frees VALU
            else:
                p = p / denom
            # context: 'hqk,hke->hqe'
            ctx = lax.dot_general(p.astype(mm_dtype), vh.astype(mm_dtype),
                                  (((2,), (1,)), ((0,), (0,))),
                                  preferred_element_type=jnp.float32)
            # Output projection head-batched ('hqe,hed->hqd') then summed over
            # heads == concat(heads) @ Wo, without the lane-merge relayout a
            # (Sq, H*d_k) in-kernel reshape would require.
            o = lax.dot_general(ctx.astype(mm_dtype), wo_w_ref[wo_slot],
                                (((2,), (1,)), ((0,), (0,))),
                                preferred_element_type=jnp.float32)
            return jnp.sum(o, axis=0) + vrow(bo_name)

        # TODO(synk): dropout omitted — identity in eval/inference mode.

        tgt_bias = tgt_bias_ref[...]
        src_bias = src_bias_ref[...]

        # Sublayer 0: self-attention on LN1(x)  (q = k = v).
        xn = layer_norm(x, "ln1_g", "ln1_b")
        x1 = x + attention(xn, xn, (_SA_Q, _SA_K, _SA_V),
                           (_SA_Q, _SA_K, _SA_V), _SA_O, "sa_bo", tgt_bias)

        # Sublayer 1: cross-attention; query = LN2(x1), key/value = memory.
        x1n = layer_norm(x1, "ln2_g", "ln2_b")
        x2 = x1 + attention(x1n, mem, (_CA_Q, _CA_K, _CA_V),
                            (_CA_Q, _CA_K, _CA_V), _CA_O, "ca_bo", src_bias)

        # Sublayer 2: position-wise feed-forward (Linear -> ReLU -> Linear).
        x2n = layer_norm(x2, "ln3_g", "ln3_b")
        hid = jnp.dot(x2n.astype(mm_dtype), ff_w1_ref[...],
                      preferred_element_type=jnp.float32) + ff_b1_ref[...]
        hid = jnp.maximum(hid, 0.0)
        ff = jnp.dot(hid.astype(mm_dtype), ff_w2_ref[...],
                     preferred_element_type=jnp.float32) + vrow("ff_b2")

        out_ref[0] = (x2 + ff).astype(out_ref.dtype)

    return kernel


def decoder_layer_forward(x, memory, tgt_mask, src_mask, params, n_heads,
                          matmul_dtype=jnp.bfloat16):
    """Pallas equivalent of DecoderLayer.forward (eval mode)."""
    B, S_t, D = x.shape
    S_s = memory.shape[1]
    d_k = D // n_heads
    scale = 1.0 / math.sqrt(d_k)
    f32 = jnp.float32
    p = {k: jnp.asarray(v, f32) for k, v in params.items()}

    def head_w(w):   # (D, D) -> (H, D, d_k); head h uses cols [h*dk, (h+1)*dk)
        return w.reshape(D, n_heads, d_k).transpose(1, 0, 2)

    def head_b(b):   # (1, D) -> (H, 1, d_k)
        return b.reshape(n_heads, d_k)[:, None, :]

    def out_w(w):    # (D, D) -> (H, d_k, D); head h uses rows [h*dk, (h+1)*dk)
        return w.reshape(n_heads, d_k, D)

    # Head-split projection weights/biases (host-side reshapes are free);
    # 1/sqrt(d_k) folded into the query projection weight AND bias.
    attn_w = jnp.stack([
        head_w(p["sa_wq"]) * scale, head_w(p["sa_wk"]), head_w(p["sa_wv"]),
        head_w(p["ca_wq"]) * scale, head_w(p["ca_wk"]), head_w(p["ca_wv"]),
    ]).astype(matmul_dtype)                                    # (6, H, D, d_k)
    attn_b = jnp.stack([
        head_b(p["sa_bq"]) * scale, head_b(p["sa_bk"]), head_b(p["sa_bv"]),
        head_b(p["ca_bq"]) * scale, head_b(p["ca_bk"]), head_b(p["ca_bv"]),
    ])                                                         # (6, H, 1, d_k) f32
    wo_w = jnp.stack([out_w(p["sa_wo"]),
                      out_w(p["ca_wo"])]).astype(matmul_dtype)  # (2, H, d_k, D)
    vecs = jnp.concatenate([p[name].reshape(1, D) for name in _VEC_ROWS], axis=0)
    ff_w1 = p["ff_w1"].astype(matmul_dtype)
    ff_b1 = p["ff_b1"].reshape(1, -1)
    ff_w2 = p["ff_w2"].astype(matmul_dtype)

    # Masks -> additive biases (0 keep / -1e9 drop), computed once host-side.
    tgt_bias = jnp.where(tgt_mask > 0, 0.0, NEG_INF).astype(f32)   # (S_t, S_t)
    src_bias = jnp.where(src_mask > 0, 0.0, NEG_INF).astype(f32)   # (S_t, S_s)

    def const_spec(arr):
        # Resident (fetched-once) operand; pipeline_mode=pl.Buffered(1) would
        # additionally halve its VMEM cost on v7x (left at default here).
        rank = arr.ndim
        return pl.BlockSpec(arr.shape, lambda b, _r=rank: (0,) * _r)

    consts = (tgt_bias, src_bias, vecs, attn_w, attn_b, wo_w,
              ff_w1, ff_b1, ff_w2)
    in_specs = [
        pl.BlockSpec((1, S_t, D), lambda b: (b, 0, 0)),   # x: one batch / step
        pl.BlockSpec((1, S_s, D), lambda b: (b, 0, 0)),   # memory
    ] + [const_spec(c) for c in consts]

    # TODO(synk): for large S_t add a query-tile grid axis (with K/V recompute
    # or a first K/V pass) to bound the O(S_t*S_k) score tensor on v7x VMEM.
    return pl.pallas_call(
        _make_decoder_layer_kernel(n_heads, matmul_dtype),
        out_shape=jax.ShapeDtypeStruct((B, S_t, D), x.dtype),
        grid=(B,),
        in_specs=in_specs,
        out_specs=pl.BlockSpec((1, S_t, D), lambda b: (b, 0, 0)),
        compiler_params=pltpu.CompilerParams(
            dimension_semantics=("parallel",),    # shard batch over TCs (v7x)
            vmem_limit_bytes=64 * 1024 * 1024,
        ),
    )(x, memory, *consts)


def _reference(x, memory, tgt_mask, src_mask, params, n_heads):
    """Pure-JAX f32 reference of the same forward pass (batched)."""
    D = x.shape[-1]
    d_k = D // n_heads

    def ln(v, g, b):
        mean = v.mean(-1, keepdims=True)
        c = v - mean
        var = (c * c).sum(-1, keepdims=True) / (D - 1)
        return g * c / (jnp.sqrt(var) + LN_EPS) + b

    def mha(q_in, kv_in, wq, bq, wk, bk, wv, bv, wo, bo, mask):
        B, Sq, _ = q_in.shape
        Sk = kv_in.shape[1]
        q = (q_in @ wq + bq).reshape(B, Sq, n_heads, d_k).transpose(0, 2, 1, 3)
        k = (kv_in @ wk + bk).reshape(B, Sk, n_heads, d_k).transpose(0, 2, 1, 3)
        v = (kv_in @ wv + bv).reshape(B, Sk, n_heads, d_k).transpose(0, 2, 1, 3)
        s = jnp.einsum("bhqd,bhkd->bhqk", q, k) / math.sqrt(d_k)
        s = jnp.where(mask[None, None] > 0, s, NEG_INF)
        p = jax.nn.softmax(s, axis=-1)
        o = jnp.einsum("bhqk,bhkd->bhqd", p, v)
        o = o.transpose(0, 2, 1, 3).reshape(B, Sq, D)
        return o @ wo + bo

    p = params
    xn = ln(x, p["ln1_g"], p["ln1_b"])
    x1 = x + mha(xn, xn, p["sa_wq"], p["sa_bq"], p["sa_wk"], p["sa_bk"],
                 p["sa_wv"], p["sa_bv"], p["sa_wo"], p["sa_bo"], tgt_mask)
    x1n = ln(x1, p["ln2_g"], p["ln2_b"])
    x2 = x1 + mha(x1n, memory, p["ca_wq"], p["ca_bq"], p["ca_wk"], p["ca_bk"],
                  p["ca_wv"], p["ca_bv"], p["ca_wo"], p["ca_bo"], src_mask)
    x2n = ln(x2, p["ln3_g"], p["ln3_b"])
    hid = jnp.maximum(x2n @ p["ff_w1"] + p["ff_b1"], 0.0)
    return x2 + (hid @ p["ff_w2"] + p["ff_b2"])


if __name__ == "__main__":
    # Small deterministic shapes: batch=2, tgt/src seq=8, d_model=32, heads=4, d_ff=64.
    B, S_T, S_S = 2, 8, 8
    D, H, D_FF = 32, 4, 64

    key = jax.random.PRNGKey(0)
    keys = iter(jax.random.split(key, 40))

    def rnd(shape, scale=0.1):
        return jax.random.normal(next(keys), shape, dtype=jnp.float32) * scale

    x = rnd((B, S_T, D), 1.0)
    memory = rnd((B, S_S, D), 1.0)

    # Causal target mask; source mask with the last 2 key positions padded out.
    tgt_mask = jnp.tril(jnp.ones((S_T, S_T), jnp.float32))
    src_valid = 6
    src_mask = jnp.where(jnp.arange(S_S)[None, :] < src_valid, 1.0, 0.0) \
        * jnp.ones((S_T, 1), jnp.float32)

    params = {
        "ln1_g": 1.0 + rnd((1, D)), "ln1_b": rnd((1, D), 0.05),
        "sa_wq": rnd((D, D)), "sa_bq": rnd((1, D), 0.02),
        "sa_wk": rnd((D, D)), "sa_bk": rnd((1, D), 0.02),
        "sa_wv": rnd((D, D)), "sa_bv": rnd((1, D), 0.02),
        "sa_wo": rnd((D, D)), "sa_bo": rnd((1, D), 0.02),
        "ln2_g": 1.0 + rnd((1, D)), "ln2_b": rnd((1, D), 0.05),
        "ca_wq": rnd((D, D)), "ca_bq": rnd((1, D), 0.02),
        "ca_wk": rnd((D, D)), "ca_bk": rnd((1, D), 0.02),
        "ca_wv": rnd((D, D)), "ca_bv": rnd((1, D), 0.02),
        "ca_wo": rnd((D, D)), "ca_bo": rnd((1, D), 0.02),
        "ln3_g": 1.0 + rnd((1, D)), "ln3_b": rnd((1, D), 0.05),
        "ff_w1": rnd((D, D_FF)), "ff_b1": rnd((1, D_FF), 0.02),
        "ff_w2": rnd((D_FF, D)), "ff_b2": rnd((1, D), 0.02),
    }

    ref = _reference(x, memory, tgt_mask, src_mask, params, n_heads=H)

    # Exact-math path (f32 matmul operands): tight check vs the f32 reference.
    out_f32 = decoder_layer_forward(x, memory, tgt_mask, src_mask, params,
                                    n_heads=H, matmul_dtype=jnp.float32)
    out_f32 = jax.block_until_ready(out_f32)
    assert out_f32.shape == (B, S_T, D)
    err32 = float(np.max(np.abs(np.asarray(out_f32) - np.asarray(ref))))
    assert np.allclose(np.asarray(out_f32), np.asarray(ref),
                       rtol=2e-4, atol=2e-4), \
        "f32 path mismatch: max abs err = %g" % err32

    # Fast path (bf16 MXU operands, f32 accumulation): looser tolerance.
    out_bf16 = decoder_layer_forward(x, memory, tgt_mask, src_mask, params,
                                     n_heads=H, matmul_dtype=jnp.bfloat16)
    out_bf16 = jax.block_until_ready(out_bf16)
    err16 = float(np.max(np.abs(np.asarray(out_bf16) - np.asarray(ref))))
    assert np.allclose(np.asarray(out_bf16), np.asarray(ref),
                       rtol=2e-2, atol=2e-2), \
        "bf16 path mismatch: max abs err = %g" % err16

    print("KERNEL_OK")
</pallas_src>

<mosaic_0001>
module attributes {stable_mosaic.version = 11 : i64} {
  func.func @kernel(%arg0: i32, %arg1: memref<1x8x32xf32, #tpu.memory_space<vmem>>, %arg2: memref<1x8x32xf32, #tpu.memory_space<vmem>>, %arg3: memref<8x8xf32, #tpu.memory_space<vmem>>, %arg4: memref<8x8xf32, #tpu.memory_space<vmem>>, %arg5: memref<9x32xf32, #tpu.memory_space<vmem>>, %arg6: memref<6x4x32x8xf32, #tpu.memory_space<vmem>>, %arg7: memref<6x4x1x8xf32, #tpu.memory_space<vmem>>, %arg8: memref<2x4x8x32xf32, #tpu.memory_space<vmem>>, %arg9: memref<32x64xf32, #tpu.memory_space<vmem>>, %arg10: memref<1x64xf32, #tpu.memory_space<vmem>>, %arg11: memref<64x32xf32, #tpu.memory_space<vmem>>, %arg12: memref<1x8x32xf32, #tpu.memory_space<vmem>>) attributes {dimension_semantics = [#tpu.dimension_semantics<parallel>], iteration_bounds = array<i64: 2>, scalar_prefetch = 0 : i64, scratch_operands = 0 : i64, tpu.core_type = #tpu.core_type<tc>, window_params = [{transform_indices = @transform_0, window_bounds = array<i64: 1, 8, 32>}, {transform_indices = @transform_1, window_bounds = array<i64: 1, 8, 32>}, {pipeline_mode = #tpu.pipeline_mode<synchronous>, transform_indices = @transform_2, window_bounds = array<i64: 8, 8>}, {pipeline_mode = #tpu.pipeline_mode<synchronous>, transform_indices = @transform_3, window_bounds = array<i64: 8, 8>}, {pipeline_mode = #tpu.pipeline_mode<synchronous>, transform_indices = @transform_4, window_bounds = array<i64: 9, 32>}, {pipeline_mode = #tpu.pipeline_mode<synchronous>, transform_indices = @transform_5, window_bounds = array<i64: 6, 4, 32, 8>}, {pipeline_mode = #tpu.pipeline_mode<synchronous>, transform_indices = @transform_6, window_bounds = array<i64: 6, 4, 1, 8>}, {pipeline_mode = #tpu.pipeline_mode<synchronous>, transform_indices = @transform_7, window_bounds = array<i64: 2, 4, 8, 32>}, {pipeline_mode = #tpu.pipeline_mode<synchronous>, transform_indices = @transform_8, window_bounds = array<i64: 32, 64>}, {pipeline_mode = #tpu.pipeline_mode<synchronous>, transform_indices = @transform_9, window_bounds = array<i64: 1, 64>}, {pipeline_mode = #tpu.pipeline_mode<synchronous>, transform_indices = @transform_10, window_bounds = array<i64: 64, 32>}, {transform_indices = @transform_11, window_bounds = array<i64: 1, 8, 32>}]} {
    %c0 = arith.constant 0 : index
    %c0_0 = arith.constant 0 : index
    %c0_1 = arith.constant 0 : index
    %0 = vector.load %arg1[%c0, %c0_0, %c0_1] : memref<1x8x32xf32, #tpu.memory_space<vmem>>, vector<1x8x32xf32>
    %1 = vector.shape_cast %0 : vector<1x8x32xf32> to vector<8x32xf32>
    %c0_2 = arith.constant 0 : index
    %c0_3 = arith.constant 0 : index
    %c0_4 = arith.constant 0 : index
    %2 = vector.load %arg2[%c0_2, %c0_3, %c0_4] : memref<1x8x32xf32, #tpu.memory_space<vmem>>, vector<1x8x32xf32>
    %3 = vector.shape_cast %2 : vector<1x8x32xf32> to vector<8x32xf32>
    %c0_5 = arith.constant 0 : index
    %c0_6 = arith.constant 0 : index
    %4 = vector.load %arg5[%c0_5, %c0_6] : memref<9x32xf32, #tpu.memory_space<vmem>>, vector<9x32xf32>
    %c0_7 = arith.constant 0 : index
    %c0_8 = arith.constant 0 : index
    %5 = vector.load %arg3[%c0_7, %c0_8] : memref<8x8xf32, #tpu.memory_space<vmem>>, vector<8x8xf32>
    %c0_9 = arith.constant 0 : index
    %c0_10 = arith.constant 0 : index
    %6 = vector.load %arg4[%c0_9, %c0_10] : memref<8x8xf32, #tpu.memory_space<vmem>>, vector<8x8xf32>
    %cst = arith.constant dense<0.000000e+00> : vector<8xf32>
    %7 = vector.multi_reduction <add>, %1, %cst [1] : vector<8x32xf32> to vector<8xf32>
    %8 = vector.shape_cast %7 : vector<8xf32> to vector<8x1xf32>
    %cst_11 = arith.constant 3.200000e+01 : f32
    %9 = vector.broadcast %cst_11 : f32 to vector<8x1xf32>
    %10 = arith.divf %8, %9 : vector<8x1xf32>
    %11 = vector.broadcast %10 : vector<8x1xf32> to vector<8x32xf32>
    %12 = arith.subf %1, %11 : vector<8x32xf32>
    %13 = arith.mulf %12, %12 : vector<8x32xf32>
    %cst_12 = arith.constant dense<0.000000e+00> : vector<8xf32>
    %14 = vector.multi_reduction <add>, %13, %cst_12 [1] : vector<8x32xf32> to vector<8xf32>
    %15 = vector.shape_cast %14 : vector<8xf32> to vector<8x1xf32>
    %cst_13 = arith.constant 0.0322580636 : f32
    %16 = vector.broadcast %cst_13 : f32 to vector<8x1xf32>
    %17 = arith.mulf %15, %16 : vector<8x1xf32>
    %18 = math.sqrt %17 : vector<8x1xf32>
    %cst_14 = arith.constant 9.99999997E-7 : f32
    %19 = vector.broadcast %cst_14 : f32 to vector<8x1xf32>
    %20 = arith.addf %18, %19 : vector<8x1xf32>
    %cst_15 = arith.constant 1.000000e+00 : f32
    %21 = vector.broadcast %cst_15 : f32 to vector<8x1xf32>
    %22 = arith.divf %21, %20 : vector<8x1xf32>
    %23 = vector.extract_strided_slice %4 {offsets = [0, 0], sizes = [1, 32], strides = [1, 1]} : vector<9x32xf32> to vector<1x32xf32>
    %24 = vector.broadcast %22 : vector<8x1xf32> to vector<8x32xf32>
    %25 = arith.mulf %12, %24 : vector<8x32xf32>
    %26 = vector.broadcast %23 : vector<1x32xf32> to vector<8x32xf32>
    %27 = arith.mulf %26, %25 : vector<8x32xf32>
    %28 = vector.extract_strided_slice %4 {offsets = [1, 0], sizes = [1, 32], strides = [1, 1]} : vector<9x32xf32> to vector<1x32xf32>
    %29 = vector.broadcast %28 : vector<1x32xf32> to vector<8x32xf32>
    %30 = arith.addf %27, %29 : vector<8x32xf32>
    %31 = vector.shape_cast %30 : vector<8x32xf32> to vector<1x8x32xf32>
    %32 = vector.shape_cast %31 : vector<1x8x32xf32> to vector<1x8x32xf32>
    %33 = vector.broadcast %32 : vector<1x8x32xf32> to vector<4x8x32xf32>
    %c0_16 = arith.constant 0 : index
    %c0_17 = arith.constant 0 : index
    %c0_18 = arith.constant 0 : index
    %c0_19 = arith.constant 0 : index
    %34 = vector.load %arg6[%c0_16, %c0_17, %c0_18, %c0_19] : memref<6x4x32x8xf32, #tpu.memory_space<vmem>>, vector<1x4x32x8xf32>
    %35 = vector.shape_cast %34 : vector<1x4x32x8xf32> to vector<4x32x8xf32>
    %cst_20 = arith.constant dense<0.000000e+00> : vector<4x8x8xf32>
    %36 = tpu.matmul %33, %35, %cst_20 {dimension_numbers = #tpu.dot_dimension_numbers<[2], [1], [1], [2], [0, 0, 0, 1, 1, 2], [0], [0]>} : vector<4x8x32xf32>, vector<4x32x8xf32>, vector<4x8x8xf32> -> vector<4x8x8xf32>
    %c0_21 = arith.constant 0 : index
    %c0_22 = arith.constant 0 : index
    %c0_23 = arith.constant 0 : index
    %c0_24 = arith.constant 0 : index
    %37 = vector.load %arg7[%c0_21, %c0_22, %c0_23, %c0_24] : memref<6x4x1x8xf32, #tpu.memory_space<vmem>>, vector<1x4x1x8xf32>
    %38 = vector.shape_cast %37 : vector<1x4x1x8xf32> to vector<4x1x8xf32>
    %39 = vector.broadcast %38 : vector<4x1x8xf32> to vector<4x8x8xf32>
    %40 = arith.addf %36, %39 : vector<4x8x8xf32>
    %c1 = arith.constant 1 : index
    %c0_25 = arith.constant 0 : index
    %c0_26 = arith.constant 0 : index
    %c0_27 = arith.constant 0 : index
    %41 = vector.load %arg6[%c1, %c0_25, %c0_26, %c0_27] : memref<6x4x32x8xf32, #tpu.memory_space<vmem>>, vector<1x4x32x8xf32>
    %42 = vector.shape_cast %41 : vector<1x4x32x8xf32> to vector<4x32x8xf32>
    %cst_28 = arith.constant dense<0.000000e+00> : vector<4x8x8xf32>
    %43 = tpu.matmul %33, %42, %cst_28 {dimension_numbers = #tpu.dot_dimension_numbers<[2], [1], [1], [2], [0, 0, 0, 1, 1, 2], [0], [0]>} : vector<4x8x32xf32>, vector<4x32x8xf32>, vector<4x8x8xf32> -> vector<4x8x8xf32>
    %c1_29 = arith.constant 1 : index
    %c0_30 = arith.constant 0 : index
    %c0_31 = arith.constant 0 : index
    %c0_32 = arith.constant 0 : index
    %44 = vector.load %arg7[%c1_29, %c0_30, %c0_31, %c0_32] : memref<6x4x1x8xf32, #tpu.memory_space<vmem>>, vector<1x4x1x8xf32>
    %45 = vector.shape_cast %44 : vector<1x4x1x8xf32> to vector<4x1x8xf32>
    %46 = vector.broadcast %45 : vector<4x1x8xf32> to vector<4x8x8xf32>
    %47 = arith.addf %43, %46 : vector<4x8x8xf32>
    %c2 = arith.constant 2 : index
    %c0_33 = arith.constant 0 : index
    %c0_34 = arith.constant 0 : index
    %c0_35 = arith.constant 0 : index
    %48 = vector.load %arg6[%c2, %c0_33, %c0_34, %c0_35] : memref<6x4x32x8xf32, #tpu.memory_space<vmem>>, vector<1x4x32x8xf32>
    %49 = vector.shape_cast %48 : vector<1x4x32x8xf32> to vector<4x32x8xf32>
    %cst_36 = arith.constant dense<0.000000e+00> : vector<4x8x8xf32>
    %50 = tpu.matmul %33, %49, %cst_36 {dimension_numbers = #tpu.dot_dimension_numbers<[2], [1], [1], [2], [0, 0, 0, 1, 1, 2], [0], [0]>} : vector<4x8x32xf32>, vector<4x32x8xf32>, vector<4x8x8xf32> -> vector<4x8x8xf32>
    %c2_37 = arith.constant 2 : index
    %c0_38 = arith.constant 0 : index
    %c0_39 = arith.constant 0 : index
    %c0_40 = arith.constant 0 : index
    %51 = vector.load %arg7[%c2_37, %c0_38, %c0_39, %c0_40] : memref<6x4x1x8xf32, #tpu.memory_space<vmem>>, vector<1x4x1x8xf32>
    %52 = vector.shape_cast %51 : vector<1x4x1x8xf32> to vector<4x1x8xf32>
    %53 = vector.broadcast %52 : vector<4x1x8xf32> to vector<4x8x8xf32>
    %54 = arith.addf %50, %53 : vector<4x8x8xf32>
    %cst_41 = arith.constant dense<0.000000e+00> : vector<4x8x8xf32>
    %55 = tpu.matmul %40, %47, %cst_41 {dimension_numbers = #tpu.dot_dimension_numbers<[2], [2], [1], [1], [0, 0, 0, 1, 1, 1], [0], [0]>} : vector<4x8x8xf32>, vector<4x8x8xf32>, vector<4x8x8xf32> -> vector<4x8x8xf32>
    %56 = vector.shape_cast %5 : vector<8x8xf32> to vector<1x8x8xf32>
    %57 = vector.broadcast %56 : vector<1x8x8xf32> to vector<4x8x8xf32>
    %58 = arith.addf %55, %57 : vector<4x8x8xf32>
    %cst_42 = arith.constant dense<0xFF800000> : vector<4x8xf32>
    %59 = vector.multi_reduction <maximumf>, %58, %cst_42 [2] : vector<4x8x8xf32> to vector<4x8xf32>
    %60 = vector.shape_cast %59 : vector<4x8xf32> to vector<4x8x1xf32>
    %61 = vector.broadcast %60 : vector<4x8x1xf32> to vector<4x8x8xf32>
    %62 = arith.subf %58, %61 : vector<4x8x8xf32>
    %63 = math.exp %62 : vector<4x8x8xf32>
    %cst_43 = arith.constant dense<0.000000e+00> : vector<4x8xf32>
    %64 = vector.multi_reduction <add>, %63, %cst_43 [2] : vector<4x8x8xf32> to vector<4x8xf32>
    %65 = vector.shape_cast %64 : vector<4x8xf32> to vector<4x8x1xf32>
    %66 = vector.broadcast %65 : vector<4x8x1xf32> to vector<4x8x8xf32>
    %67 = arith.divf %63, %66 : vector<4x8x8xf32>
    %cst_44 = arith.constant dense<0.000000e+00> : vector<4x8x8xf32>
    %68 = tpu.matmul %67, %54, %cst_44 {dimension_numbers = #tpu.dot_dimension_numbers<[2], [1], [1], [2], [0, 0, 0, 1, 1, 2], [0], [0]>} : vector<4x8x8xf32>, vector<4x8x8xf32>, vector<4x8x8xf32> -> vector<4x8x8xf32>
    %c0_45 = arith.constant 0 : index
    %c0_46 = arith.constant 0 : index
    %c0_47 = arith.constant 0 : index
    %c0_48 = arith.constant 0 : index
    %69 = vector.load %arg8[%c0_45, %c0_46, %c0_47, %c0_48] : memref<2x4x8x32xf32, #tpu.memory_space<vmem>>, vector<1x4x8x32xf32>
    %70 = vector.shape_cast %69 : vector<1x4x8x32xf32> to vector<4x8x32xf32>
    %cst_49 = arith.constant dense<0.000000e+00> : vector<4x8x32xf32>
    %71 = tpu.matmul %68, %70, %cst_49 {dimension_numbers = #tpu.dot_dimension_numbers<[2], [1], [1], [2], [0, 0, 0, 1, 1, 2], [0], [0]>} : vector<4x8x8xf32>, vector<4x8x32xf32>, vector<4x8x32xf32> -> vector<4x8x32xf32>
    %cst_50 = arith.constant dense<0.000000e+00> : vector<8x32xf32>
    %72 = vector.multi_reduction <add>, %71, %cst_50 [0] : vector<4x8x32xf32> to vector<8x32xf32>
    %73 = vector.extract_strided_slice %4 {offsets = [6, 0], sizes = [1, 32], strides = [1, 1]} : vector<9x32xf32> to vector<1x32xf32>
    %74 = vector.broadcast %73 : vector<1x32xf32> to vector<8x32xf32>
    %75 = arith.addf %72, %74 : vector<8x32xf32>
    %76 = arith.addf %1, %75 : vector<8x32xf32>
    %cst_51 = arith.constant dense<0.000000e+00> : vector<8xf32>
    %77 = vector.multi_reduction <add>, %76, %cst_51 [1] : vector<8x32xf32> to vector<8xf32>
    %78 = vector.shape_cast %77 : vector<8xf32> to vector<8x1xf32>
    %cst_52 = arith.constant 3.200000e+01 : f32
    %79 = vector.broadcast %cst_52 : f32 to vector<8x1xf32>
    %80 = arith.divf %78, %79 : vector<8x1xf32>
    %81 = vector.broadcast %80 : vector<8x1xf32> to vector<8x32xf32>
    %82 = arith.subf %76, %81 : vector<8x32xf32>
    %83 = arith.mulf %82, %82 : vector<8x32xf32>
    %cst_53 = arith.constant dense<0.000000e+00> : vector<8xf32>
    %84 = vector.multi_reduction <add>, %83, %cst_53 [1] : vector<8x32xf32> to vector<8xf32>
    %85 = vector.shape_cast %84 : vector<8xf32> to vector<8x1xf32>
    %cst_54 = arith.constant 0.0322580636 : f32
    %86 = vector.broadcast %cst_54 : f32 to vector<8x1xf32>
    %87 = arith.mulf %85, %86 : vector<8x1xf32>
    %88 = math.sqrt %87 : vector<8x1xf32>
    %cst_55 = arith.constant 9.99999997E-7 : f32
    %89 = vector.broadcast %cst_55 : f32 to vector<8x1xf32>
    %90 = arith.addf %88, %89 : vector<8x1xf32>
    %cst_56 = arith.constant 1.000000e+00 : f32
    %91 = vector.broadcast %cst_56 : f32 to vector<8x1xf32>
    %92 = arith.divf %91, %90 : vector<8x1xf32>
    %93 = vector.extract_strided_slice %4 {offsets = [2, 0], sizes = [1, 32], strides = [1, 1]} : vector<9x32xf32> to vector<1x32xf32>
    %94 = vector.broadcast %92 : vector<8x1xf32> to vector<8x32xf32>
    %95 = arith.mulf %82, %94 : vector<8x32xf32>
    %96 = vector.broadcast %93 : vector<1x32xf32> to vector<8x32xf32>
    %97 = arith.mulf %96, %95 : vector<8x32xf32>
    %98 = vector.extract_strided_slice %4 {offsets = [3, 0], sizes = [1, 32], strides = [1, 1]} : vector<9x32xf32> to vector<1x32xf32>
    %99 = vector.broadcast %98 : vector<1x32xf32> to vector<8x32xf32>
    %100 = arith.addf %97, %99 : vector<8x32xf32>
    %101 = vector.shape_cast %100 : vector<8x32xf32> to vector<1x8x32xf32>
    %102 = vector.shape_cast %101 : vector<1x8x32xf32> to vector<1x8x32xf32>
    %103 = vector.broadcast %102 : vector<1x8x32xf32> to vector<4x8x32xf32>
    %104 = vector.shape_cast %3 : vector<8x32xf32> to vector<1x8x32xf32>
    %105 = vector.shape_cast %104 : vector<1x8x32xf32> to vector<1x8x32xf32>
    %106 = vector.broadcast %105 : vector<1x8x32xf32> to vector<4x8x32xf32>
    %c3 = arith.constant 3 : index
    %c0_57 = arith.constant 0 : index
    %c0_58 = arith.constant 0 : index
    %c0_59 = arith.constant 0 : index
    %107 = vector.load %arg6[%c3, %c0_57, %c0_58, %c0_59] : memref<6x4x32x8xf32, #tpu.memory_space<vmem>>, vector<1x4x32x8xf32>
    %108 = vector.shape_cast %107 : vector<1x4x32x8xf32> to vector<4x32x8xf32>
    %cst_60 = arith.constant dense<0.000000e+00> : vector<4x8x8xf32>
    %109 = tpu.matmul %103, %108, %cst_60 {dimension_numbers = #tpu.dot_dimension_numbers<[2], [1], [1], [2], [0, 0, 0, 1, 1, 2], [0], [0]>} : vector<4x8x32xf32>, vector<4x32x8xf32>, vector<4x8x8xf32> -> vector<4x8x8xf32>
    %c3_61 = arith.constant 3 : index
    %c0_62 = arith.constant 0 : index
    %c0_63 = arith.constant 0 : index
    %c0_64 = arith.constant 0 : index
    %110 = vector.load %arg7[%c3_61, %c0_62, %c0_63, %c0_64] : memref<6x4x1x8xf32, #tpu.memory_space<vmem>>, vector<1x4x1x8xf32>
    %111 = vector.shape_cast %110 : vector<1x4x1x8xf32> to vector<4x1x8xf32>
    %112 = vector.broadcast %111 : vector<4x1x8xf32> to vector<4x8x8xf32>
    %113 = arith.addf %109, %112 : vector<4x8x8xf32>
    %c4 = arith.constant 4 : index
    %c0_65 = arith.constant 0 : index
    %c0_66 = arith.constant 0 : index
    %c0_67 = arith.constant 0 : index
    %114 = vector.load %arg6[%c4, %c0_65, %c0_66, %c0_67] : memref<6x4x32x8xf32, #tpu.memory_space<vmem>>, vector<1x4x32x8xf32>
    %115 = vector.shape_cast %114 : vector<1x4x32x8xf32> to vector<4x32x8xf32>
    %cst_68 = arith.constant dense<0.000000e+00> : vector<4x8x8xf32>
    %116 = tpu.matmul %106, %115, %cst_68 {dimension_numbers = #tpu.dot_dimension_numbers<[2], [1], [1], [2], [0, 0, 0, 1, 1, 2], [0], [0]>} : vector<4x8x32xf32>, vector<4x32x8xf32>, vector<4x8x8xf32> -> vector<4x8x8xf32>
    %c4_69 = arith.constant 4 : index
    %c0_70 = arith.constant 0 : index
    %c0_71 = arith.constant 0 : index
    %c0_72 = arith.constant 0 : index
    %117 = vector.load %arg7[%c4_69, %c0_70, %c0_71, %c0_72] : memref<6x4x1x8xf32, #tpu.memory_space<vmem>>, vector<1x4x1x8xf32>
    %118 = vector.shape_cast %117 : vector<1x4x1x8xf32> to vector<4x1x8xf32>
    %119 = vector.broadcast %118 : vector<4x1x8xf32> to vector<4x8x8xf32>
    %120 = arith.addf %116, %119 : vector<4x8x8xf32>
    %c5 = arith.constant 5 : index
    %c0_73 = arith.constant 0 : index
    %c0_74 = arith.constant 0 : index
    %c0_75 = arith.constant 0 : index
    %121 = vector.load %arg6[%c5, %c0_73, %c0_74, %c0_75] : memref<6x4x32x8xf32, #tpu.memory_space<vmem>>, vector<1x4x32x8xf32>
    %122 = vector.shape_cast %121 : vector<1x4x32x8xf32> to vector<4x32x8xf32>
    %cst_76 = arith.constant dense<0.000000e+00> : vector<4x8x8xf32>
    %123 = tpu.matmul %106, %122, %cst_76 {dimension_numbers = #tpu.dot_dimension_numbers<[2], [1], [1], [2], [0, 0, 0, 1, 1, 2], [0], [0]>} : vector<4x8x32xf32>, vector<4x32x8xf32>, vector<4x8x8xf32> -> vector<4x8x8xf32>
    %c5_77 = arith.constant 5 : index
    %c0_78 = arith.constant 0 : index
    %c0_79 = arith.constant 0 : index
    %c0_80 = arith.constant 0 : index
    %124 = vector.load %arg7[%c5_77, %c0_78, %c0_79, %c0_80] : memref<6x4x1x8xf32, #tpu.memory_space<vmem>>, vector<1x4x1x8xf32>
    %125 = vector.shape_cast %124 : vector<1x4x1x8xf32> to vector<4x1x8xf32>
    %126 = vector.broadcast %125 : vector<4x1x8xf32> to vector<4x8x8xf32>
    %127 = arith.addf %123, %126 : vector<4x8x8xf32>
    %cst_81 = arith.constant dense<0.000000e+00> : vector<4x8x8xf32>
    %128 = tpu.matmul %113, %120, %cst_81 {dimension_numbers = #tpu.dot_dimension_numbers<[2], [2], [1], [1], [0, 0, 0, 1, 1, 1], [0], [0]>} : vector<4x8x8xf32>, vector<4x8x8xf32>, vector<4x8x8xf32> -> vector<4x8x8xf32>
    %129 = vector.shape_cast %6 : vector<8x8xf32> to vector<1x8x8xf32>
    %130 = vector.broadcast %129 : vector<1x8x8xf32> to vector<4x8x8xf32>
    %131 = arith.addf %128, %130 : vector<4x8x8xf32>
    %cst_82 = arith.constant dense<0xFF800000> : vector<4x8xf32>
    %132 = vector.multi_reduction <maximumf>, %131, %cst_82 [2] : vector<4x8x8xf32> to vector<4x8xf32>
    %133 = vector.shape_cast %132 : vector<4x8xf32> to vector<4x8x1xf32>
    %134 = vector.broadcast %133 : vector<4x8x1xf32> to vector<4x8x8xf32>
    %135 = arith.subf %131, %134 : vector<4x8x8xf32>
    %136 = math.exp %135 : vector<4x8x8xf32>
    %cst_83 = arith.constant dense<0.000000e+00> : vector<4x8xf32>
    %137 = vector.multi_reduction <add>, %136, %cst_83 [2] : vector<4x8x8xf32> to vector<4x8xf32>
    %138 = vector.shape_cast %137 : vector<4x8xf32> to vector<4x8x1xf32>
    %139 = vector.broadcast %138 : vector<4x8x1xf32> to vector<4x8x8xf32>
    %140 = arith.divf %136, %139 : vector<4x8x8xf32>
    %cst_84 = arith.constant dense<0.000000e+00> : vector<4x8x8xf32>
    %141 = tpu.matmul %140, %127, %cst_84 {dimension_numbers = #tpu.dot_dimension_numbers<[2], [1], [1], [2], [0, 0, 0, 1, 1, 2], [0], [0]>} : vector<4x8x8xf32>, vector<4x8x8xf32>, vector<4x8x8xf32> -> vector<4x8x8xf32>
    %c1_85 = arith.constant 1 : index
    %c0_86 = arith.constant 0 : index
    %c0_87 = arith.constant 0 : index
    %c0_88 = arith.constant 0 : index
    %142 = vector.load %arg8[%c1_85, %c0_86, %c0_87, %c0_88] : memref<2x4x8x32xf32, #tpu.memory_space<vmem>>, vector<1x4x8x32xf32>
    %143 = vector.shape_cast %142 : vector<1x4x8x32xf32> to vector<4x8x32xf32>
    %cst_89 = arith.constant dense<0.000000e+00> : vector<4x8x32xf32>
    %144 = tpu.matmul %141, %143, %cst_89 {dimension_numbers = #tpu.dot_dimension_numbers<[2], [1], [1], [2], [0, 0, 0, 1, 1, 2], [0], [0]>} : vector<4x8x8xf32>, vector<4x8x32xf32>, vector<4x8x32xf32> -> vector<4x8x32xf32>
    %cst_90 = arith.constant dense<0.000000e+00> : vector<8x32xf32>
    %145 = vector.multi_reduction <add>, %144, %cst_90 [0] : vector<4x8x32xf32> to vector<8x32xf32>
    %146 = vector.extract_strided_slice %4 {offsets = [7, 0], sizes = [1, 32], strides = [1, 1]} : vector<9x32xf32> to vector<1x32xf32>
    %147 = vector.broadcast %146 : vector<1x32xf32> to vector<8x32xf32>
    %148 = arith.addf %145, %147 : vector<8x32xf32>
    %149 = arith.addf %76, %148 : vector<8x32xf32>
    %cst_91 = arith.constant dense<0.000000e+00> : vector<8xf32>
    %150 = vector.multi_reduction <add>, %149, %cst_91 [1] : vector<8x32xf32> to vector<8xf32>
    %151 = vector.shape_cast %150 : vector<8xf32> to vector<8x1xf32>
    %cst_92 = arith.constant 3.200000e+01 : f32
    %152 = vector.broadcast %cst_92 : f32 to vector<8x1xf32>
    %153 = arith.divf %151, %152 : vector<8x1xf32>
    %154 = vector.broadcast %153 : vector<8x1xf32> to vector<8x32xf32>
    %155 = arith.subf %149, %154 : vector<8x32xf32>
    %156 = arith.mulf %155, %155 : vector<8x32xf32>
    %cst_93 = arith.constant dense<0.000000e+00> : vector<8xf32>
    %157 = vector.multi_reduction <add>, %156, %cst_93 [1] : vector<8x32xf32> to vector<8xf32>
    %158 = vector.shape_cast %157 : vector<8xf32> to vector<8x1xf32>
    %cst_94 = arith.constant 0.0322580636 : f32
    %159 = vector.broadcast %cst_94 : f32 to vector<8x1xf32>
    %160 = arith.mulf %158, %159 : vector<8x1xf32>
    %161 = math.sqrt %160 : vector<8x1xf32>
    %cst_95 = arith.constant 9.99999997E-7 : f32
    %162 = vector.broadcast %cst_95 : f32 to vector<8x1xf32>
    %163 = arith.addf %161, %162 : vector<8x1xf32>
    %cst_96 = arith.constant 1.000000e+00 : f32
    %164 = vector.broadcast %cst_96 : f32 to vector<8x1xf32>
    %165 = arith.divf %164, %163 : vector<8x1xf32>
    %166 = vector.extract_strided_slice %4 {offsets = [4, 0], sizes = [1, 32], strides = [1, 1]} : vector<9x32xf32> to vector<1x32xf32>
    %167 = vector.broadcast %165 : vector<8x1xf32> to vector<8x32xf32>
    %168 = arith.mulf %155, %167 : vector<8x32xf32>
    %169 = vector.broadcast %166 : vector<1x32xf32> to vector<8x32xf32>
    %170 = arith.mulf %169, %168 : vector<8x32xf32>
    %171 = vector.extract_strided_slice %4 {offsets = [5, 0], sizes = [1, 32], strides = [1, 1]} : vector<9x32xf32> to vector<1x32xf32>
    %172 = vector.broadcast %171 : vector<1x32xf32> to vector<8x32xf32>
    %173 = arith.addf %170, %172 : vector<8x32xf32>
    %c0_97 = arith.constant 0 : index
    %c0_98 = arith.constant 0 : index
    %174 = vector.load %arg9[%c0_97, %c0_98] : memref<32x64xf32, #tpu.memory_space<vmem>>, vector<32x64xf32>
    %cst_99 = arith.constant dense<0.000000e+00> : vector<8x64xf32>
    %175 = tpu.matmul %173, %174, %cst_99 {dimension_numbers = #tpu.dot_dimension_numbers<[1], [0], [0], [1], [0, 0, 1, 1], [], []>} : vector<8x32xf32>, vector<32x64xf32>, vector<8x64xf32> -> vector<8x64xf32>
    %c0_100 = arith.constant 0 : index
    %c0_101 = arith.constant 0 : index
    %176 = vector.load %arg10[%c0_100, %c0_101] : memref<1x64xf32, #tpu.memory_space<vmem>>, vector<1x64xf32>
    %177 = vector.broadcast %176 : vector<1x64xf32> to vector<8x64xf32>
    %178 = arith.addf %175, %177 : vector<8x64xf32>
    %cst_102 = arith.constant 0.000000e+00 : f32
    %179 = vector.broadcast %cst_102 : f32 to vector<8x64xf32>
    %180 = arith.maximumf %178, %179 : vector<8x64xf32>
    %c0_103 = arith.constant 0 : index
    %c0_104 = arith.constant 0 : index
    %181 = vector.load %arg11[%c0_103, %c0_104] : memref<64x32xf32, #tpu.memory_space<vmem>>, vector<64x32xf32>
    %cst_105 = arith.constant dense<0.000000e+00> : vector<8x32xf32>
    %182 = tpu.matmul %180, %181, %cst_105 {dimension_numbers = #tpu.dot_dimension_numbers<[1], [0], [0], [1], [0, 0, 1, 1], [], []>} : vector<8x64xf32>, vector<64x32xf32>, vector<8x32xf32> -> vector<8x32xf32>
    %183 = vector.extract_strided_slice %4 {offsets = [8, 0], sizes = [1, 32], strides = [1, 1]} : vector<9x32xf32> to vector<1x32xf32>
    %184 = vector.broadcast %183 : vector<1x32xf32> to vector<8x32xf32>
    %185 = arith.addf %182, %184 : vector<8x32xf32>
    %186 = arith.addf %149, %185 : vector<8x32xf32>
    %c0_106 = arith.constant 0 : index
    %c0_107 = arith.constant 0 : index
    %c0_108 = arith.constant 0 : index
    %187 = vector.load %arg12[%c0_106, %c0_107, %c0_108] : memref<1x8x32xf32, #tpu.memory_space<vmem>>, vector<1x8x32xf32>
    %188 = vector.shape_cast %187 : vector<1x8x32xf32> to vector<8x32xf32>
    %189 = vector.shape_cast %186 : vector<8x32xf32> to vector<1x8x32xf32>
    tpu.vector_store %arg12[%c0_106, %c0_107, %c0_108], %189 {strides = array<i32>} : memref<1x8x32xf32, #tpu.memory_space<vmem>>, vector<1x8x32xf32>,
    return
  }
  func.func @transform_0(%arg0: i32) -> (i32, i32, i32) {
    %c0_i32 = arith.constant 0 : i32
    %c0_i32_0 = arith.constant 0 : i32
    %c0_i32_1 = arith.constant 0 : i32
    return %arg0, %c0_i32, %c0_i32_0 : i32, i32, i32
  }
  func.func @transform_1(%arg0: i32) -> (i32, i32, i32) {
    %c0_i32 = arith.constant 0 : i32
    %c0_i32_0 = arith.constant 0 : i32
    %c0_i32_1 = arith.constant 0 : i32
    return %arg0, %c0_i32, %c0_i32_0 : i32, i32, i32
  }
  func.func @transform_2(%arg0: i32) -> (i32, i32) {
    %c0_i32 = arith.constant 0 : i32
    %c0_i32_0 = arith.constant 0 : i32
    %c0_i32_1 = arith.constant 0 : i32
    return %c0_i32, %c0_i32_0 : i32, i32
  }
  func.func @transform_3(%arg0: i32) -> (i32, i32) {
    %c0_i32 = arith.constant 0 : i32
    %c0_i32_0 = arith.constant 0 : i32
    %c0_i32_1 = arith.constant 0 : i32
    return %c0_i32, %c0_i32_0 : i32, i32
  }
  func.func @transform_4(%arg0: i32) -> (i32, i32) {
    %c0_i32 = arith.constant 0 : i32
    %c0_i32_0 = arith.constant 0 : i32
    %c0_i32_1 = arith.constant 0 : i32
    return %c0_i32, %c0_i32_0 : i32, i32
  }
  func.func @transform_5(%arg0: i32) -> (i32, i32, i32, i32) {
    %c0_i32 = arith.constant 0 : i32
    %c0_i32_0 = arith.constant 0 : i32
    %c0_i32_1 = arith.constant 0 : i32
    %c0_i32_2 = arith.constant 0 : i32
    %c0_i32_3 = arith.constant 0 : i32
    return %c0_i32, %c0_i32_0, %c0_i32_1, %c0_i32_2 : i32, i32, i32, i32
  }
  func.func @transform_6(%arg0: i32) -> (i32, i32, i32, i32) {
    %c0_i32 = arith.constant 0 : i32
    %c0_i32_0 = arith.constant 0 : i32
    %c0_i32_1 = arith.constant 0 : i32
    %c0_i32_2 = arith.constant 0 : i32
    %c0_i32_3 = arith.constant 0 : i32
    return %c0_i32, %c0_i32_0, %c0_i32_1, %c0_i32_2 : i32, i32, i32, i32
  }
  func.func @transform_7(%arg0: i32) -> (i32, i32, i32, i32) {
    %c0_i32 = arith.constant 0 : i32
    %c0_i32_0 = arith.constant 0 : i32
    %c0_i32_1 = arith.constant 0 : i32
    %c0_i32_2 = arith.constant 0 : i32
    %c0_i32_3 = arith.constant 0 : i32
    return %c0_i32, %c0_i32_0, %c0_i32_1, %c0_i32_2 : i32, i32, i32, i32
  }
  func.func @transform_8(%arg0: i32) -> (i32, i32) {
    %c0_i32 = arith.constant 0 : i32
    %c0_i32_0 = arith.constant 0 : i32
    %c0_i32_1 = arith.constant 0 : i32
    return %c0_i32, %c0_i32_0 : i32, i32
  }
  func.func @transform_9(%arg0: i32) -> (i32, i32) {
    %c0_i32 = arith.constant 0 : i32
    %c0_i32_0 = arith.constant 0 : i32
    %c0_i32_1 = arith.constant 0 : i32
    return %c0_i32, %c0_i32_0 : i32, i32
  }
  func.func @transform_10(%arg0: i32) -> (i32, i32) {
    %c0_i32 = arith.constant 0 : i32
    %c0_i32_0 = arith.constant 0 : i32
    %c0_i32_1 = arith.constant 0 : i32
    return %c0_i32, %c0_i32_0 : i32, i32
  }
  func.func @transform_11(%arg0: i32) -> (i32, i32, i32) {
    %c0_i32 = arith.constant 0 : i32
    %c0_i32_0 = arith.constant 0 : i32
    %c0_i32_1 = arith.constant 0 : i32
    return %arg0, %c0_i32, %c0_i32_0 : i32, i32, i32
  }
}

</mosaic_0001>

<llo_original>
// kernel: tpu_custom_call.1
$region0: #{tpu_custom_call.1}
  #allocation0 [shape = 'u32[]', space=smem, size = 0x4, offset = 0x4, fixed_abs, tag = 'smem constant byte address 0x4 - core index']
  #allocation1 [shape = 'u32[144,128]{1,0:T(1,128)}', space=vmem, size = 0x12000, scoped, tag = 'internal scratch']
  %s0 = inlined_call_operand.hbm [shape: f32[2,8,32], index: 0, kind: input, shape index: {}]
  %s1 = inlined_call_operand.hbm [shape: f32[2,8,32], index: 1, kind: input, shape index: {}]
  %s2 = inlined_call_operand.hbm [shape: f32[8,8], index: 2, kind: input, shape index: {}]
  %s3 = inlined_call_operand.hbm [shape: f32[8,8], index: 3, kind: input, shape index: {}]
  %s4 = inlined_call_operand.hbm [shape: f32[9,32], index: 4, kind: input, shape index: {}]
  %s5 = inlined_call_operand.hbm [shape: f32[6,4,32,8], index: 5, kind: input, shape index: {}]
  %s6 = inlined_call_operand.hbm [shape: f32[6,4,1,8], index: 6, kind: input, shape index: {}]
  %s7 = inlined_call_operand.hbm [shape: f32[2,4,8,32], index: 7, kind: input, shape index: {}]
  %s8 = inlined_call_operand.hbm [shape: f32[32,64], index: 8, kind: input, shape index: {}]
  %s9 = inlined_call_operand.hbm [shape: f32[1,64], index: 9, kind: input, shape index: {}]
  %s10 = inlined_call_operand.hbm [shape: f32[64,32], index: 10, kind: input, shape index: {}]
  %s11 = inlined_call_operand.hbm [shape: f32[2,8,32], index: 11, kind: output, shape index: {}]
  %s12 = sld [smem:[#allocation0]]
  $region121: #{tpu_custom_call.1} parent=0
    _
  %s14 = ssub.s32 1, %s12
  %s15 = scalar_select 0, %s14, %s12
  $region1: #{tpu_custom_call.1} parent=0
    #allocation2 [shape = 'u8[8192]{0}', space=vmem, size = 0x2000, scoped, tag = 'input window, operand 0']
    #allocation3 [shape = 's32[2]{0}', space=sflag, size = 0x8, scoped, tag = 'scoped memory for tpu_custom_call.1']
    #allocation4 [shape = 's32[2]{0}', space=sflag, size = 0x8, scoped, tag = 'scoped memory for tpu_custom_call.1']
    #allocation5 [shape = 'u8[8192]{0}', space=vmem, size = 0x2000, scoped, tag = 'input window, operand 1']
    #allocation6 [shape = 's32[2]{0}', space=sflag, size = 0x8, scoped, tag = 'scoped memory for tpu_custom_call.1']
    #allocation7 [shape = 'u8[4096]{0}', space=vmem, size = 0x1000, scoped, tag = 'input window, operand 2, single buffered']
    #allocation8 [shape = 'u8[4096]{0}', space=vmem, size = 0x1000, scoped, tag = 'input window, operand 3, single buffered']
    #allocation9 [shape = 's32[1]{0}', space=sflag, size = 0x4, scoped, tag = 'scoped memory for tpu_custom_call.1']
    #allocation10 [shape = 'u8[8192]{0}', space=vmem, size = 0x2000, scoped, tag = 'input window, operand 4, single buffered']
    #allocation11 [shape = 'u8[393216]{0}', space=vmem, size = 0x60000, scoped, tag = 'input window, operand 5, single buffered']
    #allocation12 [shape = 's32[1]{0}', space=sflag, size = 0x4, scoped, tag = 'scoped memory for tpu_custom_call.1']
    #allocation13 [shape = 'u8[12288]{0}', space=vmem, size = 0x3000, scoped, tag = 'input window, operand 6, single buffered']
    #allocation14 [shape = 'u8[32768]{0}', space=vmem, size = 0x8000, scoped, tag = 'input window, operand 7, single buffered']
    #allocation15 [shape = 's32[1]{0}', space=sflag, size = 0x4, scoped, tag = 'scoped memory for tpu_custom_call.1']
    #allocation16 [shape = 'u8[16384]{0}', space=vmem, size = 0x4000, scoped, tag = 'input window, operand 8, single buffered']
    #allocation17 [shape = 'u8[512]{0}', space=vmem, size = 0x400, scoped, tag = 'input window, operand 9, single buffered']
    #allocation18 [shape = 's32[1]{0}', space=sflag, size = 0x4, scoped, tag = 'scoped memory for tpu_custom_call.1']
    #allocation19 [shape = 'u8[32768]{0}', space=vmem, size = 0x8000, scoped, tag = 'input window, operand 10, single buffered']
    #allocation20 [shape = 'u8[8192]{0}', space=vmem, size = 0x2000, scoped, tag = 'output window, operand 0']
    %16 = vsyncpa [#allocation3], 0
    %s17 = scalar_lea.sflag [#allocation3], 1
    %18 = vsyncpa %s17, 0
    %19 = vsyncpa [#allocation6], 0
    %s20 = scalar_lea.sflag [#allocation6], 1
    %21 = vsyncpa %s20, 0
    %22 = vsyncpa [#allocation9], 0
    %23 = vsyncpa [#allocation12], 0
    %24 = vsyncpa [#allocation15], 0
    %25 = vsyncpa [#allocation18], 0
    %26 = vsyncpa [#allocation4], 0
    %s27 = scalar_lea.sflag [#allocation4], 1
    %28 = vsyncpa %s27, 0
    loop: start=0, step=1, limit=4
    $region2: #{tpu_custom_call.1} parent=1 // loop_pre_header
      _
    $region3: #{tpu_custom_call.1} parent=1 // loop_header
      %s30 = sphi 0, %s34
      %p31 = scmp.ge.s32.totalorder %s30, 4
      %s40 = sphi 0, %s42
      %s43 = sphi 0, %s40
      %s44 = sphi 0, %s43
      %s60 = sphi 0, %s44
      %s66 = sphi 0, %s68
      %s69 = sphi 0, %s66
      %s70 = sphi 0, %s69
      %s86 = sphi 0, %s70
      %s90 = sphi 0, %s90
      %s92 = sphi 0, %s90
      %s93 = sphi 0, %s92
      %s107 = sphi 0, %s93
      %s111 = sphi 0, %s111
      %s113 = sphi 0, %s111
      %s114 = sphi 0, %s113
      %s128 = sphi 0, %s114
      %s132 = sphi 0, %s132
      %s134 = sphi 0, %s132
      %s135 = sphi 0, %s134
      %s149 = sphi 0, %s135
      %s153 = sphi 0, %s153
      %s155 = sphi 0, %s153
      %s156 = sphi 0, %s155
      %s170 = sphi 0, %s156
      %s174 = sphi 0, %s174
      %s176 = sphi 0, %s174
      %s177 = sphi 0, %s176
      %s191 = sphi 0, %s177
      %s195 = sphi 0, %s195
      %s197 = sphi 0, %s195
      %s198 = sphi 0, %s197
      %s212 = sphi 0, %s198
      %s216 = sphi 0, %s216
      %s218 = sphi 0, %s216
      %s219 = sphi 0, %s218
      %s233 = sphi 0, %s219
      %s237 = sphi 0, %s237
      %s239 = sphi 0, %s237
      %s240 = sphi 0, %s239
      %s254 = sphi 0, %s240
      %s258 = sphi 0, %s258
      %s260 = sphi 0, %s258
      %s261 = sphi 0, %s260
      %s275 = sphi 0, %s261
      %s281 = sphi 0, %s283
      %s284 = sphi 0, %s281
      %s285 = sphi 0, %s284
      %s301 = sphi 0, %s285
    $region4: #{tpu_custom_call.1} parent=1 // loop_header_branch
      %33 = sbr.rel (%p31) target = $region8
    $region5: #{tpu_custom_call.1} parent=1 // loop_body
      %s35 = ssub.s32 %s30, 1
      %s36 = ssub.s32 %s30, 2
      %s37 = sadd.s32 %s30, 1
      %s38 = ssub.s32 %s30, %s37
      %p39 = scmp.eq.s32.totalorder %s38, 0
      %s41 = sadd.s32 %s40, 1
      %s42 = scalar_select %p39, %s40, %s41
      %p45 = pneg %p39
      %p46 = scmp.eq.s32.totalorder %s30, 1
      %p47 = por %p45, %p46
      %p48 = scmp.ne.s32.totalorder %s40, %s43
      %p49 = scmp.eq.s32.totalorder %s30, 0
      %p50 = por %p48, %p49
      %p51 = scmp.ne.s32.totalorder %s40, %s43
      %p52 = scmp.eq.s32.totalorder %s35, 1
      %p53 = por %p51, %p52
      %p54 = scmp.ne.s32.totalorder %s43, %s44
      %p55 = scmp.eq.s32.totalorder %s35, 0
      %p56 = por %p54, %p55
      %p57 = scmp.ne.s32.totalorder %s43, %s44
      %p58 = scmp.eq.s32.totalorder %s36, 1
      %p59 = por %p57, %p58
      %p61 = scmp.ne.s32.totalorder %s44, %s60
      %p62 = scmp.eq.s32.totalorder %s36, 0
      %p63 = por %p61, %p62
      %s64 = ssub.s32 %s30, %s37
      %p65 = scmp.eq.s32.totalorder %s64, 0
      %s67 = sadd.s32 %s66, 1
      %s68 = scalar_select %p65, %s66, %s67
      %p71 = pneg %p65
      %p72 = scmp.eq.s32.totalorder %s30, 1
      %p73 = por %p71, %p72
      %p74 = scmp.ne.s32.totalorder %s66, %s69
      %p75 = scmp.eq.s32.totalorder %s30, 0
      %p76 = por %p74, %p75
      %p77 = scmp.ne.s32.totalorder %s66, %s69
      %p78 = scmp.eq.s32.totalorder %s35, 1
      %p79 = por %p77, %p78
      %p80 = scmp.ne.s32.totalorder %s69, %s70
      %p81 = scmp.eq.s32.totalorder %s35, 0
      %p82 = por %p80, %p81
      %p83 = scmp.ne.s32.totalorder %s69, %s70
      %p84 = scmp.eq.s32.totalorder %s36, 1
      %p85 = por %p83, %p84
      %p87 = scmp.ne.s32.totalorder %s70, %s86
      %p88 = scmp.eq.s32.totalorder %s36, 0
      %p89 = por %p87, %p88
      %s91 = sadd.s32 %s90, 1
      %p94 = scmp.eq.s32.totalorder %s30, 1
      %p95 = scmp.ne.s32.totalorder %s90, %s92
      %p96 = scmp.eq.s32.totalorder %s30, 0
      %p97 = por %p95, %p96
      %p98 = scmp.ne.s32.totalorder %s90, %s92
      %p99 = scmp.eq.s32.totalorder %s35, 1
      %p100 = por %p98, %p99
      %p101 = scmp.ne.s32.totalorder %s92, %s93
      %p102 = scmp.eq.s32.totalorder %s35, 0
      %p103 = por %p101, %p102
      %p104 = scmp.ne.s32.totalorder %s92, %s93
      %p105 = scmp.eq.s32.totalorder %s36, 1
      %p106 = por %p104, %p105
      %p108 = scmp.ne.s32.totalorder %s93, %s107
      %p109 = scmp.eq.s32.totalorder %s36, 0
      %p110 = por %p108, %p109
      %s112 = sadd.s32 %s111, 1
      %p115 = scmp.eq.s32.totalorder %s30, 1
      %p116 = scmp.ne.s32.totalorder %s111, %s113
      %p117 = scmp.eq.s32.totalorder %s30, 0
      %p118 = por %p116, %p117
      %p119 = scmp.ne.s32.totalorder %s111, %s113
      %p120 = scmp.eq.s32.totalorder %s35, 1
      %p121 = por %p119, %p120
      %p122 = scmp.ne.s32.totalorder %s113, %s114
      %p123 = scmp.eq.s32.totalorder %s35, 0
      %p124 = por %p122, %p123
      %p125 = scmp.ne.s32.totalorder %s113, %s114
      %p126 = scmp.eq.s32.totalorder %s36, 1
      %p127 = por %p125, %p126
      %p129 = scmp.ne.s32.totalorder %s114, %s128
      %p130 = scmp.eq.s32.totalorder %s36, 0
      %p131 = por %p129, %p130
      %s133 = sadd.s32 %s132, 1
      %p136 = scmp.eq.s32.totalorder %s30, 1
      %p137 = scmp.ne.s32.totalorder %s132, %s134
      %p138 = scmp.eq.s32.totalorder %s30, 0
      %p139 = por %p137, %p138
      %p140 = scmp.ne.s32.totalorder %s132, %s134
      %p141 = scmp.eq.s32.totalorder %s35, 1
      %p142 = por %p140, %p141
      %p143 = scmp.ne.s32.totalorder %s134, %s135
      %p144 = scmp.eq.s32.totalorder %s35, 0
      %p145 = por %p143, %p144
      %p146 = scmp.ne.s32.totalorder %s134, %s135
      %p147 = scmp.eq.s32.totalorder %s36, 1
      %p148 = por %p146, %p147
      %p150 = scmp.ne.s32.totalorder %s135, %s149
      %p151 = scmp.eq.s32.totalorder %s36, 0
      %p152 = por %p150, %p151
      %s154 = sadd.s32 %s153, 1
      %p157 = scmp.eq.s32.totalorder %s30, 1
      %p158 = scmp.ne.s32.totalorder %s153, %s155
      %p159 = scmp.eq.s32.totalorder %s30, 0
      %p160 = por %p158, %p159
      %p161 = scmp.ne.s32.totalorder %s153, %s155
      %p162 = scmp.eq.s32.totalorder %s35, 1
      %p163 = por %p161, %p162
      %p164 = scmp.ne.s32.totalorder %s155, %s156
      %p165 = scmp.eq.s32.totalorder %s35, 0
      %p166 = por %p164, %p165
      %p167 = scmp.ne.s32.totalorder %s155, %s156
      %p168 = scmp.eq.s32.totalorder %s36, 1
      %p169 = por %p167, %p168
      %p171 = scmp.ne.s32.totalorder %s156, %s170
      %p172 = scmp.eq.s32.totalorder %s36, 0
      %p173 = por %p171, %p172
      %s175 = sadd.s32 %s174, 1
      %p178 = scmp.eq.s32.totalorder %s30, 1
      %p179 = scmp.ne.s32.totalorder %s174, %s176
      %p180 = scmp.eq.s32.totalorder %s30, 0
      %p181 = por %p179, %p180
      %p182 = scmp.ne.s32.totalorder %s174, %s176
      %p183 = scmp.eq.s32.totalorder %s35, 1
      %p184 = por %p182, %p183
      %p185 = scmp.ne.s32.totalorder %s176, %s177
      %p186 = scmp.eq.s32.totalorder %s35, 0
      %p187 = por %p185, %p186
      %p188 = scmp.ne.s32.totalorder %s176, %s177
      %p189 = scmp.eq.s32.totalorder %s36, 1
      %p190 = por %p188, %p189
      %p192 = scmp.ne.s32.totalorder %s177, %s191
      %p193 = scmp.eq.s32.totalorder %s36, 0
      %p194 = por %p192, %p193
      %s196 = sadd.s32 %s195, 1
      %p199 = scmp.eq.s32.totalorder %s30, 1
      %p200 = scmp.ne.s32.totalorder %s195, %s197
      %p201 = scmp.eq.s32.totalorder %s30, 0
      %p202 = por %p200, %p201
      %p203 = scmp.ne.s32.totalorder %s195, %s197
      %p204 = scmp.eq.s32.totalorder %s35, 1
      %p205 = por %p203, %p204
      %p206 = scmp.ne.s32.totalorder %s197, %s198
      %p207 = scmp.eq.s32.totalorder %s35, 0
      %p208 = por %p206, %p207
      %p209 = scmp.ne.s32.totalorder %s197, %s198
      %p210 = scmp.eq.s32.totalorder %s36, 1
      %p211 = por %p209, %p210
      %p213 = scmp.ne.s32.totalorder %s198, %s212
      %p214 = scmp.eq.s32.totalorder %s36, 0
      %p215 = por %p213, %p214
      %s217 = sadd.s32 %s216, 1
      %p220 = scmp.eq.s32.totalorder %s30, 1
      %p221 = scmp.ne.s32.totalorder %s216, %s218
      %p222 = scmp.eq.s32.totalorder %s30, 0
      %p223 = por %p221, %p222
      %p224 = scmp.ne.s32.totalorder %s216, %s218
      %p225 = scmp.eq.s32.totalorder %s35, 1
      %p226 = por %p224, %p225
      %p227 = scmp.ne.s32.totalorder %s218, %s219
      %p228 = scmp.eq.s32.totalorder %s35, 0
      %p229 = por %p227, %p228
      %p230 = scmp.ne.s32.totalorder %s218, %s219
      %p231 = scmp.eq.s32.totalorder %s36, 1
      %p232 = por %p230, %p231
      %p234 = scmp.ne.s32.totalorder %s219, %s233
      %p235 = scmp.eq.s32.totalorder %s36, 0
      %p236 = por %p234, %p235
      %s238 = sadd.s32 %s237, 1
      %p241 = scmp.eq.s32.totalorder %s30, 1
      %p242 = scmp.ne.s32.totalorder %s237, %s239
      %p243 = scmp.eq.s32.totalorder %s30, 0
      %p244 = por %p242, %p243
      %p245 = scmp.ne.s32.totalorder %s237, %s239
      %p246 = scmp.eq.s32.totalorder %s35, 1
      %p247 = por %p245, %p246
      %p248 = scmp.ne.s32.totalorder %s239, %s240
      %p249 = scmp.eq.s32.totalorder %s35, 0
      %p250 = por %p248, %p249
      %p251 = scmp.ne.s32.totalorder %s239, %s240
      %p252 = scmp.eq.s32.totalorder %s36, 1
      %p253 = por %p251, %p252
      %p255 = scmp.ne.s32.totalorder %s240, %s254
      %p256 = scmp.eq.s32.totalorder %s36, 0
      %p257 = por %p255, %p256
      %s259 = sadd.s32 %s258, 1
      %p262 = scmp.eq.s32.totalorder %s30, 1
      %p263 = scmp.ne.s32.totalorder %s258, %s260
      %p264 = scmp.eq.s32.totalorder %s30, 0
      %p265 = por %p263, %p264
      %p266 = scmp.ne.s32.totalorder %s258, %s260
      %p267 = scmp.eq.s32.totalorder %s35, 1
      %p268 = por %p266, %p267
      %p269 = scmp.ne.s32.totalorder %s260, %s261
      %p270 = scmp.eq.s32.totalorder %s35, 0
      %p271 = por %p269, %p270
      %p272 = scmp.ne.s32.totalorder %s260, %s261
      %p273 = scmp.eq.s32.totalorder %s36, 1
      %p274 = por %p272, %p273
      %p276 = scmp.ne.s32.totalorder %s261, %s275
      %p277 = scmp.eq.s32.totalorder %s36, 0
      %p278 = por %p276, %p277
      %s279 = ssub.s32 %s30, %s37
      %p280 = scmp.eq.s32.totalorder %s279, 0
      %s282 = sadd.s32 %s281, 1
      %s283 = scalar_select %p280, %s281, %s282
      %p286 = pneg %p280
      %p287 = scmp.eq.s32.totalorder %s30, 1
      %p288 = por %p286, %p287
      %p289 = scmp.ne.s32.totalorder %s281, %s284
      %p290 = scmp.eq.s32.totalorder %s30, 0
      %p291 = por %p289, %p290
      %p292 = scmp.ne.s32.totalorder %s281, %s284
      %p293 = scmp.eq.s32.totalorder %s35, 1
      %p294 = por %p292, %p293
      %p295 = scmp.ne.s32.totalorder %s284, %s285
      %p296 = scmp.eq.s32.totalorder %s35, 0
      %p297 = por %p295, %p296
      %p298 = scmp.ne.s32.totalorder %s284, %s285
      %p299 = scmp.eq.s32.totalorder %s36, 1
      %p300 = por %p298, %p299
      %p302 = scmp.ne.s32.totalorder %s285, %s301
      %p303 = scmp.eq.s32.totalorder %s36, 0
      %p304 = por %p302, %p303
      %p305 = scmp.le.s32.totalorder 1, %s30
      %p306 = scmp.lt.s32.totalorder %s30, 3
      %p307 = pnand %p305, %p306
      %p308 = pneg %p307
      // Predicated region
      $region9: #{tpu_custom_call.1} parent=5 // pred_check
        _
      $region10: #{tpu_custom_call.1} parent=5 // pred_check_branch
        %310 = sbr.rel (%p307) target = $region12
      $region11: #{tpu_custom_call.1} parent=5 // pred_region
        %s311 = ssub.s32 %s30, 1
        // Predicated region
        $region13: #{tpu_custom_call.1} parent=11 // pred_check
          %p312 = pneg %p103
        $region14: #{tpu_custom_call.1} parent=11 // pred_check_branch
          %314 = sbr.rel (%p312) target = $region16
        $region15: #{tpu_custom_call.1} parent=11 // pred_region
          %s316 = ssub.s32 128, 128
          %317 = vsyncadd [#allocation6], %s316
          %s319 = sshll.u32 [#allocation7], 4
          %s320 = int_to_ptr.vmem [resolvable:$true] %s319
          %322 = dma.hbm_to_vmem [thread:$0]  %s2, 128, %s320, [#allocation6]
        $region16: #{tpu_custom_call.1} parent=11 // pred_fallthru
          _
        // Predicated region
        $region17: #{tpu_custom_call.1} parent=11 // pred_check
          %p323 = pneg %p124
        $region18: #{tpu_custom_call.1} parent=11 // pred_check_branch
          %325 = sbr.rel (%p323) target = $region20
        $region19: #{tpu_custom_call.1} parent=11 // pred_region
          %s327 = ssub.s32 128, 128
          %328 = vsyncadd [#allocation9], %s327
          %s330 = sshll.u32 [#allocation8], 4
          %s331 = int_to_ptr.vmem [resolvable:$true] %s330
          %333 = dma.hbm_to_vmem [thread:$0]  %s3, 128, %s331, [#allocation9]
        $region20: #{tpu_custom_call.1} parent=11 // pred_fallthru
          _
        // Predicated region
        $region21: #{tpu_custom_call.1} parent=11 // pred_check
          %p334 = pneg %p145
        $region22: #{tpu_custom_call.1} parent=11 // pred_check_branch
          %336 = sbr.rel (%p334) target = $region24
        $region23: #{tpu_custom_call.1} parent=11 // pred_region
          %s338 = ssub.s32 256, 256
          %339 = vsyncadd [#allocation9], %s338
          %s340 = sshll.u32 [#allocation10], 4
          %s341 = int_to_ptr.vmem [resolvable:$true] %s340
          %346 = dma.hbm_to_vmem [thread:$0]  %s4, 256, %s341, [#allocation9], 128, 128, 8
        $region24: #{tpu_custom_call.1} parent=11 // pred_fallthru
          _
        // Predicated region
        $region25: #{tpu_custom_call.1} parent=11 // pred_check
          %p347 = pneg %p166
        $region26: #{tpu_custom_call.1} parent=11 // pred_check_branch
          %349 = sbr.rel (%p347) target = $region28
        $region27: #{tpu_custom_call.1} parent=11 // pred_region
          %s351 = ssub.s32 12288, 12288
          %352 = vsyncadd [#allocation12], %s351
          %s353 = sshll.u32 [#allocation11], 4
          %s354 = int_to_ptr.vmem [resolvable:$true] %s353
          %359 = dma.hbm_to_vmem [thread:$0]  %s5, 12288, %s354, [#allocation12], 128, 128, 8
        $region28: #{tpu_custom_call.1} parent=11 // pred_fallthru
          _
        // Predicated region
        $region29: #{tpu_custom_call.1} parent=11 // pred_check
          %p360 = pneg %p187
        $region30: #{tpu_custom_call.1} parent=11 // pred_check_branch
          %362 = sbr.rel (%p360) target = $region32
        $region31: #{tpu_custom_call.1} parent=11 // pred_region
          %s364 = ssub.s32 384, 384
          %365 = vsyncadd [#allocation12], %s364
          %s366 = sshll.u32 [#allocation13], 4
          %s367 = int_to_ptr.vmem [resolvable:$true] %s366
          %372 = dma.hbm_to_vmem [thread:$0]  %s6, 384, %s367, [#allocation12], 16, 16, 1
        $region32: #{tpu_custom_call.1} parent=11 // pred_fallthru
          _
        // Predicated region
        $region33: #{tpu_custom_call.1} parent=11 // pred_check
          %p373 = pneg %p208
        $region34: #{tpu_custom_call.1} parent=11 // pred_check_branch
          %375 = sbr.rel (%p373) target = $region36
        $region35: #{tpu_custom_call.1} parent=11 // pred_region
          %s377 = ssub.s32 1024, 1024
          %378 = vsyncadd [#allocation15], %s377
          %s379 = sshll.u32 [#allocation14], 4
          %s380 = int_to_ptr.vmem [resolvable:$true] %s379
          %385 = dma.hbm_to_vmem [thread:$0]  %s7, 1024, %s380, [#allocation15], 128, 128, 8
        $region36: #{tpu_custom_call.1} parent=11 // pred_fallthru
          _
        // Predicated region
        $region37: #{tpu_custom_call.1} parent=11 // pred_check
          %p386 = pneg %p229
        $region38: #{tpu_custom_call.1} parent=11 // pred_check_branch
          %388 = sbr.rel (%p386) target = $region40
        $region39: #{tpu_custom_call.1} parent=11 // pred_region
          %s390 = ssub.s32 512, 512
          %391 = vsyncadd [#allocation15], %s390
          %s392 = sshll.u32 [#allocation16], 4
          %s393 = int_to_ptr.vmem [resolvable:$true] %s392
          %398 = dma.hbm_to_vmem [thread:$0]  %s8, 512, %s393, [#allocation15], 128, 128, 8
        $region40: #{tpu_custom_call.1} parent=11 // pred_fallthru
          _
        // Predicated region
        $region41: #{tpu_custom_call.1} parent=11 // pred_check
          %p399 = pneg %p250
        $region42: #{tpu_custom_call.1} parent=11 // pred_check_branch
          %401 = sbr.rel (%p399) target = $region44
        $region43: #{tpu_custom_call.1} parent=11 // pred_region
          %s403 = ssub.s32 16, 16
          %404 = vsyncadd [#allocation18], %s403
          %s406 = sshll.u32 [#allocation17], 4
          %s407 = int_to_ptr.vmem [resolvable:$true] %s406
          %409 = dma.hbm_to_vmem [thread:$0]  %s9, 16, %s407, [#allocation18]
        $region44: #{tpu_custom_call.1} parent=11 // pred_fallthru
          _
        // Predicated region
        $region45: #{tpu_custom_call.1} parent=11 // pred_check
          %p410 = pneg %p271
        $region46: #{tpu_custom_call.1} parent=11 // pred_check_branch
          %412 = sbr.rel (%p410) target = $region48
        $region47: #{tpu_custom_call.1} parent=11 // pred_region
          %s414 = ssub.s32 1024, 1024
          %415 = vsyncadd [#allocation18], %s414
          %s416 = sshll.u32 [#allocation19], 4
          %s417 = int_to_ptr.vmem [resolvable:$true] %s416
          %422 = dma.hbm_to_vmem [thread:$0]  %s10, 1024, %s417, [#allocation18], 128, 128, 8
        $region48: #{tpu_custom_call.1} parent=11 // pred_fallthru
          _
      $region12: #{tpu_custom_call.1} parent=5 // pred_fallthru
        _
      %p423 = scmp.lt.s32.totalorder %s30, 2
      // Predicated region
      $region49: #{tpu_custom_call.1} parent=5 // pred_check
        %p424 = pneg %p423
      $region50: #{tpu_custom_call.1} parent=5 // pred_check_branch
        %426 = sbr.rel (%p424) target = $region52
      $region51: #{tpu_custom_call.1} parent=5 // pred_region
        // Predicated region
        $region53: #{tpu_custom_call.1} parent=51 // pred_check
          %p427 = pneg %p50
        $region54: #{tpu_custom_call.1} parent=51 // pred_check_branch
          %429 = sbr.rel (%p427) target = $region56
        $region55: #{tpu_custom_call.1} parent=51 // pred_region
          %s430 = sand.u32 %s40, 1
          %s431 = scalar_lea.sflag [#allocation3], %s430
          %s432 = sand.u32 %s40, 1
          %s433 = smul.addr %s432, 8
          %s434 = scalar_lea.vmem [#allocation2], %s433
          %s436 = ssub.s32 128, 128
          %437 = vsyncadd %s431, %s436
          %s438 = smul.addr %s30, 128
          %s439 = scalar_lea.hbm %s0, %s438
          %s441 = sshll.u32 %s434, 4
          %s442 = int_to_ptr.vmem [resolvable:$true] %s441
          %444 = dma.hbm_to_vmem [thread:$0]  %s439, 128, %s442, %s431
        $region56: #{tpu_custom_call.1} parent=51 // pred_fallthru
          _
        // Predicated region
        $region57: #{tpu_custom_call.1} parent=51 // pred_check
          %p445 = pneg %p76
        $region58: #{tpu_custom_call.1} parent=51 // pred_check_branch
          %447 = sbr.rel (%p445) target = $region60
        $region59: #{tpu_custom_call.1} parent=51 // pred_region
          %s448 = sand.u32 %s30, 1
          %s449 = scalar_lea.sflag [#allocation6], %s448
          %s450 = sand.u32 %s66, 1
          %s451 = smul.addr %s450, 8
          %s452 = scalar_lea.vmem [#allocation5], %s451
          %s454 = ssub.s32 128, 128
          %455 = vsyncadd %s449, %s454
          %s456 = smul.addr %s30, 128
          %s457 = scalar_lea.hbm %s1, %s456
          %s459 = sshll.u32 %s452, 4
          %s460 = int_to_ptr.vmem [resolvable:$true] %s459
          %462 = dma.hbm_to_vmem [thread:$0]  %s457, 128, %s460, %s449
        $region60: #{tpu_custom_call.1} parent=51 // pred_fallthru
          _
      $region52: #{tpu_custom_call.1} parent=5 // pred_fallthru
        _
      %p463 = scmp.le.s32.totalorder 1, %s30
      %p464 = scmp.lt.s32.totalorder %s30, 3
      %p465 = pnand %p463, %p464
      %p466 = pneg %p465
      // Predicated region
      $region61: #{tpu_custom_call.1} parent=5 // pred_check
        _
      $region62: #{tpu_custom_call.1} parent=5 // pred_check_branch
        %468 = sbr.rel (%p465) target = $region64
      $region63: #{tpu_custom_call.1} parent=5 // pred_region
        %s469 = ssub.s32 %s30, 1
        %s470 = sand.u32 %s43, 1
        %s471 = scalar_lea.sflag [#allocation3], %s470
        %s472 = sand.u32 %s43, 1
        %s473 = smul.addr %s472, 8
        %s474 = scalar_lea.vmem [#allocation2], %s473
        // Predicated region
        $region65: #{tpu_custom_call.1} parent=63 // pred_check
          %p475 = pneg %p56
        $region66: #{tpu_custom_call.1} parent=63 // pred_check_branch
          %477 = sbr.rel (%p475) target = $region68
        $region67: #{tpu_custom_call.1} parent=63 // pred_region
          %478 = dma.done %s471, 128
        $region68: #{tpu_custom_call.1} parent=63 // pred_fallthru
          _
        %s479 = sand.u32 %s35, 1
        %s480 = scalar_lea.sflag [#allocation6], %s479
        %s481 = sand.u32 %s69, 1
        %s482 = smul.addr %s481, 8
        %s483 = scalar_lea.vmem [#allocation5], %s482
        // Predicated region
        $region69: #{tpu_custom_call.1} parent=63 // pred_check
          %p484 = pneg %p82
        $region70: #{tpu_custom_call.1} parent=63 // pred_check_branch
          %486 = sbr.rel (%p484) target = $region72
        $region71: #{tpu_custom_call.1} parent=63 // pred_region
          %487 = dma.done %s480, 128
        $region72: #{tpu_custom_call.1} parent=63 // pred_fallthru
          _
        // Predicated region
        $region73: #{tpu_custom_call.1} parent=63 // pred_check
          %p488 = pneg %p103
        $region74: #{tpu_custom_call.1} parent=63 // pred_check_branch
          %490 = sbr.rel (%p488) target = $region76
        $region75: #{tpu_custom_call.1} parent=63 // pred_region
          %491 = dma.done [#allocation6], 128
        $region76: #{tpu_custom_call.1} parent=63 // pred_fallthru
          _
        // Predicated region
        $region77: #{tpu_custom_call.1} parent=63 // pred_check
          %p492 = pneg %p124
        $region78: #{tpu_custom_call.1} parent=63 // pred_check_branch
          %494 = sbr.rel (%p492) target = $region80
        $region79: #{tpu_custom_call.1} parent=63 // pred_region
          %495 = dma.done [#allocation9], 128
        $region80: #{tpu_custom_call.1} parent=63 // pred_fallthru
          _
        // Predicated region
        $region81: #{tpu_custom_call.1} parent=63 // pred_check
          %p496 = pneg %p145
        $region82: #{tpu_custom_call.1} parent=63 // pred_check_branch
          %498 = sbr.rel (%p496) target = $region84
        $region83: #{tpu_custom_call.1} parent=63 // pred_region
          %499 = dma.done [#allocation9], 256
        $region84: #{tpu_custom_call.1} parent=63 // pred_fallthru
          _
        // Predicated region
        $region85: #{tpu_custom_call.1} parent=63 // pred_check
          %p500 = pneg %p166
        $region86: #{tpu_custom_call.1} parent=63 // pred_check_branch
          %502 = sbr.rel (%p500) target = $region88
        $region87: #{tpu_custom_call.1} parent=63 // pred_region
          %503 = dma.done [#allocation12], 12288
        $region88: #{tpu_custom_call.1} parent=63 // pred_fallthru
          _
        // Predicated region
        $region89: #{tpu_custom_call.1} parent=63 // pred_check
          %p504 = pneg %p187
        $region90: #{tpu_custom_call.1} parent=63 // pred_check_branch
          %506 = sbr.rel (%p504) target = $region92
        $region91: #{tpu_custom_call.1} parent=63 // pred_region
          %507 = dma.done [#allocation12], 384
        $region92: #{tpu_custom_call.1} parent=63 // pred_fallthru
          _
        // Predicated region
        $region93: #{tpu_custom_call.1} parent=63 // pred_check
          %p508 = pneg %p208
        $region94: #{tpu_custom_call.1} parent=63 // pred_check_branch
          %510 = sbr.rel (%p508) target = $region96
        $region95: #{tpu_custom_call.1} parent=63 // pred_region
          %511 = dma.done [#allocation15], 1024
        $region96: #{tpu_custom_call.1} parent=63 // pred_fallthru
          _
        // Predicated region
        $region97: #{tpu_custom_call.1} parent=63 // pred_check
          %p512 = pneg %p229
        $region98: #{tpu_custom_call.1} parent=63 // pred_check_branch
          %514 = sbr.rel (%p512) target = $region100
        $region99: #{tpu_custom_call.1} parent=63 // pred_region
          %515 = dma.done [#allocation15], 512
        $region100: #{tpu_custom_call.1} parent=63 // pred_fallthru
          _
        // Predicated region
        $region101: #{tpu_custom_call.1} parent=63 // pred_check
          %p516 = pneg %p250
        $region102: #{tpu_custom_call.1} parent=63 // pred_check_branch
          %518 = sbr.rel (%p516) target = $region104
        $region103: #{tpu_custom_call.1} parent=63 // pred_region
          %519 = dma.done [#allocation18], 16
        $region104: #{tpu_custom_call.1} parent=63 // pred_fallthru
          _
        // Predicated region
        $region105: #{tpu_custom_call.1} parent=63 // pred_check
          %p520 = pneg %p271
        $region106: #{tpu_custom_call.1} parent=63 // pred_check_branch
          %522 = sbr.rel (%p520) target = $region108
        $region107: #{tpu_custom_call.1} parent=63 // pred_region
          %523 = dma.done [#allocation18], 1024
        $region108: #{tpu_custom_call.1} parent=63 // pred_fallthru
          _
        %s524 = sand.u32 %s43, 1
        %s525 = scalar_lea.sflag [#allocation3], %s524
        %s526 = sand.u32 %s43, 1
        %s527 = smul.addr %s526, 8
        %s528 = scalar_lea.vmem [#allocation2], %s527
        %p529 = pneg %p56
        %p530 = pneg %p53
        %s531 = sand.u32 %s35, 1
        %s532 = scalar_lea.sflag [#allocation6], %s531
        %s533 = sand.u32 %s69, 1
        %s534 = smul.addr %s533, 8
        %s535 = scalar_lea.vmem [#allocation5], %s534
        %p536 = pneg %p82
        %p537 = pneg %p79
        %p538 = pneg %p103
        %p539 = pneg %p100
        %p540 = pneg %p124
        %p541 = pneg %p121
        %p542 = pneg %p145
        %p543 = pneg %p142
        %p544 = pneg %p166
        %p545 = pneg %p163
        %p546 = pneg %p187
        %p547 = pneg %p184
        %p548 = pneg %p208
        %p549 = pneg %p205
        %p550 = pneg %p229
        %p551 = pneg %p226
        %p552 = pneg %p250
        %p553 = pneg %p247
        %p554 = pneg %p271
        %p555 = pneg %p268
        %p556 = pneg %p297
        %p557 = pneg %p294
        %s558 = sand.u32 %s284, 1
        %s559 = scalar_lea.sflag [#allocation4], %s558
        %s560 = sand.u32 %s284, 1
        %s561 = smul.addr %s560, 8
        %s562 = scalar_lea.vmem [#allocation20], %s561
        %v563 = vld [vmem:[%s474] sm:$0xff]
        %v564 = vld [vmem:[%s483] sm:$0xff]
        %v565 = vld [vmem:[#allocation10] sm:$0xff]
        %v566 = vld [vmem:[#allocation10 + $0x8] sm:$0x1]
        %v567 = vld [vmem:[#allocation7] sm:$0xff]
        %v568 = vld [vmem:[#allocation8] sm:$0xff]
        %vm569 = vcmask 261120
        %v570 = vsel %vm569, %v563, 0.0
        %571 = vadd.xlane.f32.xlu0 %v570
        %v572 = vpop.xlane.xlu0 %571
        %v573 = vrcp.pop 32.0
        %v574 = vmul.f32 %v572, %v573
        %v575 = vsub.f32 %v563, %v574
        %v576 = vmul.f32 %v575, %v575
        %v577 = vsel %vm569, %v576, 0.0
        %578 = vadd.xlane.f32.xlu0 %v577
        %v579 = vpop.xlane.xlu0 %578
        %v580 = vmul.f32 %v579, 0.032258064
        %v581 = vrsqrt.pop %v580
        %v582 = vmul.f32 %v580, %v581
        %vm583 = vcmp.eq.f32.partialorder %v580, inf
        %v584 = vsel %vm583, %v580, %v582
        %vm585 = vcmp.eq.f32.partialorder %v580, 0.0
        %v586 = vand.u32 %v580, 2147483648
        %v587 = vsel %vm585, %v586, %v584
        %v588 = vadd.f32 %v587, 1e-06
        %v589 = vrcp.pop %v588
        %v590 = vmul.f32 1.0, %v589
        %v591 = vmul.f32 %v575, %v590
        %v592 = vlaneseq
        %v593 = vshrl.u32 %v592, 7
        %v594 = vsub.s32 0, %v593
        %v595 = vrot.slane %v565, %v594
        %v596 = vmul.f32 %v595, %v591
        %v597 = vlaneseq
        %v598 = vshrl.u32 %v597, 7
        %v599 = vsub.s32 1, %v598
        %v600 = vrot.slane %v565, %v599
        %v601 = vadd.f32 %v596, %v600
        %v602 = vld [vmem:[#allocation11] sm:$0xff]
        %v603 = vld [vmem:[#allocation11 + $0x8] sm:$0xff]
        %v604 = vld [vmem:[#allocation11 + $0x10] sm:$0xff]
        %v605 = vld [vmem:[#allocation11 + $0x18] sm:$0xff]
        %v606 = vld [vmem:[#allocation11 + $0x20] sm:$0xff]
        %v607 = vld [vmem:[#allocation11 + $0x28] sm:$0xff]
        %v608 = vld [vmem:[#allocation11 + $0x30] sm:$0xff]
        %v609 = vld [vmem:[#allocation11 + $0x38] sm:$0xff]
        %v610 = vld [vmem:[#allocation11 + $0x40] sm:$0xff]
        %v611 = vld [vmem:[#allocation11 + $0x48] sm:$0xff]
        %v612 = vld [vmem:[#allocation11 + $0x50] sm:$0xff]
        %v613 = vld [vmem:[#allocation11 + $0x58] sm:$0xff]
        %v614 = vld [vmem:[#allocation11 + $0x60] sm:$0xff]
        %v615 = vld [vmem:[#allocation11 + $0x68] sm:$0xff]
        %v616 = vld [vmem:[#allocation11 + $0x70] sm:$0xff]
        %v617 = vld [vmem:[#allocation11 + $0x78] sm:$0xff]
        %v618 = vld [vmem:[#allocation13] sm:$0x1]
        %v619 = vld [vmem:[#allocation13 + $0x1] sm:$0x1]
        %v620 = vld [vmem:[#allocation13 + $0x2] sm:$0x1]
        %v621 = vld [vmem:[#allocation13 + $0x3] sm:$0x1]
        %v626 = vlaneseq
        %v627 = vshrl.u32 %v626, 7
        %v628 = vsub.s32 0, %v627
        %v629 = vrot.slane %v618, %v628
        %v630 = vlaneseq
        %v631 = vshrl.u32 %v630, 7
        %v632 = vsub.s32 0, %v631
        %v633 = vrot.slane %v619, %v632
        %v634 = vlaneseq
        %v635 = vshrl.u32 %v634, 7
        %v636 = vsub.s32 0, %v635
        %v637 = vrot.slane %v620, %v636
        %v638 = vlaneseq
        %v639 = vshrl.u32 %v638, 7
        %v640 = vsub.s32 0, %v639
        %v641 = vrot.slane %v621, %v640
        %v647 = vsel %vm569, %v601, 0
        %649 = vmatprep.subr.mxu0 0.0
        %650 = vmatpush1.msra.mxu0 %v602
        %651 = vmatprep.subr.mxu0 0.0
        %652 = vmatpush1.msra.mxu0 %v603
        %653 = vmatprep.subr.mxu0 0.0
        %654 = vmatpush1.msra.mxu0 %v604
        %655 = vmatprep.subr.mxu0 0.0
        %656 = vmatpush1.msra.mxu0 %v605
        %657 = vmatprep.subr.mxu0 0.0
        %658 = vmatpush1.msra.mxu0 0.0
        %659 = vmatprep.subr.mxu0 0.0
        %660 = vmatpush1.msra.mxu0 0.0
        %661 = vmatprep.subr.mxu0 0.0
        %662 = vmatpush1.msra.mxu0 0.0
        %663 = vmatprep.subr.mxu0 0.0
        %664 = vmatpush1.msra.mxu0 0.0
        %665 = vmatprep.subr.mxu0 0.0
        %666 = vmatpush1.msra.mxu0 0.0
        %667 = vmatprep.subr.mxu0 0.0
        %668 = vmatpush1.msra.mxu0 0.0
        %669 = vmatprep.subr.mxu0 0.0
        %670 = vmatpush1.msra.mxu0 0.0
        %671 = vmatprep.subr.mxu0 0.0
        %672 = vmatpush1.msra.mxu0 0.0
        %673 = vmatprep.subr.mxu0 0.0
        %674 = vmatpush1.msra.mxu0 0.0
        %675 = vmatprep.subr.mxu0 0.0
        %676 = vmatpush1.msra.mxu0 0.0
        %677 = vmatprep.subr.mxu0 0.0
        %678 = vmatpush1.msra.mxu0 0.0
        %679 = vmatprep.subr.mxu0 0.0
        %680 = vmatpush1.msra.mxu0 0.0
        %681 = vmatprep.subr.mxu0 0.0
        %682 = vmatpush1.msra.mxu0 0.0
        %683 = vmatprep.subr.mxu0 0.0
        %684 = vmatpush1.msra.mxu0 0.0
        %685 = vmatprep.subr.mxu0 0.0
        %686 = vmatpush1.msra.mxu0 0.0
        %687 = vmatprep.subr.mxu0 0.0
        %688 = vmatpush1.msra.mxu0 0.0
        %689 = vmatprep.subr.mxu0 0.0
        %690 = vmatpush1.msra.mxu0 0.0
        %691 = vmatprep.subr.mxu0 0.0
        %692 = vmatpush1.msra.mxu0 0.0
        %693 = vmatprep.subr.mxu0 0.0
        %694 = vmatpush1.msra.mxu0 0.0
        %695 = vmatprep.subr.mxu0 0.0
        %696 = vmatpush1.msra.mxu0 0.0
        %697 = vmatprep.subr.mxu0 0.0
        %698 = vmatpush1.msra.mxu0 0.0
        %699 = vmatprep.subr.mxu0 0.0
        %700 = vmatpush1.msra.mxu0 0.0
        %701 = vmatprep.subr.mxu0 0.0
        %702 = vmatpush1.msra.mxu0 0.0
        %703 = vmatprep.subr.mxu0 0.0
        %704 = vmatpush1.msra.mxu0 0.0
        %705 = vmatprep.subr.mxu0 0.0
        %706 = vmatpush1.msra.mxu0 0.0
        %707 = vmatprep.subr.mxu0 0.0
        %708 = vmatpush1.msra.mxu0 0.0
        %709 = vmatprep.subr.mxu0 0.0
        %710 = vmatpush1.msra.mxu0 0.0
        %711 = vmatprep.subr.mxu0 0.0
        %712 = vmatpush1.msra.mxu0 0.0
        %713 = vmatprep.mubr.f32.mxu0 0.0
        %714 = vmatmul.mubr.f32.gmra.mrb[0].mxu0 %v647
        %v715 = vpop.f32.mrb[0].mxu0
        %v716 = vadd.f32 %v629, %v715
        %v717 = vpop.f32.mrb[0].mxu0
        %718 = vdwg.mxu0
        %719 = vmatprep.subr.mxu0 0.0
        %720 = vmatpush1.msra.mxu0 %v606
        %721 = vmatprep.subr.mxu0 0.0
        %722 = vmatpush1.msra.mxu0 %v607
        %723 = vmatprep.subr.mxu0 0.0
        %724 = vmatpush1.msra.mxu0 %v608
        %725 = vmatprep.subr.mxu0 0.0
        %726 = vmatpush1.msra.mxu0 %v609
        %727 = vmatprep.subr.mxu0 0.0
        %728 = vmatpush1.msra.mxu0 0.0
        %729 = vmatprep.subr.mxu0 0.0
        %730 = vmatpush1.msra.mxu0 0.0
        %731 = vmatprep.subr.mxu0 0.0
        %732 = vmatpush1.msra.mxu0 0.0
        %733 = vmatprep.subr.mxu0 0.0
        %734 = vmatpush1.msra.mxu0 0.0
        %735 = vmatprep.subr.mxu0 0.0
        %736 = vmatpush1.msra.mxu0 0.0
        %737 = vmatprep.subr.mxu0 0.0
        %738 = vmatpush1.msra.mxu0 0.0
        %739 = vmatprep.subr.mxu0 0.0
        %740 = vmatpush1.msra.mxu0 0.0
        %741 = vmatprep.subr.mxu0 0.0
        %742 = vmatpush1.msra.mxu0 0.0
        %743 = vmatprep.subr.mxu0 0.0
        %744 = vmatpush1.msra.mxu0 0.0
        %745 = vmatprep.subr.mxu0 0.0
        %746 = vmatpush1.msra.mxu0 0.0
        %747 = vmatprep.subr.mxu0 0.0
        %748 = vmatpush1.msra.mxu0 0.0
        %749 = vmatprep.subr.mxu0 0.0
        %750 = vmatpush1.msra.mxu0 0.0
        %751 = vmatprep.subr.mxu0 0.0
        %752 = vmatpush1.msra.mxu0 0.0
        %753 = vmatprep.subr.mxu0 0.0
        %754 = vmatpush1.msra.mxu0 0.0
        %755 = vmatprep.subr.mxu0 0.0
        %756 = vmatpush1.msra.mxu0 0.0
        %757 = vmatprep.subr.mxu0 0.0
        %758 = vmatpush1.msra.mxu0 0.0
        %759 = vmatprep.subr.mxu0 0.0
        %760 = vmatpush1.msra.mxu0 0.0
        %761 = vmatprep.subr.mxu0 0.0
        %762 = vmatpush1.msra.mxu0 0.0
        %763 = vmatprep.subr.mxu0 0.0
        %764 = vmatpush1.msra.mxu0 0.0
        %765 = vmatprep.subr.mxu0 0.0
        %766 = vmatpush1.msra.mxu0 0.0
        %767 = vmatprep.subr.mxu0 0.0
        %768 = vmatpush1.msra.mxu0 0.0
        %769 = vmatprep.subr.mxu0 0.0
        %770 = vmatpush1.msra.mxu0 0.0
        %771 = vmatprep.subr.mxu0 0.0
        %772 = vmatpush1.msra.mxu0 0.0
        %773 = vmatprep.subr.mxu0 0.0
        %774 = vmatpush1.msra.mxu0 0.0
        %775 = vmatprep.subr.mxu0 0.0
        %776 = vmatpush1.msra.mxu0 0.0
        %777 = vmatprep.subr.mxu0 0.0
        %778 = vmatpush1.msra.mxu0 0.0
        %779 = vmatprep.subr.mxu0 0.0
        %780 = vmatpush1.msra.mxu0 0.0
        %781 = vmatprep.subr.mxu0 0.0
        %782 = vmatpush1.msra.mxu0 0.0
        %783 = vmatprep.mubr.f32.mxu0 0.0
        %784 = vmatmul.mubr.f32.gmra.mrb[0].mxu0 %v647
        %v785 = vpop.f32.mrb[0].mxu0
        %v786 = vadd.f32 %v633, %v785
        %v787 = vpop.f32.mrb[0].mxu0
        %788 = vdwg.mxu0
        %789 = vmatprep.subr.mxu0 0.0
        %790 = vmatpush1.msra.mxu0 %v610
        %791 = vmatprep.subr.mxu0 0.0
        %792 = vmatpush1.msra.mxu0 %v611
        %793 = vmatprep.subr.mxu0 0.0
        %794 = vmatpush1.msra.mxu0 %v612
        %795 = vmatprep.subr.mxu0 0.0
        %796 = vmatpush1.msra.mxu0 %v613
        %797 = vmatprep.subr.mxu0 0.0
        %798 = vmatpush1.msra.mxu0 0.0
        %799 = vmatprep.subr.mxu0 0.0
        %800 = vmatpush1.msra.mxu0 0.0
        %801 = vmatprep.subr.mxu0 0.0
        %802 = vmatpush1.msra.mxu0 0.0
        %803 = vmatprep.subr.mxu0 0.0
        %804 = vmatpush1.msra.mxu0 0.0
        %805 = vmatprep.subr.mxu0 0.0
        %806 = vmatpush1.msra.mxu0 0.0
        %807 = vmatprep.subr.mxu0 0.0
        %808 = vmatpush1.msra.mxu0 0.0
        %809 = vmatprep.subr.mxu0 0.0
        %810 = vmatpush1.msra.mxu0 0.0
        %811 = vmatprep.subr.mxu0 0.0
        %812 = vmatpush1.msra.mxu0 0.0
        %813 = vmatprep.subr.mxu0 0.0
        %814 = vmatpush1.msra.mxu0 0.0
        %815 = vmatprep.subr.mxu0 0.0
        %816 = vmatpush1.msra.mxu0 0.0
        %817 = vmatprep.subr.mxu0 0.0
        %818 = vmatpush1.msra.mxu0 0.0
        %819 = vmatprep.subr.mxu0 0.0
        %820 = vmatpush1.msra.mxu0 0.0
        %821 = vmatprep.subr.mxu0 0.0
        %822 = vmatpush1.msra.mxu0 0.0
        %823 = vmatprep.subr.mxu0 0.0
        %824 = vmatpush1.msra.mxu0 0.0
        %825 = vmatprep.subr.mxu0 0.0
        %826 = vmatpush1.msra.mxu0 0.0
        %827 = vmatprep.subr.mxu0 0.0
        %828 = vmatpush1.msra.mxu0 0.0
        %829 = vmatprep.subr.mxu0 0.0
        %830 = vmatpush1.msra.mxu0 0.0
        %831 = vmatprep.subr.mxu0 0.0
        %832 = vmatpush1.msra.mxu0 0.0
        %833 = vmatprep.subr.mxu0 0.0
        %834 = vmatpush1.msra.mxu0 0.0
        %835 = vmatprep.subr.mxu0 0.0
        %836 = vmatpush1.msra.mxu0 0.0
        %837 = vmatprep.subr.mxu0 0.0
        %838 = vmatpush1.msra.mxu0 0.0
        %839 = vmatprep.subr.mxu0 0.0
        %840 = vmatpush1.msra.mxu0 0.0
        %841 = vmatprep.subr.mxu0 0.0
        %842 = vmatpush1.msra.mxu0 0.0
        %843 = vmatprep.subr.mxu0 0.0
        %844 = vmatpush1.msra.mxu0 0.0
        %845 = vmatprep.subr.mxu0 0.0
        %846 = vmatpush1.msra.mxu0 0.0
        %847 = vmatprep.subr.mxu0 0.0
        %848 = vmatpush1.msra.mxu0 0.0
        %849 = vmatprep.subr.mxu0 0.0
        %850 = vmatpush1.msra.mxu0 0.0
        %851 = vmatprep.subr.mxu0 0.0
        %852 = vmatpush1.msra.mxu0 0.0
        %853 = vmatprep.mubr.f32.mxu0 0.0
        %854 = vmatmul.mubr.f32.gmra.mrb[0].mxu0 %v647
        %v855 = vpop.f32.mrb[0].mxu0
        %v856 = vadd.f32 %v637, %v855
        %v857 = vpop.f32.mrb[0].mxu0
        %858 = vdwg.mxu0
        %859 = vmatprep.subr.mxu0 0.0
        %860 = vmatpush1.msra.mxu0 %v614
        %861 = vmatprep.subr.mxu0 0.0
        %862 = vmatpush1.msra.mxu0 %v615
        %863 = vmatprep.subr.mxu0 0.0
        %864 = vmatpush1.msra.mxu0 %v616
        %865 = vmatprep.subr.mxu0 0.0
        %866 = vmatpush1.msra.mxu0 %v617
        %867 = vmatprep.subr.mxu0 0.0
        %868 = vmatpush1.msra.mxu0 0.0
        %869 = vmatprep.subr.mxu0 0.0
        %870 = vmatpush1.msra.mxu0 0.0
        %871 = vmatprep.subr.mxu0 0.0
        %872 = vmatpush1.msra.mxu0 0.0
        %873 = vmatprep.subr.mxu0 0.0
        %874 = vmatpush1.msra.mxu0 0.0
        %875 = vmatprep.subr.mxu0 0.0
        %876 = vmatpush1.msra.mxu0 0.0
        %877 = vmatprep.subr.mxu0 0.0
        %878 = vmatpush1.msra.mxu0 0.0
        %879 = vmatprep.subr.mxu0 0.0
        %880 = vmatpush1.msra.mxu0 0.0
        %881 = vmatprep.subr.mxu0 0.0
        %882 = vmatpush1.msra.mxu0 0.0
        %883 = vmatprep.subr.mxu0 0.0
        %884 = vmatpush1.msra.mxu0 0.0
        %885 = vmatprep.subr.mxu0 0.0
        %886 = vmatpush1.msra.mxu0 0.0
        %887 = vmatprep.subr.mxu0 0.0
        %888 = vmatpush1.msra.mxu0 0.0
        %889 = vmatprep.subr.mxu0 0.0
        %890 = vmatpush1.msra.mxu0 0.0
        %891 = vmatprep.subr.mxu0 0.0
        %892 = vmatpush1.msra.mxu0 0.0
        %893 = vmatprep.subr.mxu0 0.0
        %894 = vmatpush1.msra.mxu0 0.0
        %895 = vmatprep.subr.mxu0 0.0
        %896 = vmatpush1.msra.mxu0 0.0
        %897 = vmatprep.subr.mxu0 0.0
        %898 = vmatpush1.msra.mxu0 0.0
        %899 = vmatprep.subr.mxu0 0.0
        %900 = vmatpush1.msra.mxu0 0.0
        %901 = vmatprep.subr.mxu0 0.0
        %902 = vmatpush1.msra.mxu0 0.0
        %903 = vmatprep.subr.mxu0 0.0
        %904 = vmatpush1.msra.mxu0 0.0
        %905 = vmatprep.subr.mxu0 0.0
        %906 = vmatpush1.msra.mxu0 0.0
        %907 = vmatprep.subr.mxu0 0.0
        %908 = vmatpush1.msra.mxu0 0.0
        %909 = vmatprep.subr.mxu0 0.0
        %910 = vmatpush1.msra.mxu0 0.0
        %911 = vmatprep.subr.mxu0 0.0
        %912 = vmatpush1.msra.mxu0 0.0
        %913 = vmatprep.subr.mxu0 0.0
        %914 = vmatpush1.msra.mxu0 0.0
        %915 = vmatprep.subr.mxu0 0.0
        %916 = vmatpush1.msra.mxu0 0.0
        %917 = vmatprep.subr.mxu0 0.0
        %918 = vmatpush1.msra.mxu0 0.0
        %919 = vmatprep.subr.mxu0 0.0
        %920 = vmatpush1.msra.mxu0 0.0
        %921 = vmatprep.subr.mxu0 0.0
        %922 = vmatpush1.msra.mxu0 0.0
        %923 = vmatprep.mubr.f32.mxu0 0.0
        %924 = vmatmul.mubr.f32.gmra.mrb[0].mxu0 %v647
        %v925 = vpop.f32.mrb[0].mxu0
        %v926 = vadd.f32 %v641, %v925
        %v927 = vpop.f32.mrb[0].mxu0
        %928 = vdwg.mxu0
        %s929 = scalar_lea.vmem [#allocation11], 128
        %v930 = vld [vmem:[%s929] sm:$0xff]
        %v931 = vld [vmem:[%s929 + $0x8] sm:$0xff]
        %v932 = vld [vmem:[%s929 + $0x10] sm:$0xff]
        %v933 = vld [vmem:[%s929 + $0x18] sm:$0xff]
        %v934 = vld [vmem:[%s929 + $0x20] sm:$0xff]
        %v935 = vld [vmem:[%s929 + $0x28] sm:$0xff]
        %v936 = vld [vmem:[%s929 + $0x30] sm:$0xff]
        %v937 = vld [vmem:[%s929 + $0x38] sm:$0xff]
        %v938 = vld [vmem:[%s929 + $0x40] sm:$0xff]
        %v939 = vld [vmem:[%s929 + $0x48] sm:$0xff]
        %v940 = vld [vmem:[%s929 + $0x50] sm:$0xff]
        %v941 = vld [vmem:[%s929 + $0x58] sm:$0xff]
        %v942 = vld [vmem:[%s929 + $0x60] sm:$0xff]
        %v943 = vld [vmem:[%s929 + $0x68] sm:$0xff]
        %v944 = vld [vmem:[%s929 + $0x70] sm:$0xff]
        %v945 = vld [vmem:[%s929 + $0x78] sm:$0xff]
        %s946 = scalar_lea.vmem [#allocation13], 4
        %v947 = vld [vmem:[%s946] sm:$0x1]
        %v948 = vld [vmem:[%s946 + $0x1] sm:$0x1]
        %v949 = vld [vmem:[%s946 + $0x2] sm:$0x1]
        %v950 = vld [vmem:[%s946 + $0x3] sm:$0x1]
        %v955 = vlaneseq
        %v956 = vshrl.u32 %v955, 7
        %v957 = vsub.s32 0, %v956
        %v958 = vrot.slane %v947, %v957
        %v959 = vlaneseq
        %v960 = vshrl.u32 %v959, 7
        %v961 = vsub.s32 0, %v960
        %v962 = vrot.slane %v948, %v961
        %v963 = vlaneseq
        %v964 = vshrl.u32 %v963, 7
        %v965 = vsub.s32 0, %v964
        %v966 = vrot.slane %v949, %v965
        %v967 = vlaneseq
        %v968 = vshrl.u32 %v967, 7
        %v969 = vsub.s32 0, %v968
        %v970 = vrot.slane %v950, %v969
        %975 = vmatprep.subr.mxu0 0.0
        %976 = vmatpush1.msra.mxu0 %v930
        %977 = vmatprep.subr.mxu0 0.0
        %978 = vmatpush1.msra.mxu0 %v931
        %979 = vmatprep.subr.mxu0 0.0
        %980 = vmatpush1.msra.mxu0 %v932
        %981 = vmatprep.subr.mxu0 0.0
        %982 = vmatpush1.msra.mxu0 %v933
        %983 = vmatprep.subr.mxu0 0.0
        %984 = vmatpush1.msra.mxu0 0.0
        %985 = vmatprep.subr.mxu0 0.0
        %986 = vmatpush1.msra.mxu0 0.0
        %987 = vmatprep.subr.mxu0 0.0
        %988 = vmatpush1.msra.mxu0 0.0
        %989 = vmatprep.subr.mxu0 0.0
        %990 = vmatpush1.msra.mxu0 0.0
        %991 = vmatprep.subr.mxu0 0.0
        %992 = vmatpush1.msra.mxu0 0.0
        %993 = vmatprep.subr.mxu0 0.0
        %994 = vmatpush1.msra.mxu0 0.0
        %995 = vmatprep.subr.mxu0 0.0
        %996 = vmatpush1.msra.mxu0 0.0
        %997 = vmatprep.subr.mxu0 0.0
        %998 = vmatpush1.msra.mxu0 0.0
        %999 = vmatprep.subr.mxu0 0.0
        %1000 = vmatpush1.msra.mxu0 0.0
        %1001 = vmatprep.subr.mxu0 0.0
        %1002 = vmatpush1.msra.mxu0 0.0
        %1003 = vmatprep.subr.mxu0 0.0
        %1004 = vmatpush1.msra.mxu0 0.0
        %1005 = vmatprep.subr.mxu0 0.0
        %1006 = vmatpush1.msra.mxu0 0.0
        %1007 = vmatprep.subr.mxu0 0.0
        %1008 = vmatpush1.msra.mxu0 0.0
        %1009 = vmatprep.subr.mxu0 0.0
        %1010 = vmatpush1.msra.mxu0 0.0
        %1011 = vmatprep.subr.mxu0 0.0
        %1012 = vmatpush1.msra.mxu0 0.0
        %1013 = vmatprep.subr.mxu0 0.0
        %1014 = vmatpush1.msra.mxu0 0.0
        %1015 = vmatprep.subr.mxu0 0.0
        %1016 = vmatpush1.msra.mxu0 0.0
        %1017 = vmatprep.subr.mxu0 0.0
        %1018 = vmatpush1.msra.mxu0 0.0
        %1019 = vmatprep.subr.mxu0 0.0
        %1020 = vmatpush1.msra.mxu0 0.0
        %1021 = vmatprep.subr.mxu0 0.0
        %1022 = vmatpush1.msra.mxu0 0.0
        %1023 = vmatprep.subr.mxu0 0.0
        %1024 = vmatpush1.msra.mxu0 0.0
        %1025 = vmatprep.subr.mxu0 0.0
        %1026 = vmatpush1.msra.mxu0 0.0
        %1027 = vmatprep.subr.mxu0 0.0
        %1028 = vmatpush1.msra.mxu0 0.0
        %1029 = vmatprep.subr.mxu0 0.0
        %1030 = vmatpush1.msra.mxu0 0.0
        %1031 = vmatprep.subr.mxu0 0.0
        %1032 = vmatpush1.msra.mxu0 0.0
        %1033 = vmatprep.subr.mxu0 0.0
        %1034 = vmatpush1.msra.mxu0 0.0
        %1035 = vmatprep.subr.mxu0 0.0
        %1036 = vmatpush1.msra.mxu0 0.0
        %1037 = vmatprep.subr.mxu0 0.0
        %1038 = vmatpush1.msra.mxu0 0.0
        %1039 = vmatprep.mubr.f32.mxu0 0.0
        %1040 = vmatmul.mubr.f32.gmra.mrb[0].mxu0 %v647
        %v1041 = vpop.f32.mrb[0].mxu0
        %v1042 = vadd.f32 %v958, %v1041
        %v1043 = vpop.f32.mrb[0].mxu0
        %1044 = vdwg.mxu0
        %1045 = vmatprep.subr.mxu0 0.0
        %1046 = vmatpush1.msra.mxu0 %v934
        %1047 = vmatprep.subr.mxu0 0.0
        %1048 = vmatpush1.msra.mxu0 %v935
        %1049 = vmatprep.subr.mxu0 0.0
        %1050 = vmatpush1.msra.mxu0 %v936
        %1051 = vmatprep.subr.mxu0 0.0
        %1052 = vmatpush1.msra.mxu0 %v937
        %1053 = vmatprep.subr.mxu0 0.0
        %1054 = vmatpush1.msra.mxu0 0.0
        %1055 = vmatprep.subr.mxu0 0.0
        %1056 = vmatpush1.msra.mxu0 0.0
        %1057 = vmatprep.subr.mxu0 0.0
        %1058 = vmatpush1.msra.mxu0 0.0
        %1059 = vmatprep.subr.mxu0 0.0
        %1060 = vmatpush1.msra.mxu0 0.0
        %1061 = vmatprep.subr.mxu0 0.0
        %1062 = vmatpush1.msra.mxu0 0.0
        %1063 = vmatprep.subr.mxu0 0.0
        %1064 = vmatpush1.msra.mxu0 0.0
        %1065 = vmatprep.subr.mxu0 0.0
        %1066 = vmatpush1.msra.mxu0 0.0
        %1067 = vmatprep.subr.mxu0 0.0
        %1068 = vmatpush1.msra.mxu0 0.0
        %1069 = vmatprep.subr.mxu0 0.0
        %1070 = vmatpush1.msra.mxu0 0.0
        %1071 = vmatprep.subr.mxu0 0.0
        %1072 = vmatpush1.msra.mxu0 0.0
        %1073 = vmatprep.subr.mxu0 0.0
        %1074 = vmatpush1.msra.mxu0 0.0
        %1075 = vmatprep.subr.mxu0 0.0
        %1076 = vmatpush1.msra.mxu0 0.0
        %1077 = vmatprep.subr.mxu0 0.0
        %1078 = vmatpush1.msra.mxu0 0.0
        %1079 = vmatprep.subr.mxu0 0.0
        %1080 = vmatpush1.msra.mxu0 0.0
        %1081 = vmatprep.subr.mxu0 0.0
        %1082 = vmatpush1.msra.mxu0 0.0
        %1083 = vmatprep.subr.mxu0 0.0
        %1084 = vmatpush1.msra.mxu0 0.0
        %1085 = vmatprep.subr.mxu0 0.0
        %1086 = vmatpush1.msra.mxu0 0.0
        %1087 = vmatprep.subr.mxu0 0.0
        %1088 = vmatpush1.msra.mxu0 0.0
        %1089 = vmatprep.subr.mxu0 0.0
        %1090 = vmatpush1.msra.mxu0 0.0
        %1091 = vmatprep.subr.mxu0 0.0
        %1092 = vmatpush1.msra.mxu0 0.0
        %1093 = vmatprep.subr.mxu0 0.0
        %1094 = vmatpush1.msra.mxu0 0.0
        %1095 = vmatprep.subr.mxu0 0.0
        %1096 = vmatpush1.msra.mxu0 0.0
        %1097 = vmatprep.subr.mxu0 0.0
        %1098 = vmatpush1.msra.mxu0 0.0
        %1099 = vmatprep.subr.mxu0 0.0
        %1100 = vmatpush1.msra.mxu0 0.0
        %1101 = vmatprep.subr.mxu0 0.0
        %1102 = vmatpush1.msra.mxu0 0.0
        %1103 = vmatprep.subr.mxu0 0.0
        %1104 = vmatpush1.msra.mxu0 0.0
        %1105 = vmatprep.subr.mxu0 0.0
        %1106 = vmatpush1.msra.mxu0 0.0
        %1107 = vmatprep.subr.mxu0 0.0
        %1108 = vmatpush1.msra.mxu0 0.0
        %1109 = vmatprep.mubr.f32.mxu0 0.0
        %1110 = vmatmul.mubr.f32.gmra.mrb[0].mxu0 %v647
        %v1111 = vpop.f32.mrb[0].mxu0
        %v1112 = vadd.f32 %v962, %v1111
        %v1113 = vpop.f32.mrb[0].mxu0
        %1114 = vdwg.mxu0
        %1115 = vmatprep.subr.mxu0 0.0
        %1116 = vmatpush1.msra.mxu0 %v938
        %1117 = vmatprep.subr.mxu0 0.0
        %1118 = vmatpush1.msra.mxu0 %v939
        %1119 = vmatprep.subr.mxu0 0.0
        %1120 = vmatpush1.msra.mxu0 %v940
        %1121 = vmatprep.subr.mxu0 0.0
        %1122 = vmatpush1.msra.mxu0 %v941
        %1123 = vmatprep.subr.mxu0 0.0
        %1124 = vmatpush1.msra.mxu0 0.0
        %1125 = vmatprep.subr.mxu0 0.0
        %1126 = vmatpush1.msra.mxu0 0.0
        %1127 = vmatprep.subr.mxu0 0.0
        %1128 = vmatpush1.msra.mxu0 0.0
        %1129 = vmatprep.subr.mxu0 0.0
        %1130 = vmatpush1.msra.mxu0 0.0
        %1131 = vmatprep.subr.mxu0 0.0
        %1132 = vmatpush1.msra.mxu0 0.0
        %1133 = vmatprep.subr.mxu0 0.0
        %1134 = vmatpush1.msra.mxu0 0.0
        %1135 = vmatprep.subr.mxu0 0.0
        %1136 = vmatpush1.msra.mxu0 0.0
        %1137 = vmatprep.subr.mxu0 0.0
        %1138 = vmatpush1.msra.mxu0 0.0
        %1139 = vmatprep.subr.mxu0 0.0
        %1140 = vmatpush1.msra.mxu0 0.0
        %1141 = vmatprep.subr.mxu0 0.0
        %1142 = vmatpush1.msra.mxu0 0.0
        %1143 = vmatprep.subr.mxu0 0.0
        %1144 = vmatpush1.msra.mxu0 0.0
        %1145 = vmatprep.subr.mxu0 0.0
        %1146 = vmatpush1.msra.mxu0 0.0
        %1147 = vmatprep.subr.mxu0 0.0
        %1148 = vmatpush1.msra.mxu0 0.0
        %1149 = vmatprep.subr.mxu0 0.0
        %1150 = vmatpush1.msra.mxu0 0.0
        %1151 = vmatprep.subr.mxu0 0.0
        %1152 = vmatpush1.msra.mxu0 0.0
        %1153 = vmatprep.subr.mxu0 0.0
        %1154 = vmatpush1.msra.mxu0 0.0
        %1155 = vmatprep.subr.mxu0 0.0
        %1156 = vmatpush1.msra.mxu0 0.0
        %1157 = vmatprep.subr.mxu0 0.0
        %1158 = vmatpush1.msra.mxu0 0.0
        %1159 = vmatprep.subr.mxu0 0.0
        %1160 = vmatpush1.msra.mxu0 0.0
        %1161 = vmatprep.subr.mxu0 0.0
        %1162 = vmatpush1.msra.mxu0 0.0
        %1163 = vmatprep.subr.mxu0 0.0
        %1164 = vmatpush1.msra.mxu0 0.0
        %1165 = vmatprep.subr.mxu0 0.0
        %1166 = vmatpush1.msra.mxu0 0.0
        %1167 = vmatprep.subr.mxu0 0.0
        %1168 = vmatpush1.msra.mxu0 0.0
        %1169 = vmatprep.subr.mxu0 0.0
        %1170 = vmatpush1.msra.mxu0 0.0
        %1171 = vmatprep.subr.mxu0 0.0
        %1172 = vmatpush1.msra.mxu0 0.0
        %1173 = vmatprep.subr.mxu0 0.0
        %1174 = vmatpush1.msra.mxu0 0.0
        %1175 = vmatprep.subr.mxu0 0.0
        %1176 = vmatpush1.msra.mxu0 0.0
        %1177 = vmatprep.subr.mxu0 0.0
        %1178 = vmatpush1.msra.mxu0 0.0
        %1179 = vmatprep.mubr.f32.mxu0 0.0
        %1180 = vmatmul.mubr.f32.gmra.mrb[0].mxu0 %v647
        %v1181 = vpop.f32.mrb[0].mxu0
        %v1182 = vadd.f32 %v966, %v1181
        %v1183 = vpop.f32.mrb[0].mxu0
        %1184 = vdwg.mxu0
        %1185 = vmatprep.subr.mxu0 0.0
        %1186 = vmatpush1.msra.mxu0 %v942
        %1187 = vmatprep.subr.mxu0 0.0
        %1188 = vmatpush1.msra.mxu0 %v943
        %1189 = vmatprep.subr.mxu0 0.0
        %1190 = vmatpush1.msra.mxu0 %v944
        %1191 = vmatprep.subr.mxu0 0.0
        %1192 = vmatpush1.msra.mxu0 %v945
        %1193 = vmatprep.subr.mxu0 0.0
        %1194 = vmatpush1.msra.mxu0 0.0
        %1195 = vmatprep.subr.mxu0 0.0
        %1196 = vmatpush1.msra.mxu0 0.0
        %1197 = vmatprep.subr.mxu0 0.0
        %1198 = vmatpush1.msra.mxu0 0.0
        %1199 = vmatprep.subr.mxu0 0.0
        %1200 = vmatpush1.msra.mxu0 0.0
        %1201 = vmatprep.subr.mxu0 0.0
        %1202 = vmatpush1.msra.mxu0 0.0
        %1203 = vmatprep.subr.mxu0 0.0
        %1204 = vmatpush1.msra.mxu0 0.0
        %1205 = vmatprep.subr.mxu0 0.0
        %1206 = vmatpush1.msra.mxu0 0.0
        %1207 = vmatprep.subr.mxu0 0.0
        %1208 = vmatpush1.msra.mxu0 0.0
        %1209 = vmatprep.subr.mxu0 0.0
        %1210 = vmatpush1.msra.mxu0 0.0
        %1211 = vmatprep.subr.mxu0 0.0
        %1212 = vmatpush1.msra.mxu0 0.0
        %1213 = vmatprep.subr.mxu0 0.0
        %1214 = vmatpush1.msra.mxu0 0.0
        %1215 = vmatprep.subr.mxu0 0.0
        %1216 = vmatpush1.msra.mxu0 0.0
        %1217 = vmatprep.subr.mxu0 0.0
        %1218 = vmatpush1.msra.mxu0 0.0
        %1219 = vmatprep.subr.mxu0 0.0
        %1220 = vmatpush1.msra.mxu0 0.0
        %1221 = vmatprep.subr.mxu0 0.0
        %1222 = vmatpush1.msra.mxu0 0.0
        %1223 = vmatprep.subr.mxu0 0.0
        %1224 = vmatpush1.msra.mxu0 0.0
        %1225 = vmatprep.subr.mxu0 0.0
        %1226 = vmatpush1.msra.mxu0 0.0
        %1227 = vmatprep.subr.mxu0 0.0
        %1228 = vmatpush1.msra.mxu0 0.0
        %1229 = vmatprep.subr.mxu0 0.0
        %1230 = vmatpush1.msra.mxu0 0.0
        %1231 = vmatprep.subr.mxu0 0.0
        %1232 = vmatpush1.msra.mxu0 0.0
        %1233 = vmatprep.subr.mxu0 0.0
        %1234 = vmatpush1.msra.mxu0 0.0
        %1235 = vmatprep.subr.mxu0 0.0
        %1236 = vmatpush1.msra.mxu0 0.0
        %1237 = vmatprep.subr.mxu0 0.0
        %1238 = vmatpush1.msra.mxu0 0.0
        %1239 = vmatprep.subr.mxu0 0.0
        %1240 = vmatpush1.msra.mxu0 0.0
        %1241 = vmatprep.subr.mxu0 0.0
        %1242 = vmatpush1.msra.mxu0 0.0
        %1243 = vmatprep.subr.mxu0 0.0
        %1244 = vmatpush1.msra.mxu0 0.0
        %1245 = vmatprep.subr.mxu0 0.0
        %1246 = vmatpush1.msra.mxu0 0.0
        %1247 = vmatprep.subr.mxu0 0.0
        %1248 = vmatpush1.msra.mxu0 0.0
        %1249 = vmatprep.mubr.f32.mxu0 0.0
        %1250 = vmatmul.mubr.f32.gmra.mrb[0].mxu0 %v647
        %v1251 = vpop.f32.mrb[0].mxu0
        %v1252 = vadd.f32 %v970, %v1251
        %v1253 = vpop.f32.mrb[0].mxu0
        %1254 = vdwg.mxu0
        %s1255 = scalar_lea.vmem [#allocation11], 256
        %v1256 = vld [vmem:[%s1255] sm:$0xff]
        %v1257 = vld [vmem:[%s1255 + $0x8] sm:$0xff]
        %v1258 = vld [vmem:[%s1255 + $0x10] sm:$0xff]
        %v1259 = vld [vmem:[%s1255 + $0x18] sm:$0xff]
        %v1260 = vld [vmem:[%s1255 + $0x20] sm:$0xff]
        %v1261 = vld [vmem:[%s1255 + $0x28] sm:$0xff]
        %v1262 = vld [vmem:[%s1255 + $0x30] sm:$0xff]
        %v1263 = vld [vmem:[%s1255 + $0x38] sm:$0xff]
        %v1264 = vld [vmem:[%s1255 + $0x40] sm:$0xff]
        %v1265 = vld [vmem:[%s1255 + $0x48] sm:$0xff]
        %v1266 = vld [vmem:[%s1255 + $0x50] sm:$0xff]
        %v1267 = vld [vmem:[%s1255 + $0x58] sm:$0xff]
        %v1268 = vld [vmem:[%s1255 + $0x60] sm:$0xff]
        %v1269 = vld [vmem:[%s1255 + $0x68] sm:$0xff]
        %v1270 = vld [vmem:[%s1255 + $0x70] sm:$0xff]
        %v1271 = vld [vmem:[%s1255 + $0x78] sm:$0xff]
        %s1272 = scalar_lea.vmem [#allocation13], 8
        %v1273 = vld [vmem:[%s1272] sm:$0x1]
        %v1274 = vld [vmem:[%s1272 + $0x1] sm:$0x1]
        %v1275 = vld [vmem:[%s1272 + $0x2] sm:$0x1]
        %v1276 = vld [vmem:[%s1272 + $0x3] sm:$0x1]
        %v1281 = vlaneseq
        %v1282 = vshrl.u32 %v1281, 7
        %v1283 = vsub.s32 0, %v1282
        %v1284 = vrot.slane %v1273, %v1283
        %v1285 = vlaneseq
        %v1286 = vshrl.u32 %v1285, 7
        %v1287 = vsub.s32 0, %v1286
        %v1288 = vrot.slane %v1274, %v1287
        %v1289 = vlaneseq
        %v1290 = vshrl.u32 %v1289, 7
        %v1291 = vsub.s32 0, %v1290
        %v1292 = vrot.slane %v1275, %v1291
        %v1293 = vlaneseq
        %v1294 = vshrl.u32 %v1293, 7
        %v1295 = vsub.s32 0, %v1294
        %v1296 = vrot.slane %v1276, %v1295
        %1301 = vmatprep.subr.mxu0 0.0
        %1302 = vmatpush1.msra.mxu0 %v1256
        %1303 = vmatprep.subr.mxu0 0.0
        %1304 = vmatpush1.msra.mxu0 %v1257
        %1305 = vmatprep.subr.mxu0 0.0
        %1306 = vmatpush1.msra.mxu0 %v1258
        %1307 = vmatprep.subr.mxu0 0.0
        %1308 = vmatpush1.msra.mxu0 %v1259
        %1309 = vmatprep.subr.mxu0 0.0
        %1310 = vmatpush1.msra.mxu0 0.0
        %1311 = vmatprep.subr.mxu0 0.0
        %1312 = vmatpush1.msra.mxu0 0.0
        %1313 = vmatprep.subr.mxu0 0.0
        %1314 = vmatpush1.msra.mxu0 0.0
        %1315 = vmatprep.subr.mxu0 0.0
        %1316 = vmatpush1.msra.mxu0 0.0
        %1317 = vmatprep.subr.mxu0 0.0
        %1318 = vmatpush1.msra.mxu0 0.0
        %1319 = vmatprep.subr.mxu0 0.0
        %1320 = vmatpush1.msra.mxu0 0.0
        %1321 = vmatprep.subr.mxu0 0.0
        %1322 = vmatpush1.msra.mxu0 0.0
        %1323 = vmatprep.subr.mxu0 0.0
        %1324 = vmatpush1.msra.mxu0 0.0
        %1325 = vmatprep.subr.mxu0 0.0
        %1326 = vmatpush1.msra.mxu0 0.0
        %1327 = vmatprep.subr.mxu0 0.0
        %1328 = vmatpush1.msra.mxu0 0.0
        %1329 = vmatprep.subr.mxu0 0.0
        %1330 = vmatpush1.msra.mxu0 0.0
        %1331 = vmatprep.subr.mxu0 0.0
        %1332 = vmatpush1.msra.mxu0 0.0
        %1333 = vmatprep.subr.mxu0 0.0
        %1334 = vmatpush1.msra.mxu0 0.0
        %1335 = vmatprep.subr.mxu0 0.0
        %1336 = vmatpush1.msra.mxu0 0.0
        %1337 = vmatprep.subr.mxu0 0.0
        %1338 = vmatpush1.msra.mxu0 0.0
        %1339 = vmatprep.subr.mxu0 0.0
        %1340 = vmatpush1.msra.mxu0 0.0
        %1341 = vmatprep.subr.mxu0 0.0
        %1342 = vmatpush1.msra.mxu0 0.0
        %1343 = vmatprep.subr.mxu0 0.0
        %1344 = vmatpush1.msra.mxu0 0.0
        %1345 = vmatprep.subr.mxu0 0.0
        %1346 = vmatpush1.msra.mxu0 0.0
        %1347 = vmatprep.subr.mxu0 0.0
        %1348 = vmatpush1.msra.mxu0 0.0
        %1349 = vmatprep.subr.mxu0 0.0
        %1350 = vmatpush1.msra.mxu0 0.0
        %1351 = vmatprep.subr.mxu0 0.0
        %1352 = vmatpush1.msra.mxu0 0.0
        %1353 = vmatprep.subr.mxu0 0.0
        %1354 = vmatpush1.msra.mxu0 0.0
        %1355 = vmatprep.subr.mxu0 0.0
        %1356 = vmatpush1.msra.mxu0 0.0
        %1357 = vmatprep.subr.mxu0 0.0
        %1358 = vmatpush1.msra.mxu0 0.0
        %1359 = vmatprep.subr.mxu0 0.0
        %1360 = vmatpush1.msra.mxu0 0.0
        %1361 = vmatprep.subr.mxu0 0.0
        %1362 = vmatpush1.msra.mxu0 0.0
        %1363 = vmatprep.subr.mxu0 0.0
        %1364 = vmatpush1.msra.mxu0 0.0
        %1365 = vmatprep.mubr.f32.mxu0 0.0
        %1366 = vmatmul.mubr.f32.gmra.mrb[0].mxu0 %v647
        %v1367 = vpop.f32.mrb[0].mxu0
        %v1368 = vadd.f32 %v1284, %v1367
        %v1369 = vpop.f32.mrb[0].mxu0
        %1370 = vdwg.mxu0
        %1371 = vmatprep.subr.mxu0 0.0
        %1372 = vmatpush1.msra.mxu0 %v1260
        %1373 = vmatprep.subr.mxu0 0.0
        %1374 = vmatpush1.msra.mxu0 %v1261
        %1375 = vmatprep.subr.mxu0 0.0
        %1376 = vmatpush1.msra.mxu0 %v1262
        %1377 = vmatprep.subr.mxu0 0.0
        %1378 = vmatpush1.msra.mxu0 %v1263
        %1379 = vmatprep.subr.mxu0 0.0
        %1380 = vmatpush1.msra.mxu0 0.0
        %1381 = vmatprep.subr.mxu0 0.0
        %1382 = vmatpush1.msra.mxu0 0.0
        %1383 = vmatprep.subr.mxu0 0.0
        %1384 = vmatpush1.msra.mxu0 0.0
        %1385 = vmatprep.subr.mxu0 0.0
        %1386 = vmatpush1.msra.mxu0 0.0
        %1387 = vmatprep.subr.mxu0 0.0
        %1388 = vmatpush1.msra.mxu0 0.0
        %1389 = vmatprep.subr.mxu0 0.0
        %1390 = vmatpush1.msra.mxu0 0.0
        %1391 = vmatprep.subr.mxu0 0.0
        %1392 = vmatpush1.msra.mxu0 0.0
        %1393 = vmatprep.subr.mxu0 0.0
        %1394 = vmatpush1.msra.mxu0 0.0
        %1395 = vmatprep.subr.mxu0 0.0
        %1396 = vmatpush1.msra.mxu0 0.0
        %1397 = vmatprep.subr.mxu0 0.0
        %1398 = vmatpush1.msra.mxu0 0.0
        %1399 = vmatprep.subr.mxu0 0.0
        %1400 = vmatpush1.msra.mxu0 0.0
        %1401 = vmatprep.subr.mxu0 0.0
        %1402 = vmatpush1.msra.mxu0 0.0
        %1403 = vmatprep.subr.mxu0 0.0
        %1404 = vmatpush1.msra.mxu0 0.0
        %1405 = vmatprep.subr.mxu0 0.0
        %1406 = vmatpush1.msra.mxu0 0.0
        %1407 = vmatprep.subr.mxu0 0.0
        %1408 = vmatpush1.msra.mxu0 0.0
        %1409 = vmatprep.subr.mxu0 0.0
        %1410 = vmatpush1.msra.mxu0 0.0
        %1411 = vmatprep.subr.mxu0 0.0
        %1412 = vmatpush1.msra.mxu0 0.0
        %1413 = vmatprep.subr.mxu0 0.0
        %1414 = vmatpush1.msra.mxu0 0.0
        %1415 = vmatprep.subr.mxu0 0.0
        %1416 = vmatpush1.msra.mxu0 0.0
        %1417 = vmatprep.subr.mxu0 0.0
        %1418 = vmatpush1.msra.mxu0 0.0
        %1419 = vmatprep.subr.mxu0 0.0
        %1420 = vmatpush1.msra.mxu0 0.0
        %1421 = vmatprep.subr.mxu0 0.0
        %1422 = vmatpush1.msra.mxu0 0.0
        %1423 = vmatprep.subr.mxu0 0.0
        %1424 = vmatpush1.msra.mxu0 0.0
        %1425 = vmatprep.subr.mxu0 0.0
        %1426 = vmatpush1.msra.mxu0 0.0
        %1427 = vmatprep.subr.mxu0 0.0
        %1428 = vmatpush1.msra.mxu0 0.0
        %1429 = vmatprep.subr.mxu0 0.0
        %1430 = vmatpush1.msra.mxu0 0.0
        %1431 = vmatprep.subr.mxu0 0.0
        %1432 = vmatpush1.msra.mxu0 0.0
        %1433 = vmatprep.subr.mxu0 0.0
        %1434 = vmatpush1.msra.mxu0 0.0
        %1435 = vmatprep.mubr.f32.mxu0 0.0
        %1436 = vmatmul.mubr.f32.gmra.mrb[0].mxu0 %v647
        %v1437 = vpop.f32.mrb[0].mxu0
        %v1438 = vadd.f32 %v1288, %v1437
        %v1439 = vpop.f32.mrb[0].mxu0
        %1440 = vdwg.mxu0
        %1441 = vmatprep.subr.mxu0 0.0
        %1442 = vmatpush1.msra.mxu0 %v1264
        %1443 = vmatprep.subr.mxu0 0.0
        %1444 = vmatpush1.msra.mxu0 %v1265
        %1445 = vmatprep.subr.mxu0 0.0
        %1446 = vmatpush1.msra.mxu0 %v1266
        %1447 = vmatprep.subr.mxu0 0.0
        %1448 = vmatpush1.msra.mxu0 %v1267
        %1449 = vmatprep.subr.mxu0 0.0
        %1450 = vmatpush1.msra.mxu0 0.0
        %1451 = vmatprep.subr.mxu0 0.0
        %1452 = vmatpush1.msra.mxu0 0.0
        %1453 = vmatprep.subr.mxu0 0.0
        %1454 = vmatpush1.msra.mxu0 0.0
        %1455 = vmatprep.subr.mxu0 0.0
        %1456 = vmatpush1.msra.mxu0 0.0
        %1457 = vmatprep.subr.mxu0 0.0
        %1458 = vmatpush1.msra.mxu0 0.0
        %1459 = vmatprep.subr.mxu0 0.0
        %1460 = vmatpush1.msra.mxu0 0.0
        %1461 = vmatprep.subr.mxu0 0.0
        %1462 = vmatpush1.msra.mxu0 0.0
        %1463 = vmatprep.subr.mxu0 0.0
        %1464 = vmatpush1.msra.mxu0 0.0
        %1465 = vmatprep.subr.mxu0 0.0
        %1466 = vmatpush1.msra.mxu0 0.0
        %1467 = vmatprep.subr.mxu0 0.0
        %1468 = vmatpush1.msra.mxu0 0.0
        %1469 = vmatprep.subr.mxu0 0.0
        %1470 = vmatpush1.msra.mxu0 0.0
        %1471 = vmatprep.subr.mxu0 0.0
        %1472 = vmatpush1.msra.mxu0 0.0
        %1473 = vmatprep.subr.mxu0 0.0
        %1474 = vmatpush1.msra.mxu0 0.0
        %1475 = vmatprep.subr.mxu0 0.0
        %1476 = vmatpush1.msra.mxu0 0.0
        %1477 = vmatprep.subr.mxu0 0.0
        %1478 = vmatpush1.msra.mxu0 0.0
        %1479 = vmatprep.subr.mxu0 0.0
        %1480 = vmatpush1.msra.mxu0 0.0
        %1481 = vmatprep.subr.mxu0 0.0
        %1482 = vmatpush1.msra.mxu0 0.0
        %1483 = vmatprep.subr.mxu0 0.0
        %1484 = vmatpush1.msra.mxu0 0.0
        %1485 = vmatprep.subr.mxu0 0.0
        %1486 = vmatpush1.msra.mxu0 0.0
        %1487 = vmatprep.subr.mxu0 0.0
        %1488 = vmatpush1.msra.mxu0 0.0
        %1489 = vmatprep.subr.mxu0 0.0
        %1490 = vmatpush1.msra.mxu0 0.0
        %1491 = vmatprep.subr.mxu0 0.0
        %1492 = vmatpush1.msra.mxu0 0.0
        %1493 = vmatprep.subr.mxu0 0.0
        %1494 = vmatpush1.msra.mxu0 0.0
        %1495 = vmatprep.subr.mxu0 0.0
        %1496 = vmatpush1.msra.mxu0 0.0
        %1497 = vmatprep.subr.mxu0 0.0
        %1498 = vmatpush1.msra.mxu0 0.0
        %1499 = vmatprep.subr.mxu0 0.0
        %1500 = vmatpush1.msra.mxu0 0.0
        %1501 = vmatprep.subr.mxu0 0.0
        %1502 = vmatpush1.msra.mxu0 0.0
        %1503 = vmatprep.subr.mxu0 0.0
        %1504 = vmatpush1.msra.mxu0 0.0
        %1505 = vmatprep.mubr.f32.mxu0 0.0
        %1506 = vmatmul.mubr.f32.gmra.mrb[0].mxu0 %v647
        %v1507 = vpop.f32.mrb[0].mxu0
        %v1508 = vadd.f32 %v1292, %v1507
        %v1509 = vpop.f32.mrb[0].mxu0
        %1510 = vdwg.mxu0
        %1511 = vmatprep.subr.mxu0 0.0
        %1512 = vmatpush1.msra.mxu0 %v1268
        %1513 = vmatprep.subr.mxu0 0.0
        %1514 = vmatpush1.msra.mxu0 %v1269
        %1515 = vmatprep.subr.mxu0 0.0
        %1516 = vmatpush1.msra.mxu0 %v1270
        %1517 = vmatprep.subr.mxu0 0.0
        %1518 = vmatpush1.msra.mxu0 %v1271
        %1519 = vmatprep.subr.mxu0 0.0
        %1520 = vmatpush1.msra.mxu0 0.0
        %1521 = vmatprep.subr.mxu0 0.0
        %1522 = vmatpush1.msra.mxu0 0.0
        %1523 = vmatprep.subr.mxu0 0.0
        %1524 = vmatpush1.msra.mxu0 0.0
        %1525 = vmatprep.subr.mxu0 0.0
        %1526 = vmatpush1.msra.mxu0 0.0
        %1527 = vmatprep.subr.mxu0 0.0
        %1528 = vmatpush1.msra.mxu0 0.0
        %1529 = vmatprep.subr.mxu0 0.0
        %1530 = vmatpush1.msra.mxu0 0.0
        %1531 = vmatprep.subr.mxu0 0.0
        %1532 = vmatpush1.msra.mxu0 0.0
        %1533 = vmatprep.subr.mxu0 0.0
        %1534 = vmatpush1.msra.mxu0 0.0
        %1535 = vmatprep.subr.mxu0 0.0
        %1536 = vmatpush1.msra.mxu0 0.0
        %1537 = vmatprep.subr.mxu0 0.0
        %1538 = vmatpush1.msra.mxu0 0.0
        %1539 = vmatprep.subr.mxu0 0.0
        %1540 = vmatpush1.msra.mxu0 0.0
        %1541 = vmatprep.subr.mxu0 0.0
        %1542 = vmatpush1.msra.mxu0 0.0
        %1543 = vmatprep.subr.mxu0 0.0
        %1544 = vmatpush1.msra.mxu0 0.0
        %1545 = vmatprep.subr.mxu0 0.0
        %1546 = vmatpush1.msra.mxu0 0.0
        %1547 = vmatprep.subr.mxu0 0.0
        %1548 = vmatpush1.msra.mxu0 0.0
        %1549 = vmatprep.subr.mxu0 0.0
        %1550 = vmatpush1.msra.mxu0 0.0
        %1551 = vmatprep.subr.mxu0 0.0
        %1552 = vmatpush1.msra.mxu0 0.0
        %1553 = vmatprep.subr.mxu0 0.0
        %1554 = vmatpush1.msra.mxu0 0.0
        %1555 = vmatprep.subr.mxu0 0.0
        %1556 = vmatpush1.msra.mxu0 0.0
        %1557 = vmatprep.subr.mxu0 0.0
        %1558 = vmatpush1.msra.mxu0 0.0
        %1559 = vmatprep.subr.mxu0 0.0
        %1560 = vmatpush1.msra.mxu0 0.0
        %1561 = vmatprep.subr.mxu0 0.0
        %1562 = vmatpush1.msra.mxu0 0.0
        %1563 = vmatprep.subr.mxu0 0.0
        %1564 = vmatpush1.msra.mxu0 0.0
        %1565 = vmatprep.subr.mxu0 0.0
        %1566 = vmatpush1.msra.mxu0 0.0
        %1567 = vmatprep.subr.mxu0 0.0
        %1568 = vmatpush1.msra.mxu0 0.0
        %1569 = vmatprep.subr.mxu0 0.0
        %1570 = vmatpush1.msra.mxu0 0.0
        %1571 = vmatprep.subr.mxu0 0.0
        %1572 = vmatpush1.msra.mxu0 0.0
        %1573 = vmatprep.subr.mxu0 0.0
        %1574 = vmatpush1.msra.mxu0 0.0
        %1575 = vmatprep.mubr.f32.mxu0 0.0
        %1576 = vmatmul.mubr.f32.gmra.mrb[0].mxu0 %v647
        %v1577 = vpop.f32.mrb[0].mxu0
        %v1578 = vadd.f32 %v1296, %v1577
        %v1579 = vpop.f32.mrb[0].mxu0
        %1580 = vdwg.mxu0
        %vm1581 = vcmask 64512
        %v1583 = vsel %vm1581, %v716, 0
        %v1586 = vsel %vm1581, %v1042, 0
        %1588 = vmatprep.subr.mxu0 0.0
        %1589 = vmatpush1.xpose.msra.mxu0 %v1586
        %1590 = vmatprep.subr.mxu0 0.0
        %1591 = vmatpush1.xpose.msra.mxu0 0.0
        %1592 = vmatprep.subr.mxu0 0.0
        %1593 = vmatpush1.xpose.msra.mxu0 0.0
        %1594 = vmatprep.subr.mxu0 0.0
        %1595 = vmatpush1.xpose.msra.mxu0 0.0
        %1596 = vmatprep.subr.mxu0 0.0
        %1597 = vmatpush1.xpose.msra.mxu0 0.0
        %1598 = vmatprep.subr.mxu0 0.0
        %1599 = vmatpush1.xpose.msra.mxu0 0.0
        %1600 = vmatprep.subr.mxu0 0.0
        %1601 = vmatpush1.xpose.msra.mxu0 0.0
        %1602 = vmatprep.subr.mxu0 0.0
        %1603 = vmatpush1.xpose.msra.mxu0 0.0
        %1604 = vmatprep.subr.mxu0 0.0
        %1605 = vmatpush1.xpose.msra.mxu0 0.0
        %1606 = vmatprep.subr.mxu0 0.0
        %1607 = vmatpush1.xpose.msra.mxu0 0.0
        %1608 = vmatprep.subr.mxu0 0.0
        %1609 = vmatpush1.xpose.msra.mxu0 0.0
        %1610 = vmatprep.subr.mxu0 0.0
        %1611 = vmatpush1.xpose.msra.mxu0 0.0
        %1612 = vmatprep.subr.mxu0 0.0
        %1613 = vmatpush1.xpose.msra.mxu0 0.0
        %1614 = vmatprep.subr.mxu0 0.0
        %1615 = vmatpush1.xpose.msra.mxu0 0.0
        %1616 = vmatprep.subr.mxu0 0.0
        %1617 = vmatpush1.xpose.msra.mxu0 0.0
        %1618 = vmatprep.subr.mxu0 0.0
        %1619 = vmatpush1.xpose.msra.mxu0 0.0
        %1620 = vmatprep.subr.mxu0 0.0
        %1621 = vmatpush1.xpose.msra.mxu0 0.0
        %1622 = vmatprep.subr.mxu0 0.0
        %1623 = vmatpush1.xpose.msra.mxu0 0.0
        %1624 = vmatprep.subr.mxu0 0.0
        %1625 = vmatpush1.xpose.msra.mxu0 0.0
        %1626 = vmatprep.subr.mxu0 0.0
        %1627 = vmatpush1.xpose.msra.mxu0 0.0
        %1628 = vmatprep.subr.mxu0 0.0
        %1629 = vmatpush1.xpose.msra.mxu0 0.0
        %1630 = vmatprep.subr.mxu0 0.0
        %1631 = vmatpush1.xpose.msra.mxu0 0.0
        %1632 = vmatprep.subr.mxu0 0.0
        %1633 = vmatpush1.xpose.msra.mxu0 0.0
        %1634 = vmatprep.subr.mxu0 0.0
        %1635 = vmatpush1.xpose.msra.mxu0 0.0
        %1636 = vmatprep.subr.mxu0 0.0
        %1637 = vmatpush1.xpose.msra.mxu0 0.0
        %1638 = vmatprep.subr.mxu0 0.0
        %1639 = vmatpush1.xpose.msra.mxu0 0.0
        %1640 = vmatprep.subr.mxu0 0.0
        %1641 = vmatpush1.xpose.msra.mxu0 0.0
        %1642 = vmatprep.subr.mxu0 0.0
        %1643 = vmatpush1.xpose.msra.mxu0 0.0
        %1644 = vmatprep.subr.mxu0 0.0
        %1645 = vmatpush1.xpose.msra.mxu0 0.0
        %1646 = vmatprep.subr.mxu0 0.0
        %1647 = vmatpush1.xpose.msra.mxu0 0.0
        %1648 = vmatprep.subr.mxu0 0.0
        %1649 = vmatpush1.xpose.msra.mxu0 0.0
        %1650 = vmatprep.subr.mxu0 0.0
        %1651 = vmatpush1.xpose.msra.mxu0 0.0
        %1652 = vmatprep.mubr.f32.mxu0 0.0
        %1653 = vmatmul.mubr.f32.gmra.mrb[0].mxu0 %v1583
        %v1654 = vpop.f32.mrb[0].mxu0
        %v1655 = vadd.f32 %v567, %v1654
        %v1656 = vpop.f32.mrb[0].mxu0
        %1657 = vdwg.mxu0
        %v1659 = vsel %vm1581, %v786, 0
        %v1662 = vsel %vm1581, %v1112, 0
        %1664 = vmatprep.subr.mxu0 0.0
        %1665 = vmatpush1.xpose.msra.mxu0 %v1662
        %1666 = vmatprep.subr.mxu0 0.0
        %1667 = vmatpush1.xpose.msra.mxu0 0.0
        %1668 = vmatprep.subr.mxu0 0.0
        %1669 = vmatpush1.xpose.msra.mxu0 0.0
        %1670 = vmatprep.subr.mxu0 0.0
        %1671 = vmatpush1.xpose.msra.mxu0 0.0
        %1672 = vmatprep.subr.mxu0 0.0
        %1673 = vmatpush1.xpose.msra.mxu0 0.0
        %1674 = vmatprep.subr.mxu0 0.0
        %1675 = vmatpush1.xpose.msra.mxu0 0.0
        %1676 = vmatprep.subr.mxu0 0.0
        %1677 = vmatpush1.xpose.msra.mxu0 0.0
        %1678 = vmatprep.subr.mxu0 0.0
        %1679 = vmatpush1.xpose.msra.mxu0 0.0
        %1680 = vmatprep.subr.mxu0 0.0
        %1681 = vmatpush1.xpose.msra.mxu0 0.0
        %1682 = vmatprep.subr.mxu0 0.0
        %1683 = vmatpush1.xpose.msra.mxu0 0.0
        %1684 = vmatprep.subr.mxu0 0.0
        %1685 = vmatpush1.xpose.msra.mxu0 0.0
        %1686 = vmatprep.subr.mxu0 0.0
        %1687 = vmatpush1.xpose.msra.mxu0 0.0
        %1688 = vmatprep.subr.mxu0 0.0
        %1689 = vmatpush1.xpose.msra.mxu0 0.0
        %1690 = vmatprep.subr.mxu0 0.0
        %1691 = vmatpush1.xpose.msra.mxu0 0.0
        %1692 = vmatprep.subr.mxu0 0.0
        %1693 = vmatpush1.xpose.msra.mxu0 0.0
        %1694 = vmatprep.subr.mxu0 0.0
        %1695 = vmatpush1.xpose.msra.mxu0 0.0
        %1696 = vmatprep.subr.mxu0 0.0
        %1697 = vmatpush1.xpose.msra.mxu0 0.0
        %1698 = vmatprep.subr.mxu0 0.0
        %1699 = vmatpush1.xpose.msra.mxu0 0.0
        %1700 = vmatprep.subr.mxu0 0.0
        %1701 = vmatpush1.xpose.msra.mxu0 0.0
        %1702 = vmatprep.subr.mxu0 0.0
        %1703 = vmatpush1.xpose.msra.mxu0 0.0
        %1704 = vmatprep.subr.mxu0 0.0
        %1705 = vmatpush1.xpose.msra.mxu0 0.0
        %1706 = vmatprep.subr.mxu0 0.0
        %1707 = vmatpush1.xpose.msra.mxu0 0.0
        %1708 = vmatprep.subr.mxu0 0.0
        %1709 = vmatpush1.xpose.msra.mxu0 0.0
        %1710 = vmatprep.subr.mxu0 0.0
        %1711 = vmatpush1.xpose.msra.mxu0 0.0
        %1712 = vmatprep.subr.mxu0 0.0
        %1713 = vmatpush1.xpose.msra.mxu0 0.0
        %1714 = vmatprep.subr.mxu0 0.0
        %1715 = vmatpush1.xpose.msra.mxu0 0.0
        %1716 = vmatprep.subr.mxu0 0.0
        %1717 = vmatpush1.xpose.msra.mxu0 0.0
        %1718 = vmatprep.subr.mxu0 0.0
        %1719 = vmatpush1.xpose.msra.mxu0 0.0
        %1720 = vmatprep.subr.mxu0 0.0
        %1721 = vmatpush1.xpose.msra.mxu0 0.0
        %1722 = vmatprep.subr.mxu0 0.0
        %1723 = vmatpush1.xpose.msra.mxu0 0.0
        %1724 = vmatprep.subr.mxu0 0.0
        %1725 = vmatpush1.xpose.msra.mxu0 0.0
        %1726 = vmatprep.subr.mxu0 0.0
        %1727 = vmatpush1.xpose.msra.mxu0 0.0
        %1728 = vmatprep.mubr.f32.mxu0 0.0
        %1729 = vmatmul.mubr.f32.gmra.mrb[0].mxu0 %v1659
        %v1730 = vpop.f32.mrb[0].mxu0
        %v1731 = vadd.f32 %v567, %v1730
        %v1732 = vpop.f32.mrb[0].mxu0
        %1733 = vdwg.mxu0
        %v1735 = vsel %vm1581, %v856, 0
        %v1738 = vsel %vm1581, %v1182, 0
        %1740 = vmatprep.subr.mxu0 0.0
        %1741 = vmatpush1.xpose.msra.mxu0 %v1738
        %1742 = vmatprep.subr.mxu0 0.0
        %1743 = vmatpush1.xpose.msra.mxu0 0.0
        %1744 = vmatprep.subr.mxu0 0.0
        %1745 = vmatpush1.xpose.msra.mxu0 0.0
        %1746 = vmatprep.subr.mxu0 0.0
        %1747 = vmatpush1.xpose.msra.mxu0 0.0
        %1748 = vmatprep.subr.mxu0 0.0
        %1749 = vmatpush1.xpose.msra.mxu0 0.0
        %1750 = vmatprep.subr.mxu0 0.0
        %1751 = vmatpush1.xpose.msra.mxu0 0.0
        %1752 = vmatprep.subr.mxu0 0.0
        %1753 = vmatpush1.xpose.msra.mxu0 0.0
        %1754 = vmatprep.subr.mxu0 0.0
        %1755 = vmatpush1.xpose.msra.mxu0 0.0
        %1756 = vmatprep.subr.mxu0 0.0
        %1757 = vmatpush1.xpose.msra.mxu0 0.0
        %1758 = vmatprep.subr.mxu0 0.0
        %1759 = vmatpush1.xpose.msra.mxu0 0.0
        %1760 = vmatprep.subr.mxu0 0.0
        %1761 = vmatpush1.xpose.msra.mxu0 0.0
        %1762 = vmatprep.subr.mxu0 0.0
        %1763 = vmatpush1.xpose.msra.mxu0 0.0
        %1764 = vmatprep.subr.mxu0 0.0
        %1765 = vmatpush1.xpose.msra.mxu0 0.0
        %1766 = vmatprep.subr.mxu0 0.0
        %1767 = vmatpush1.xpose.msra.mxu0 0.0
        %1768 = vmatprep.subr.mxu0 0.0
        %1769 = vmatpush1.xpose.msra.mxu0 0.0
        %1770 = vmatprep.subr.mxu0 0.0
        %1771 = vmatpush1.xpose.msra.mxu0 0.0
        %1772 = vmatprep.subr.mxu0 0.0
        %1773 = vmatpush1.xpose.msra.mxu0 0.0
        %1774 = vmatprep.subr.mxu0 0.0
        %1775 = vmatpush1.xpose.msra.mxu0 0.0
        %1776 = vmatprep.subr.mxu0 0.0
        %1777 = vmatpush1.xpose.msra.mxu0 0.0
        %1778 = vmatprep.subr.mxu0 0.0
        %1779 = vmatpush1.xpose.msra.mxu0 0.0
        %1780 = vmatprep.subr.mxu0 0.0
        %1781 = vmatpush1.xpose.msra.mxu0 0.0
        %1782 = vmatprep.subr.mxu0 0.0
        %1783 = vmatpush1.xpose.msra.mxu0 0.0
        %1784 = vmatprep.subr.mxu0 0.0
        %1785 = vmatpush1.xpose.msra.mxu0 0.0
        %1786 = vmatprep.subr.mxu0 0.0
        %1787 = vmatpush1.xpose.msra.mxu0 0.0
        %1788 = vmatprep.subr.mxu0 0.0
        %1789 = vmatpush1.xpose.msra.mxu0 0.0
        %1790 = vmatprep.subr.mxu0 0.0
        %1791 = vmatpush1.xpose.msra.mxu0 0.0
        %1792 = vmatprep.subr.mxu0 0.0
        %1793 = vmatpush1.xpose.msra.mxu0 0.0
        %1794 = vmatprep.subr.mxu0 0.0
        %1795 = vmatpush1.xpose.msra.mxu0 0.0
        %1796 = vmatprep.subr.mxu0 0.0
        %1797 = vmatpush1.xpose.msra.mxu0 0.0
        %1798 = vmatprep.subr.mxu0 0.0
        %1799 = vmatpush1.xpose.msra.mxu0 0.0
        %1800 = vmatprep.subr.mxu0 0.0
        %1801 = vmatpush1.xpose.msra.mxu0 0.0
        %1802 = vmatprep.subr.mxu0 0.0
        %1803 = vmatpush1.xpose.msra.mxu0 0.0
        %1804 = vmatprep.mubr.f32.mxu0 0.0
        %1805 = vmatmul.mubr.f32.gmra.mrb[0].mxu0 %v1735
        %v1806 = vpop.f32.mrb[0].mxu0
        %v1807 = vadd.f32 %v567, %v1806
        %v1808 = vpop.f32.mrb[0].mxu0
        %1809 = vdwg.mxu0
        %v1811 = vsel %vm1581, %v926, 0
        %v1814 = vsel %vm1581, %v1252, 0
        %1816 = vmatprep.subr.mxu0 0.0
        %1817 = vmatpush1.xpose.msra.mxu0 %v1814
        %1818 = vmatprep.subr.mxu0 0.0
        %1819 = vmatpush1.xpose.msra.mxu0 0.0
        %1820 = vmatprep.subr.mxu0 0.0
        %1821 = vmatpush1.xpose.msra.mxu0 0.0
        %1822 = vmatprep.subr.mxu0 0.0
        %1823 = vmatpush1.xpose.msra.mxu0 0.0
        %1824 = vmatprep.subr.mxu0 0.0
        %1825 = vmatpush1.xpose.msra.mxu0 0.0
        %1826 = vmatprep.subr.mxu0 0.0
        %1827 = vmatpush1.xpose.msra.mxu0 0.0
        %1828 = vmatprep.subr.mxu0 0.0
        %1829 = vmatpush1.xpose.msra.mxu0 0.0
        %1830 = vmatprep.subr.mxu0 0.0
        %1831 = vmatpush1.xpose.msra.mxu0 0.0
        %1832 = vmatprep.subr.mxu0 0.0
        %1833 = vmatpush1.xpose.msra.mxu0 0.0
        %1834 = vmatprep.subr.mxu0 0.0
        %1835 = vmatpush1.xpose.msra.mxu0 0.0
        %1836 = vmatprep.subr.mxu0 0.0
        %1837 = vmatpush1.xpose.msra.mxu0 0.0
        %1838 = vmatprep.subr.mxu0 0.0
        %1839 = vmatpush1.xpose.msra.mxu0 0.0
        %1840 = vmatprep.subr.mxu0 0.0
        %1841 = vmatpush1.xpose.msra.mxu0 0.0
        %1842 = vmatprep.subr.mxu0 0.0
        %1843 = vmatpush1.xpose.msra.mxu0 0.0
        %1844 = vmatprep.subr.mxu0 0.0
        %1845 = vmatpush1.xpose.msra.mxu0 0.0
        %1846 = vmatprep.subr.mxu0 0.0
        %1847 = vmatpush1.xpose.msra.mxu0 0.0
        %1848 = vmatprep.subr.mxu0 0.0
        %1849 = vmatpush1.xpose.msra.mxu0 0.0
        %1850 = vmatprep.subr.mxu0 0.0
        %1851 = vmatpush1.xpose.msra.mxu0 0.0
        %1852 = vmatprep.subr.mxu0 0.0
        %1853 = vmatpush1.xpose.msra.mxu0 0.0
        %1854 = vmatprep.subr.mxu0 0.0
        %1855 = vmatpush1.xpose.msra.mxu0 0.0
        %1856 = vmatprep.subr.mxu0 0.0
        %1857 = vmatpush1.xpose.msra.mxu0 0.0
        %1858 = vmatprep.subr.mxu0 0.0
        %1859 = vmatpush1.xpose.msra.mxu0 0.0
        %1860 = vmatprep.subr.mxu0 0.0
        %1861 = vmatpush1.xpose.msra.mxu0 0.0
        %1862 = vmatprep.subr.mxu0 0.0
        %1863 = vmatpush1.xpose.msra.mxu0 0.0
        %1864 = vmatprep.subr.mxu0 0.0
        %1865 = vmatpush1.xpose.msra.mxu0 0.0
        %1866 = vmatprep.subr.mxu0 0.0
        %1867 = vmatpush1.xpose.msra.mxu0 0.0
        %1868 = vmatprep.subr.mxu0 0.0
        %1869 = vmatpush1.xpose.msra.mxu0 0.0
        %1870 = vmatprep.subr.mxu0 0.0
        %1871 = vmatpush1.xpose.msra.mxu0 0.0
        %1872 = vmatprep.subr.mxu0 0.0
        %1873 = vmatpush1.xpose.msra.mxu0 0.0
        %1874 = vmatprep.subr.mxu0 0.0
        %1875 = vmatpush1.xpose.msra.mxu0 0.0
        %1876 = vmatprep.subr.mxu0 0.0
        %1877 = vmatpush1.xpose.msra.mxu0 0.0
        %1878 = vmatprep.subr.mxu0 0.0
        %1879 = vmatpush1.xpose.msra.mxu0 0.0
        %1880 = vmatprep.mubr.f32.mxu0 0.0
        %1881 = vmatmul.mubr.f32.gmra.mrb[0].mxu0 %v1811
        %v1882 = vpop.f32.mrb[0].mxu0
        %v1883 = vadd.f32 %v567, %v1882
        %v1884 = vpop.f32.mrb[0].mxu0
        %1885 = vdwg.mxu0
        %v1886 = vsel %vm1581, %v1655, -inf
        %1887 = vmax.xlane.f32.xlu0 %v1886
        %v1888 = vpop.xlane.xlu0 %1887
        %v1889 = vsel %vm1581, %v1731, -inf
        %1890 = vmax.xlane.f32.xlu0 %v1889
        %v1891 = vpop.xlane.xlu0 %1890
        %v1892 = vsel %vm1581, %v1807, -inf
        %1893 = vmax.xlane.f32.xlu0 %v1892
        %v1894 = vpop.xlane.xlu0 %1893
        %v1895 = vsel %vm1581, %v1883, -inf
        %1896 = vmax.xlane.f32.xlu0 %v1895
        %v1897 = vpop.xlane.xlu0 %1896
        %v1898 = vsub.f32 %v1655, %v1888
        %v1899 = vsub.f32 %v1731, %v1891
        %v1900 = vsub.f32 %v1807, %v1894
        %v1901 = vsub.f32 %v1883, %v1897
        %v1902 = vmul.f32 %v1898, 1.442695
        %v1903 = vpow.pop %v1902
        %v1904 = vmul.f32 %v1899, 1.442695
        %v1905 = vpow.pop %v1904
        %v1906 = vmul.f32 %v1900, 1.442695
        %v1907 = vpow.pop %v1906
        %v1908 = vmul.f32 %v1901, 1.442695
        %v1909 = vpow.pop %v1908
        %v1910 = vsel %vm1581, %v1903, 0.0
        %1911 = vadd.xlane.f32.xlu0 %v1910
        %v1912 = vpop.xlane.xlu0 %1911
        %v1913 = vsel %vm1581, %v1905, 0.0
        %1914 = vadd.xlane.f32.xlu0 %v1913
        %v1915 = vpop.xlane.xlu0 %1914
        %v1916 = vsel %vm1581, %v1907, 0.0
        %1917 = vadd.xlane.f32.xlu0 %v1916
        %v1918 = vpop.xlane.xlu0 %1917
        %v1919 = vsel %vm1581, %v1909, 0.0
        %1920 = vadd.xlane.f32.xlu0 %v1919
        %v1921 = vpop.xlane.xlu0 %1920
        %v1922 = vrcp.pop %v1912
        %v1923 = vmul.f32 %v1903, %v1922
        %v1924 = vrcp.pop %v1915
        %v1925 = vmul.f32 %v1905, %v1924
        %v1926 = vrcp.pop %v1918
        %v1927 = vmul.f32 %v1907, %v1926
        %v1928 = vrcp.pop %v1921
        %v1929 = vmul.f32 %v1909, %v1928
        %v1931 = vsel %vm1581, %v1923, 0
        %1933 = vmatprep.subr.mxu0 0.0
        %1934 = vmatpush1.msra.mxu0 %v1368
        %1935 = vmatprep.subr.mxu0 0.0
        %1936 = vmatpush1.msra.mxu0 0.0
        %1937 = vmatprep.subr.mxu0 0.0
        %1938 = vmatpush1.msra.mxu0 0.0
        %1939 = vmatprep.subr.mxu0 0.0
        %1940 = vmatpush1.msra.mxu0 0.0
        %1941 = vmatprep.subr.mxu0 0.0
        %1942 = vmatpush1.msra.mxu0 0.0
        %1943 = vmatprep.subr.mxu0 0.0
        %1944 = vmatpush1.msra.mxu0 0.0
        %1945 = vmatprep.subr.mxu0 0.0
        %1946 = vmatpush1.msra.mxu0 0.0
        %1947 = vmatprep.subr.mxu0 0.0
        %1948 = vmatpush1.msra.mxu0 0.0
        %1949 = vmatprep.subr.mxu0 0.0
        %1950 = vmatpush1.msra.mxu0 0.0
        %1951 = vmatprep.subr.mxu0 0.0
        %1952 = vmatpush1.msra.mxu0 0.0
        %1953 = vmatprep.subr.mxu0 0.0
        %1954 = vmatpush1.msra.mxu0 0.0
        %1955 = vmatprep.subr.mxu0 0.0
        %1956 = vmatpush1.msra.mxu0 0.0
        %1957 = vmatprep.subr.mxu0 0.0
        %1958 = vmatpush1.msra.mxu0 0.0
        %1959 = vmatprep.subr.mxu0 0.0
        %1960 = vmatpush1.msra.mxu0 0.0
        %1961 = vmatprep.subr.mxu0 0.0
        %1962 = vmatpush1.msra.mxu0 0.0
        %1963 = vmatprep.subr.mxu0 0.0
        %1964 = vmatpush1.msra.mxu0 0.0
        %1965 = vmatprep.subr.mxu0 0.0
        %1966 = vmatpush1.msra.mxu0 0.0
        %1967 = vmatprep.subr.mxu0 0.0
        %1968 = vmatpush1.msra.mxu0 0.0
        %1969 = vmatprep.subr.mxu0 0.0
        %1970 = vmatpush1.msra.mxu0 0.0
        %1971 = vmatprep.subr.mxu0 0.0
        %1972 = vmatpush1.msra.mxu0 0.0
        %1973 = vmatprep.subr.mxu0 0.0
        %1974 = vmatpush1.msra.mxu0 0.0
        %1975 = vmatprep.subr.mxu0 0.0
        %1976 = vmatpush1.msra.mxu0 0.0
        %1977 = vmatprep.subr.mxu0 0.0
        %1978 = vmatpush1.msra.mxu0 0.0
        %1979 = vmatprep.subr.mxu0 0.0
        %1980 = vmatpush1.msra.mxu0 0.0
        %1981 = vmatprep.subr.mxu0 0.0
        %1982 = vmatpush1.msra.mxu0 0.0
        %1983 = vmatprep.subr.mxu0 0.0
        %1984 = vmatpush1.msra.mxu0 0.0
        %1985 = vmatprep.subr.mxu0 0.0
        %1986 = vmatpush1.msra.mxu0 0.0
        %1987 = vmatprep.subr.mxu0 0.0
        %1988 = vmatpush1.msra.mxu0 0.0
        %1989 = vmatprep.subr.mxu0 0.0
        %1990 = vmatpush1.msra.mxu0 0.0
        %1991 = vmatprep.subr.mxu0 0.0
        %1992 = vmatpush1.msra.mxu0 0.0
        %1993 = vmatprep.subr.mxu0 0.0
        %1994 = vmatpush1.msra.mxu0 0.0
        %1995 = vmatprep.subr.mxu0 0.0
        %1996 = vmatpush1.msra.mxu0 0.0
        %1997 = vmatprep.mubr.f32.mxu0 0.0
        %1998 = vmatmul.mubr.f32.gmra.mrb[0].mxu0 %v1931
        %v1999 = vpop.f32.mrb[0].mxu0
        %v2000 = vadd.f32 0.0, %v1999
        %v2001 = vpop.f32.mrb[0].mxu0
        %2002 = vdwg.mxu0
        %v2004 = vsel %vm1581, %v1925, 0
        %2006 = vmatprep.subr.mxu0 0.0
        %2007 = vmatpush1.msra.mxu0 %v1438
        %2008 = vmatprep.subr.mxu0 0.0
        %2009 = vmatpush1.msra.mxu0 0.0
        %2010 = vmatprep.subr.mxu0 0.0
        %2011 = vmatpush1.msra.mxu0 0.0
        %2012 = vmatprep.subr.mxu0 0.0
        %2013 = vmatpush1.msra.mxu0 0.0
        %2014 = vmatprep.subr.mxu0 0.0
        %2015 = vmatpush1.msra.mxu0 0.0
        %2016 = vmatprep.subr.mxu0 0.0
        %2017 = vmatpush1.msra.mxu0 0.0
        %2018 = vmatprep.subr.mxu0 0.0
        %2019 = vmatpush1.msra.mxu0 0.0
        %2020 = vmatprep.subr.mxu0 0.0
        %2021 = vmatpush1.msra.mxu0 0.0
        %2022 = vmatprep.subr.mxu0 0.0
        %2023 = vmatpush1.msra.mxu0 0.0
        %2024 = vmatprep.subr.mxu0 0.0
        %2025 = vmatpush1.msra.mxu0 0.0
        %2026 = vmatprep.subr.mxu0 0.0
        %2027 = vmatpush1.msra.mxu0 0.0
        %2028 = vmatprep.subr.mxu0 0.0
        %2029 = vmatpush1.msra.mxu0 0.0
        %2030 = vmatprep.subr.mxu0 0.0
        %2031 = vmatpush1.msra.mxu0 0.0
        %2032 = vmatprep.subr.mxu0 0.0
        %2033 = vmatpush1.msra.mxu0 0.0
        %2034 = vmatprep.subr.mxu0 0.0
        %2035 = vmatpush1.msra.mxu0 0.0
        %2036 = vmatprep.subr.mxu0 0.0
        %2037 = vmatpush1.msra.mxu0 0.0
        %2038 = vmatprep.subr.mxu0 0.0
        %2039 = vmatpush1.msra.mxu0 0.0
        %2040 = vmatprep.subr.mxu0 0.0
        %2041 = vmatpush1.msra.mxu0 0.0
        %2042 = vmatprep.subr.mxu0 0.0
        %2043 = vmatpush1.msra.mxu0 0.0
        %2044 = vmatprep.subr.mxu0 0.0
        %2045 = vmatpush1.msra.mxu0 0.0
        %2046 = vmatprep.subr.mxu0 0.0
        %2047 = vmatpush1.msra.mxu0 0.0
        %2048 = vmatprep.subr.mxu0 0.0
        %2049 = vmatpush1.msra.mxu0 0.0
        %2050 = vmatprep.subr.mxu0 0.0
        %2051 = vmatpush1.msra.mxu0 0.0
        %2052 = vmatprep.subr.mxu0 0.0
        %2053 = vmatpush1.msra.mxu0 0.0
        %2054 = vmatprep.subr.mxu0 0.0
        %2055 = vmatpush1.msra.mxu0 0.0
        %2056 = vmatprep.subr.mxu0 0.0
        %2057 = vmatpush1.msra.mxu0 0.0
        %2058 = vmatprep.subr.mxu0 0.0
        %2059 = vmatpush1.msra.mxu0 0.0
        %2060 = vmatprep.subr.mxu0 0.0
        %2061 = vmatpush1.msra.mxu0 0.0
        %2062 = vmatprep.subr.mxu0 0.0
        %2063 = vmatpush1.msra.mxu0 0.0
        %2064 = vmatprep.subr.mxu0 0.0
        %2065 = vmatpush1.msra.mxu0 0.0
        %2066 = vmatprep.subr.mxu0 0.0
        %2067 = vmatpush1.msra.mxu0 0.0
        %2068 = vmatprep.subr.mxu0 0.0
        %2069 = vmatpush1.msra.mxu0 0.0
        %2070 = vmatprep.mubr.f32.mxu0 0.0
        %2071 = vmatmul.mubr.f32.gmra.mrb[0].mxu0 %v2004
        %v2072 = vpop.f32.mrb[0].mxu0
        %v2073 = vadd.f32 0.0, %v2072
        %v2074 = vpop.f32.mrb[0].mxu0
        %2075 = vdwg.mxu0
        %v2077 = vsel %vm1581, %v1927, 0
        %2079 = vmatprep.subr.mxu0 0.0
        %2080 = vmatpush1.msra.mxu0 %v1508
        %2081 = vmatprep.subr.mxu0 0.0
        %2082 = vmatpush1.msra.mxu0 0.0
        %2083 = vmatprep.subr.mxu0 0.0
        %2084 = vmatpush1.msra.mxu0 0.0
        %2085 = vmatprep.subr.mxu0 0.0
        %2086 = vmatpush1.msra.mxu0 0.0
        %2087 = vmatprep.subr.mxu0 0.0
        %2088 = vmatpush1.msra.mxu0 0.0
        %2089 = vmatprep.subr.mxu0 0.0
        %2090 = vmatpush1.msra.mxu0 0.0
        %2091 = vmatprep.subr.mxu0 0.0
        %2092 = vmatpush1.msra.mxu0 0.0
        %2093 = vmatprep.subr.mxu0 0.0
        %2094 = vmatpush1.msra.mxu0 0.0
        %2095 = vmatprep.subr.mxu0 0.0
        %2096 = vmatpush1.msra.mxu0 0.0
        %2097 = vmatprep.subr.mxu0 0.0
        %2098 = vmatpush1.msra.mxu0 0.0
        %2099 = vmatprep.subr.mxu0 0.0
        %2100 = vmatpush1.msra.mxu0 0.0
        %2101 = vmatprep.subr.mxu0 0.0
        %2102 = vmatpush1.msra.mxu0 0.0
        %2103 = vmatprep.subr.mxu0 0.0
        %2104 = vmatpush1.msra.mxu0 0.0
        %2105 = vmatprep.subr.mxu0 0.0
        %2106 = vmatpush1.msra.mxu0 0.0
        %2107 = vmatprep.subr.mxu0 0.0
        %2108 = vmatpush1.msra.mxu0 0.0
        %2109 = vmatprep.subr.mxu0 0.0
        %2110 = vmatpush1.msra.mxu0 0.0
        %2111 = vmatprep.subr.mxu0 0.0
        %2112 = vmatpush1.msra.mxu0 0.0
        %2113 = vmatprep.subr.mxu0 0.0
        %2114 = vmatpush1.msra.mxu0 0.0
        %2115 = vmatprep.subr.mxu0 0.0
        %2116 = vmatpush1.msra.mxu0 0.0
        %2117 = vmatprep.subr.mxu0 0.0
        %2118 = vmatpush1.msra.mxu0 0.0
        %2119 = vmatprep.subr.mxu0 0.0
        %2120 = vmatpush1.msra.mxu0 0.0
        %2121 = vmatprep.subr.mxu0 0.0
        %2122 = vmatpush1.msra.mxu0 0.0
        %2123 = vmatprep.subr.mxu0 0.0
        %2124 = vmatpush1.msra.mxu0 0.0
        %2125 = vmatprep.subr.mxu0 0.0
        %2126 = vmatpush1.msra.mxu0 0.0
        %2127 = vmatprep.subr.mxu0 0.0
        %2128 = vmatpush1.msra.mxu0 0.0
        %2129 = vmatprep.subr.mxu0 0.0
        %2130 = vmatpush1.msra.mxu0 0.0
        %2131 = vmatprep.subr.mxu0 0.0
        %2132 = vmatpush1.msra.mxu0 0.0
        %2133 = vmatprep.subr.mxu0 0.0
        %2134 = vmatpush1.msra.mxu0 0.0
        %2135 = vmatprep.subr.mxu0 0.0
        %2136 = vmatpush1.msra.mxu0 0.0
        %2137 = vmatprep.subr.mxu0 0.0
        %2138 = vmatpush1.msra.mxu0 0.0
        %2139 = vmatprep.subr.mxu0 0.0
        %2140 = vmatpush1.msra.mxu0 0.0
        %2141 = vmatprep.subr.mxu0 0.0
        %2142 = vmatpush1.msra.mxu0 0.0
        %2143 = vmatprep.mubr.f32.mxu0 0.0
        %2144 = vmatmul.mubr.f32.gmra.mrb[0].mxu0 %v2077
        %v2145 = vpop.f32.mrb[0].mxu0
        %v2146 = vadd.f32 0.0, %v2145
        %v2147 = vpop.f32.mrb[0].mxu0
        %2148 = vdwg.mxu0
        %v2150 = vsel %vm1581, %v1929, 0
        %2152 = vmatprep.subr.mxu0 0.0
        %2153 = vmatpush1.msra.mxu0 %v1578
        %2154 = vmatprep.subr.mxu0 0.0
        %2155 = vmatpush1.msra.mxu0 0.0
        %2156 = vmatprep.subr.mxu0 0.0
        %2157 = vmatpush1.msra.mxu0 0.0
        %2158 = vmatprep.subr.mxu0 0.0
        %2159 = vmatpush1.msra.mxu0 0.0
        %2160 = vmatprep.subr.mxu0 0.0
        %2161 = vmatpush1.msra.mxu0 0.0
        %2162 = vmatprep.subr.mxu0 0.0
        %2163 = vmatpush1.msra.mxu0 0.0
        %2164 = vmatprep.subr.mxu0 0.0
        %2165 = vmatpush1.msra.mxu0 0.0
        %2166 = vmatprep.subr.mxu0 0.0
        %2167 = vmatpush1.msra.mxu0 0.0
        %2168 = vmatprep.subr.mxu0 0.0
        %2169 = vmatpush1.msra.mxu0 0.0
        %2170 = vmatprep.subr.mxu0 0.0
        %2171 = vmatpush1.msra.mxu0 0.0
        %2172 = vmatprep.subr.mxu0 0.0
        %2173 = vmatpush1.msra.mxu0 0.0
        %2174 = vmatprep.subr.mxu0 0.0
        %2175 = vmatpush1.msra.mxu0 0.0
        %2176 = vmatprep.subr.mxu0 0.0
        %2177 = vmatpush1.msra.mxu0 0.0
        %2178 = vmatprep.subr.mxu0 0.0
        %2179 = vmatpush1.msra.mxu0 0.0
        %2180 = vmatprep.subr.mxu0 0.0
        %2181 = vmatpush1.msra.mxu0 0.0
        %2182 = vmatprep.subr.mxu0 0.0
        %2183 = vmatpush1.msra.mxu0 0.0
        %2184 = vmatprep.subr.mxu0 0.0
        %2185 = vmatpush1.msra.mxu0 0.0
        %2186 = vmatprep.subr.mxu0 0.0
        %2187 = vmatpush1.msra.mxu0 0.0
        %2188 = vmatprep.subr.mxu0 0.0
        %2189 = vmatpush1.msra.mxu0 0.0
        %2190 = vmatprep.subr.mxu0 0.0
        %2191 = vmatpush1.msra.mxu0 0.0
        %2192 = vmatprep.subr.mxu0 0.0
        %2193 = vmatpush1.msra.mxu0 0.0
        %2194 = vmatprep.subr.mxu0 0.0
        %2195 = vmatpush1.msra.mxu0 0.0
        %2196 = vmatprep.subr.mxu0 0.0
        %2197 = vmatpush1.msra.mxu0 0.0
        %2198 = vmatprep.subr.mxu0 0.0
        %2199 = vmatpush1.msra.mxu0 0.0
        %2200 = vmatprep.subr.mxu0 0.0
        %2201 = vmatpush1.msra.mxu0 0.0
        %2202 = vmatprep.subr.mxu0 0.0
        %2203 = vmatpush1.msra.mxu0 0.0
        %2204 = vmatprep.subr.mxu0 0.0
        %2205 = vmatpush1.msra.mxu0 0.0
        %2206 = vmatprep.subr.mxu0 0.0
        %2207 = vmatpush1.msra.mxu0 0.0
        %2208 = vmatprep.subr.mxu0 0.0
        %2209 = vmatpush1.msra.mxu0 0.0
        %2210 = vmatprep.subr.mxu0 0.0
        %2211 = vmatpush1.msra.mxu0 0.0
        %2212 = vmatprep.subr.mxu0 0.0
        %2213 = vmatpush1.msra.mxu0 0.0
        %2214 = vmatprep.subr.mxu0 0.0
        %2215 = vmatpush1.msra.mxu0 0.0
        %2216 = vmatprep.mubr.f32.mxu0 0.0
        %2217 = vmatmul.mubr.f32.gmra.mrb[0].mxu0 %v2150
        %v2218 = vpop.f32.mrb[0].mxu0
        %v2219 = vadd.f32 0.0, %v2218
        %v2220 = vpop.f32.mrb[0].mxu0
        %2221 = vdwg.mxu0
        %v2222 = vld [vmem:[#allocation14] sm:$0xff]
        %v2223 = vld [vmem:[#allocation14 + $0x8] sm:$0xff]
        %v2224 = vld [vmem:[#allocation14 + $0x10] sm:$0xff]
        %v2225 = vld [vmem:[#allocation14 + $0x18] sm:$0xff]
        %v2227 = vsel %vm1581, %v2000, 0
        %2229 = vmatprep.subr.mxu0 0.0
        %2230 = vmatpush1.msra.mxu0 %v2222
        %2231 = vmatprep.subr.mxu0 0.0
        %2232 = vmatpush1.msra.mxu0 0.0
        %2233 = vmatprep.subr.mxu0 0.0
        %2234 = vmatpush1.msra.mxu0 0.0
        %2235 = vmatprep.subr.mxu0 0.0
        %2236 = vmatpush1.msra.mxu0 0.0
        %2237 = vmatprep.subr.mxu0 0.0
        %2238 = vmatpush1.msra.mxu0 0.0
        %2239 = vmatprep.subr.mxu0 0.0
        %2240 = vmatpush1.msra.mxu0 0.0
        %2241 = vmatprep.subr.mxu0 0.0
        %2242 = vmatpush1.msra.mxu0 0.0
        %2243 = vmatprep.subr.mxu0 0.0
        %2244 = vmatpush1.msra.mxu0 0.0
        %2245 = vmatprep.subr.mxu0 0.0
        %2246 = vmatpush1.msra.mxu0 0.0
        %2247 = vmatprep.subr.mxu0 0.0
        %2248 = vmatpush1.msra.mxu0 0.0
        %2249 = vmatprep.subr.mxu0 0.0
        %2250 = vmatpush1.msra.mxu0 0.0
        %2251 = vmatprep.subr.mxu0 0.0
        %2252 = vmatpush1.msra.mxu0 0.0
        %2253 = vmatprep.subr.mxu0 0.0
        %2254 = vmatpush1.msra.mxu0 0.0
        %2255 = vmatprep.subr.mxu0 0.0
        %2256 = vmatpush1.msra.mxu0 0.0
        %2257 = vmatprep.subr.mxu0 0.0
        %2258 = vmatpush1.msra.mxu0 0.0
        %2259 = vmatprep.subr.mxu0 0.0
        %2260 = vmatpush1.msra.mxu0 0.0
        %2261 = vmatprep.subr.mxu0 0.0
        %2262 = vmatpush1.msra.mxu0 0.0
        %2263 = vmatprep.subr.mxu0 0.0
        %2264 = vmatpush1.msra.mxu0 0.0
        %2265 = vmatprep.subr.mxu0 0.0
        %2266 = vmatpush1.msra.mxu0 0.0
        %2267 = vmatprep.subr.mxu0 0.0
        %2268 = vmatpush1.msra.mxu0 0.0
        %2269 = vmatprep.subr.mxu0 0.0
        %2270 = vmatpush1.msra.mxu0 0.0
        %2271 = vmatprep.subr.mxu0 0.0
        %2272 = vmatpush1.msra.mxu0 0.0
        %2273 = vmatprep.subr.mxu0 0.0
        %2274 = vmatpush1.msra.mxu0 0.0
        %2275 = vmatprep.subr.mxu0 0.0
        %2276 = vmatpush1.msra.mxu0 0.0
        %2277 = vmatprep.subr.mxu0 0.0
        %2278 = vmatpush1.msra.mxu0 0.0
        %2279 = vmatprep.subr.mxu0 0.0
        %2280 = vmatpush1.msra.mxu0 0.0
        %2281 = vmatprep.subr.mxu0 0.0
        %2282 = vmatpush1.msra.mxu0 0.0
        %2283 = vmatprep.subr.mxu0 0.0
        %2284 = vmatpush1.msra.mxu0 0.0
        %2285 = vmatprep.subr.mxu0 0.0
        %2286 = vmatpush1.msra.mxu0 0.0
        %2287 = vmatprep.subr.mxu0 0.0
        %2288 = vmatpush1.msra.mxu0 0.0
        %2289 = vmatprep.subr.mxu0 0.0
        %2290 = vmatpush1.msra.mxu0 0.0
        %2291 = vmatprep.subr.mxu0 0.0
        %2292 = vmatpush1.msra.mxu0 0.0
        %2293 = vmatprep.mubr.f32.mxu0 0.0
        %2294 = vmatmul.mubr.f32.gmra.mrb[0].mxu0 %v2227
        %v2295 = vpop.f32.mrb[0].mxu0
        %v2296 = vadd.f32 0.0, %v2295
        %v2297 = vpop.f32.mrb[0].mxu0
        %2298 = vdwg.mxu0
        %v2300 = vsel %vm1581, %v2073, 0
        %2302 = vmatprep.subr.mxu0 0.0
        %2303 = vmatpush1.msra.mxu0 %v2223
        %2304 = vmatprep.subr.mxu0 0.0
        %2305 = vmatpush1.msra.mxu0 0.0
        %2306 = vmatprep.subr.mxu0 0.0
        %2307 = vmatpush1.msra.mxu0 0.0
        %2308 = vmatprep.subr.mxu0 0.0
        %2309 = vmatpush1.msra.mxu0 0.0
        %2310 = vmatprep.subr.mxu0 0.0
        %2311 = vmatpush1.msra.mxu0 0.0
        %2312 = vmatprep.subr.mxu0 0.0
        %2313 = vmatpush1.msra.mxu0 0.0
        %2314 = vmatprep.subr.mxu0 0.0
        %2315 = vmatpush1.msra.mxu0 0.0
        %2316 = vmatprep.subr.mxu0 0.0
        %2317 = vmatpush1.msra.mxu0 0.0
        %2318 = vmatprep.subr.mxu0 0.0
        %2319 = vmatpush1.msra.mxu0 0.0
        %2320 = vmatprep.subr.mxu0 0.0
        %2321 = vmatpush1.msra.mxu0 0.0
        %2322 = vmatprep.subr.mxu0 0.0
        %2323 = vmatpush1.msra.mxu0 0.0
        %2324 = vmatprep.subr.mxu0 0.0
        %2325 = vmatpush1.msra.mxu0 0.0
        %2326 = vmatprep.subr.mxu0 0.0
        %2327 = vmatpush1.msra.mxu0 0.0
        %2328 = vmatprep.subr.mxu0 0.0
        %2329 = vmatpush1.msra.mxu0 0.0
        %2330 = vmatprep.subr.mxu0 0.0
        %2331 = vmatpush1.msra.mxu0 0.0
        %2332 = vmatprep.subr.mxu0 0.0
        %2333 = vmatpush1.msra.mxu0 0.0
        %2334 = vmatprep.subr.mxu0 0.0
        %2335 = vmatpush1.msra.mxu0 0.0
        %2336 = vmatprep.subr.mxu0 0.0
        %2337 = vmatpush1.msra.mxu0 0.0
        %2338 = vmatprep.subr.mxu0 0.0
        %2339 = vmatpush1.msra.mxu0 0.0
        %2340 = vmatprep.subr.mxu0 0.0
        %2341 = vmatpush1.msra.mxu0 0.0
        %2342 = vmatprep.subr.mxu0 0.0
        %2343 = vmatpush1.msra.mxu0 0.0
        %2344 = vmatprep.subr.mxu0 0.0
        %2345 = vmatpush1.msra.mxu0 0.0
        %2346 = vmatprep.subr.mxu0 0.0
        %2347 = vmatpush1.msra.mxu0 0.0
        %2348 = vmatprep.subr.mxu0 0.0
        %2349 = vmatpush1.msra.mxu0 0.0
        %2350 = vmatprep.subr.mxu0 0.0
        %2351 = vmatpush1.msra.mxu0 0.0
        %2352 = vmatprep.subr.mxu0 0.0
        %2353 = vmatpush1.msra.mxu0 0.0
        %2354 = vmatprep.subr.mxu0 0.0
        %2355 = vmatpush1.msra.mxu0 0.0
        %2356 = vmatprep.subr.mxu0 0.0
        %2357 = vmatpush1.msra.mxu0 0.0
        %2358 = vmatprep.subr.mxu0 0.0
        %2359 = vmatpush1.msra.mxu0 0.0
        %2360 = vmatprep.subr.mxu0 0.0
        %2361 = vmatpush1.msra.mxu0 0.0
        %2362 = vmatprep.subr.mxu0 0.0
        %2363 = vmatpush1.msra.mxu0 0.0
        %2364 = vmatprep.subr.mxu0 0.0
        %2365 = vmatpush1.msra.mxu0 0.0
        %2366 = vmatprep.mubr.f32.mxu0 0.0
        %2367 = vmatmul.mubr.f32.gmra.mrb[0].mxu0 %v2300
        %v2368 = vpop.f32.mrb[0].mxu0
        %v2369 = vadd.f32 0.0, %v2368
        %v2370 = vpop.f32.mrb[0].mxu0
        %2371 = vdwg.mxu0
        %v2373 = vsel %vm1581, %v2146, 0
        %2375 = vmatprep.subr.mxu0 0.0
        %2376 = vmatpush1.msra.mxu0 %v2224
        %2377 = vmatprep.subr.mxu0 0.0
        %2378 = vmatpush1.msra.mxu0 0.0
        %2379 = vmatprep.subr.mxu0 0.0
        %2380 = vmatpush1.msra.mxu0 0.0
        %2381 = vmatprep.subr.mxu0 0.0
        %2382 = vmatpush1.msra.mxu0 0.0
        %2383 = vmatprep.subr.mxu0 0.0
        %2384 = vmatpush1.msra.mxu0 0.0
        %2385 = vmatprep.subr.mxu0 0.0
        %2386 = vmatpush1.msra.mxu0 0.0
        %2387 = vmatprep.subr.mxu0 0.0
        %2388 = vmatpush1.msra.mxu0 0.0
        %2389 = vmatprep.subr.mxu0 0.0
        %2390 = vmatpush1.msra.mxu0 0.0
        %2391 = vmatprep.subr.mxu0 0.0
        %2392 = vmatpush1.msra.mxu0 0.0
        %2393 = vmatprep.subr.mxu0 0.0
        %2394 = vmatpush1.msra.mxu0 0.0
        %2395 = vmatprep.subr.mxu0 0.0
        %2396 = vmatpush1.msra.mxu0 0.0
        %2397 = vmatprep.subr.mxu0 0.0
        %2398 = vmatpush1.msra.mxu0 0.0
        %2399 = vmatprep.subr.mxu0 0.0
        %2400 = vmatpush1.msra.mxu0 0.0
        %2401 = vmatprep.subr.mxu0 0.0
        %2402 = vmatpush1.msra.mxu0 0.0
        %2403 = vmatprep.subr.mxu0 0.0
        %2404 = vmatpush1.msra.mxu0 0.0
        %2405 = vmatprep.subr.mxu0 0.0
        %2406 = vmatpush1.msra.mxu0 0.0
        %2407 = vmatprep.subr.mxu0 0.0
        %2408 = vmatpush1.msra.mxu0 0.0
        %2409 = vmatprep.subr.mxu0 0.0
        %2410 = vmatpush1.msra.mxu0 0.0
        %2411 = vmatprep.subr.mxu0 0.0
        %2412 = vmatpush1.msra.mxu0 0.0
        %2413 = vmatprep.subr.mxu0 0.0
        %2414 = vmatpush1.msra.mxu0 0.0
        %2415 = vmatprep.subr.mxu0 0.0
        %2416 = vmatpush1.msra.mxu0 0.0
        %2417 = vmatprep.subr.mxu0 0.0
        %2418 = vmatpush1.msra.mxu0 0.0
        %2419 = vmatprep.subr.mxu0 0.0
        %2420 = vmatpush1.msra.mxu0 0.0
        %2421 = vmatprep.subr.mxu0 0.0
        %2422 = vmatpush1.msra.mxu0 0.0
        %2423 = vmatprep.subr.mxu0 0.0
        %2424 = vmatpush1.msra.mxu0 0.0
        %2425 = vmatprep.subr.mxu0 0.0
        %2426 = vmatpush1.msra.mxu0 0.0
        %2427 = vmatprep.subr.mxu0 0.0
        %2428 = vmatpush1.msra.mxu0 0.0
        %2429 = vmatprep.subr.mxu0 0.0
        %2430 = vmatpush1.msra.mxu0 0.0
        %2431 = vmatprep.subr.mxu0 0.0
        %2432 = vmatpush1.msra.mxu0 0.0
        %2433 = vmatprep.subr.mxu0 0.0
        %2434 = vmatpush1.msra.mxu0 0.0
        %2435 = vmatprep.subr.mxu0 0.0
        %2436 = vmatpush1.msra.mxu0 0.0
        %2437 = vmatprep.subr.mxu0 0.0
        %2438 = vmatpush1.msra.mxu0 0.0
        %2439 = vmatprep.mubr.f32.mxu0 0.0
        %2440 = vmatmul.mubr.f32.gmra.mrb[0].mxu0 %v2373
        %v2441 = vpop.f32.mrb[0].mxu0
        %v2442 = vadd.f32 0.0, %v2441
        %v2443 = vpop.f32.mrb[0].mxu0
        %2444 = vdwg.mxu0
        %v2446 = vsel %vm1581, %v2219, 0
        %2448 = vmatprep.subr.mxu0 0.0
        %2449 = vmatpush1.msra.mxu0 %v2225
        %2450 = vmatprep.subr.mxu0 0.0
        %2451 = vmatpush1.msra.mxu0 0.0
        %2452 = vmatprep.subr.mxu0 0.0
        %2453 = vmatpush1.msra.mxu0 0.0
        %2454 = vmatprep.subr.mxu0 0.0
        %2455 = vmatpush1.msra.mxu0 0.0
        %2456 = vmatprep.subr.mxu0 0.0
        %2457 = vmatpush1.msra.mxu0 0.0
        %2458 = vmatprep.subr.mxu0 0.0
        %2459 = vmatpush1.msra.mxu0 0.0
        %2460 = vmatprep.subr.mxu0 0.0
        %2461 = vmatpush1.msra.mxu0 0.0
        %2462 = vmatprep.subr.mxu0 0.0
        %2463 = vmatpush1.msra.mxu0 0.0
        %2464 = vmatprep.subr.mxu0 0.0
        %2465 = vmatpush1.msra.mxu0 0.0
        %2466 = vmatprep.subr.mxu0 0.0
        %2467 = vmatpush1.msra.mxu0 0.0
        %2468 = vmatprep.subr.mxu0 0.0
        %2469 = vmatpush1.msra.mxu0 0.0
        %2470 = vmatprep.subr.mxu0 0.0
        %2471 = vmatpush1.msra.mxu0 0.0
        %2472 = vmatprep.subr.mxu0 0.0
        %2473 = vmatpush1.msra.mxu0 0.0
        %2474 = vmatprep.subr.mxu0 0.0
        %2475 = vmatpush1.msra.mxu0 0.0
        %2476 = vmatprep.subr.mxu0 0.0
        %2477 = vmatpush1.msra.mxu0 0.0
        %2478 = vmatprep.subr.mxu0 0.0
        %2479 = vmatpush1.msra.mxu0 0.0
        %2480 = vmatprep.subr.mxu0 0.0
        %2481 = vmatpush1.msra.mxu0 0.0
        %2482 = vmatprep.subr.mxu0 0.0
        %2483 = vmatpush1.msra.mxu0 0.0
        %2484 = vmatprep.subr.mxu0 0.0
        %2485 = vmatpush1.msra.mxu0 0.0
        %2486 = vmatprep.subr.mxu0 0.0
        %2487 = vmatpush1.msra.mxu0 0.0
        %2488 = vmatprep.subr.mxu0 0.0
        %2489 = vmatpush1.msra.mxu0 0.0
        %2490 = vmatprep.subr.mxu0 0.0
        %2491 = vmatpush1.msra.mxu0 0.0
        %2492 = vmatprep.subr.mxu0 0.0
        %2493 = vmatpush1.msra.mxu0 0.0
        %2494 = vmatprep.subr.mxu0 0.0
        %2495 = vmatpush1.msra.mxu0 0.0
        %2496 = vmatprep.subr.mxu0 0.0
        %2497 = vmatpush1.msra.mxu0 0.0
        %2498 = vmatprep.subr.mxu0 0.0
        %2499 = vmatpush1.msra.mxu0 0.0
        %2500 = vmatprep.subr.mxu0 0.0
        %2501 = vmatpush1.msra.mxu0 0.0
        %2502 = vmatprep.subr.mxu0 0.0
        %2503 = vmatpush1.msra.mxu0 0.0
        %2504 = vmatprep.subr.mxu0 0.0
        %2505 = vmatpush1.msra.mxu0 0.0
        %2506 = vmatprep.subr.mxu0 0.0
        %2507 = vmatpush1.msra.mxu0 0.0
        %2508 = vmatprep.subr.mxu0 0.0
        %2509 = vmatpush1.msra.mxu0 0.0
        %2510 = vmatprep.subr.mxu0 0.0
        %2511 = vmatpush1.msra.mxu0 0.0
        %2512 = vmatprep.mubr.f32.mxu0 0.0
        %2513 = vmatmul.mubr.f32.gmra.mrb[0].mxu0 %v2446
        %v2514 = vpop.f32.mrb[0].mxu0
        %v2515 = vadd.f32 0.0, %v2514
        %v2516 = vpop.f32.mrb[0].mxu0
        %2517 = vdwg.mxu0
        %v2518 = vsel %vm569, %v2296, 0.0
        %v2519 = vsel %vm569, %v2369, 0.0
        %v2520 = vadd.f32 %v2518, %v2519
        %v2521 = vsel %vm569, %v2442, 0.0
        %v2522 = vadd.f32 %v2520, %v2521
        %v2523 = vsel %vm569, %v2515, 0.0
        %v2524 = vadd.f32 %v2522, %v2523
        %v2525 = vlaneseq
        %v2526 = vshrl.u32 %v2525, 7
        %v2527 = vsub.s32 6, %v2526
        %v2528 = vrot.slane %v565, %v2527
        %v2529 = vadd.f32 %v2524, %v2528
        %v2530 = vadd.f32 %v563, %v2529
        %v2531 = vsel %vm569, %v2530, 0.0
        %2532 = vadd.xlane.f32.xlu0 %v2531
        %v2533 = vpop.xlane.xlu0 %2532
        %v2534 = vmul.f32 %v2533, %v573
        %v2535 = vsub.f32 %v2530, %v2534
        %v2536 = vmul.f32 %v2535, %v2535
        %v2537 = vsel %vm569, %v2536, 0.0
        %2538 = vadd.xlane.f32.xlu0 %v2537
        %v2539 = vpop.xlane.xlu0 %2538
        %v2540 = vmul.f32 %v2539, 0.032258064
        %v2541 = vrsqrt.pop %v2540
        %v2542 = vmul.f32 %v2540, %v2541
        %vm2543 = vcmp.eq.f32.partialorder %v2540, inf
        %v2544 = vsel %vm2543, %v2540, %v2542
        %vm2545 = vcmp.eq.f32.partialorder %v2540, 0.0
        %v2546 = vand.u32 %v2540, 2147483648
        %v2547 = vsel %vm2545, %v2546, %v2544
        %v2548 = vadd.f32 %v2547, 1e-06
        %v2549 = vrcp.pop %v2548
        %v2550 = vmul.f32 1.0, %v2549
        %v2551 = vmul.f32 %v2535, %v2550
        %v2552 = vlaneseq
        %v2553 = vshrl.u32 %v2552, 7
        %v2554 = vsub.s32 2, %v2553
        %v2555 = vrot.slane %v565, %v2554
        %v2556 = vmul.f32 %v2555, %v2551
        %v2557 = vlaneseq
        %v2558 = vshrl.u32 %v2557, 7
        %v2559 = vsub.s32 3, %v2558
        %v2560 = vrot.slane %v565, %v2559
        %v2561 = vadd.f32 %v2556, %v2560
        %s2562 = scalar_lea.vmem [#allocation11], 384
        %v2563 = vld [vmem:[%s2562] sm:$0xff]
        %v2564 = vld [vmem:[%s2562 + $0x8] sm:$0xff]
        %v2565 = vld [vmem:[%s2562 + $0x10] sm:$0xff]
        %v2566 = vld [vmem:[%s2562 + $0x18] sm:$0xff]
        %v2567 = vld [vmem:[%s2562 + $0x20] sm:$0xff]
        %v2568 = vld [vmem:[%s2562 + $0x28] sm:$0xff]
        %v2569 = vld [vmem:[%s2562 + $0x30] sm:$0xff]
        %v2570 = vld [vmem:[%s2562 + $0x38] sm:$0xff]
        %v2571 = vld [vmem:[%s2562 + $0x40] sm:$0xff]
        %v2572 = vld [vmem:[%s2562 + $0x48] sm:$0xff]
        %v2573 = vld [vmem:[%s2562 + $0x50] sm:$0xff]
        %v2574 = vld [vmem:[%s2562 + $0x58] sm:$0xff]
        %v2575 = vld [vmem:[%s2562 + $0x60] sm:$0xff]
        %v2576 = vld [vmem:[%s2562 + $0x68] sm:$0xff]
        %v2577 = vld [vmem:[%s2562 + $0x70] sm:$0xff]
        %v2578 = vld [vmem:[%s2562 + $0x78] sm:$0xff]
        %s2579 = scalar_lea.vmem [#allocation13], 12
        %v2580 = vld [vmem:[%s2579] sm:$0x1]
        %v2581 = vld [vmem:[%s2579 + $0x1] sm:$0x1]
        %v2582 = vld [vmem:[%s2579 + $0x2] sm:$0x1]
        %v2583 = vld [vmem:[%s2579 + $0x3] sm:$0x1]
        %v2588 = vlaneseq
        %v2589 = vshrl.u32 %v2588, 7
        %v2590 = vsub.s32 0, %v2589
        %v2591 = vrot.slane %v2580, %v2590
        %v2592 = vlaneseq
        %v2593 = vshrl.u32 %v2592, 7
        %v2594 = vsub.s32 0, %v2593
        %v2595 = vrot.slane %v2581, %v2594
        %v2596 = vlaneseq
        %v2597 = vshrl.u32 %v2596, 7
        %v2598 = vsub.s32 0, %v2597
        %v2599 = vrot.slane %v2582, %v2598
        %v2600 = vlaneseq
        %v2601 = vshrl.u32 %v2600, 7
        %v2602 = vsub.s32 0, %v2601
        %v2603 = vrot.slane %v2583, %v2602
        %v2609 = vsel %vm569, %v2561, 0
        %2611 = vmatprep.subr.mxu0 0.0
        %2612 = vmatpush1.msra.mxu0 %v2563
        %2613 = vmatprep.subr.mxu0 0.0
        %2614 = vmatpush1.msra.mxu0 %v2564
        %2615 = vmatprep.subr.mxu0 0.0
        %2616 = vmatpush1.msra.mxu0 %v2565
        %2617 = vmatprep.subr.mxu0 0.0
        %2618 = vmatpush1.msra.mxu0 %v2566
        %2619 = vmatprep.subr.mxu0 0.0
        %2620 = vmatpush1.msra.mxu0 0.0
        %2621 = vmatprep.subr.mxu0 0.0
        %2622 = vmatpush1.msra.mxu0 0.0
        %2623 = vmatprep.subr.mxu0 0.0
        %2624 = vmatpush1.msra.mxu0 0.0
        %2625 = vmatprep.subr.mxu0 0.0
        %2626 = vmatpush1.msra.mxu0 0.0
        %2627 = vmatprep.subr.mxu0 0.0
        %2628 = vmatpush1.msra.mxu0 0.0
        %2629 = vmatprep.subr.mxu0 0.0
        %2630 = vmatpush1.msra.mxu0 0.0
        %2631 = vmatprep.subr.mxu0 0.0
        %2632 = vmatpush1.msra.mxu0 0.0
        %2633 = vmatprep.subr.mxu0 0.0
        %2634 = vmatpush1.msra.mxu0 0.0
        %2635 = vmatprep.subr.mxu0 0.0
        %2636 = vmatpush1.msra.mxu0 0.0
        %2637 = vmatprep.subr.mxu0 0.0
        %2638 = vmatpush1.msra.mxu0 0.0
        %2639 = vmatprep.subr.mxu0 0.0
        %2640 = vmatpush1.msra.mxu0 0.0
        %2641 = vmatprep.subr.mxu0 0.0
        %2642 = vmatpush1.msra.mxu0 0.0
        %2643 = vmatprep.subr.mxu0 0.0
        %2644 = vmatpush1.msra.mxu0 0.0
        %2645 = vmatprep.subr.mxu0 0.0
        %2646 = vmatpush1.msra.mxu0 0.0
        %2647 = vmatprep.subr.mxu0 0.0
        %2648 = vmatpush1.msra.mxu0 0.0
        %2649 = vmatprep.subr.mxu0 0.0
        %2650 = vmatpush1.msra.mxu0 0.0
        %2651 = vmatprep.subr.mxu0 0.0
        %2652 = vmatpush1.msra.mxu0 0.0
        %2653 = vmatprep.subr.mxu0 0.0
        %2654 = vmatpush1.msra.mxu0 0.0
        %2655 = vmatprep.subr.mxu0 0.0
        %2656 = vmatpush1.msra.mxu0 0.0
        %2657 = vmatprep.subr.mxu0 0.0
        %2658 = vmatpush1.msra.mxu0 0.0
        %2659 = vmatprep.subr.mxu0 0.0
        %2660 = vmatpush1.msra.mxu0 0.0
        %2661 = vmatprep.subr.mxu0 0.0
        %2662 = vmatpush1.msra.mxu0 0.0
        %2663 = vmatprep.subr.mxu0 0.0
        %2664 = vmatpush1.msra.mxu0 0.0
        %2665 = vmatprep.subr.mxu0 0.0
        %2666 = vmatpush1.msra.mxu0 0.0
        %2667 = vmatprep.subr.mxu0 0.0
        %2668 = vmatpush1.msra.mxu0 0.0
        %2669 = vmatprep.subr.mxu0 0.0
        %2670 = vmatpush1.msra.mxu0 0.0
        %2671 = vmatprep.subr.mxu0 0.0
        %2672 = vmatpush1.msra.mxu0 0.0
        %2673 = vmatprep.subr.mxu0 0.0
        %2674 = vmatpush1.msra.mxu0 0.0
        %2675 = vmatprep.mubr.f32.mxu0 0.0
        %2676 = vmatmul.mubr.f32.gmra.mrb[0].mxu0 %v2609
        %v2677 = vpop.f32.mrb[0].mxu0
        %v2678 = vadd.f32 %v2591, %v2677
        %v2679 = vpop.f32.mrb[0].mxu0
        %2680 = vdwg.mxu0
        %2681 = vmatprep.subr.mxu0 0.0
        %2682 = vmatpush1.msra.mxu0 %v2567
        %2683 = vmatprep.subr.mxu0 0.0
        %2684 = vmatpush1.msra.mxu0 %v2568
        %2685 = vmatprep.subr.mxu0 0.0
        %2686 = vmatpush1.msra.mxu0 %v2569
        %2687 = vmatprep.subr.mxu0 0.0
        %2688 = vmatpush1.msra.mxu0 %v2570
        %2689 = vmatprep.subr.mxu0 0.0
        %2690 = vmatpush1.msra.mxu0 0.0
        %2691 = vmatprep.subr.mxu0 0.0
        %2692 = vmatpush1.msra.mxu0 0.0
        %2693 = vmatprep.subr.mxu0 0.0
        %2694 = vmatpush1.msra.mxu0 0.0
        %2695 = vmatprep.subr.mxu0 0.0
        %2696 = vmatpush1.msra.mxu0 0.0
        %2697 = vmatprep.subr.mxu0 0.0
        %2698 = vmatpush1.msra.mxu0 0.0
        %2699 = vmatprep.subr.mxu0 0.0
        %2700 = vmatpush1.msra.mxu0 0.0
        %2701 = vmatprep.subr.mxu0 0.0
        %2702 = vmatpush1.msra.mxu0 0.0
        %2703 = vmatprep.subr.mxu0 0.0
        %2704 = vmatpush1.msra.mxu0 0.0
        %2705 = vmatprep.subr.mxu0 0.0
        %2706 = vmatpush1.msra.mxu0 0.0
        %2707 = vmatprep.subr.mxu0 0.0
        %2708 = vmatpush1.msra.mxu0 0.0
        %2709 = vmatprep.subr.mxu0 0.0
        %2710 = vmatpush1.msra.mxu0 0.0
        %2711 = vmatprep.subr.mxu0 0.0
        %2712 = vmatpush1.msra.mxu0 0.0
        %2713 = vmatprep.subr.mxu0 0.0
        %2714 = vmatpush1.msra.mxu0 0.0
        %2715 = vmatprep.subr.mxu0 0.0
        %2716 = vmatpush1.msra.mxu0 0.0
        %2717 = vmatprep.subr.mxu0 0.0
        %2718 = vmatpush1.msra.mxu0 0.0
        %2719 = vmatprep.subr.mxu0 0.0
        %2720 = vmatpush1.msra.mxu0 0.0
        %2721 = vmatprep.subr.mxu0 0.0
        %2722 = vmatpush1.msra.mxu0 0.0
        %2723 = vmatprep.subr.mxu0 0.0
        %2724 = vmatpush1.msra.mxu0 0.0
        %2725 = vmatprep.subr.mxu0 0.0
        %2726 = vmatpush1.msra.mxu0 0.0
        %2727 = vmatprep.subr.mxu0 0.0
        %2728 = vmatpush1.msra.mxu0 0.0
        %2729 = vmatprep.subr.mxu0 0.0
        %2730 = vmatpush1.msra.mxu0 0.0
        %2731 = vmatprep.subr.mxu0 0.0
        %2732 = vmatpush1.msra.mxu0 0.0
        %2733 = vmatprep.subr.mxu0 0.0
        %2734 = vmatpush1.msra.mxu0 0.0
        %2735 = vmatprep.subr.mxu0 0.0
        %2736 = vmatpush1.msra.mxu0 0.0
        %2737 = vmatprep.subr.mxu0 0.0
        %2738 = vmatpush1.msra.mxu0 0.0
        %2739 = vmatprep.subr.mxu0 0.0
        %2740 = vmatpush1.msra.mxu0 0.0
        %2741 = vmatprep.subr.mxu0 0.0
        %2742 = vmatpush1.msra.mxu0 0.0
        %2743 = vmatprep.subr.mxu0 0.0
        %2744 = vmatpush1.msra.mxu0 0.0
        %2745 = vmatprep.mubr.f32.mxu0 0.0
        %2746 = vmatmul.mubr.f32.gmra.mrb[0].mxu0 %v2609
        %v2747 = vpop.f32.mrb[0].mxu0
        %v2748 = vadd.f32 %v2595, %v2747
        %v2749 = vpop.f32.mrb[0].mxu0
        %2750 = vdwg.mxu0
        %2751 = vmatprep.subr.mxu0 0.0
        %2752 = vmatpush1.msra.mxu0 %v2571
        %2753 = vmatprep.subr.mxu0 0.0
        %2754 = vmatpush1.msra.mxu0 %v2572
        %2755 = vmatprep.subr.mxu0 0.0
        %2756 = vmatpush1.msra.mxu0 %v2573
        %2757 = vmatprep.subr.mxu0 0.0
        %2758 = vmatpush1.msra.mxu0 %v2574
        %2759 = vmatprep.subr.mxu0 0.0
        %2760 = vmatpush1.msra.mxu0 0.0
        %2761 = vmatprep.subr.mxu0 0.0
        %2762 = vmatpush1.msra.mxu0 0.0
        %2763 = vmatprep.subr.mxu0 0.0
        %2764 = vmatpush1.msra.mxu0 0.0
        %2765 = vmatprep.subr.mxu0 0.0
        %2766 = vmatpush1.msra.mxu0 0.0
        %2767 = vmatprep.subr.mxu0 0.0
        %2768 = vmatpush1.msra.mxu0 0.0
        %2769 = vmatprep.subr.mxu0 0.0
        %2770 = vmatpush1.msra.mxu0 0.0
        %2771 = vmatprep.subr.mxu0 0.0
        %2772 = vmatpush1.msra.mxu0 0.0
        %2773 = vmatprep.subr.mxu0 0.0
        %2774 = vmatpush1.msra.mxu0 0.0
        %2775 = vmatprep.subr.mxu0 0.0
        %2776 = vmatpush1.msra.mxu0 0.0
        %2777 = vmatprep.subr.mxu0 0.0
        %2778 = vmatpush1.msra.mxu0 0.0
        %2779 = vmatprep.subr.mxu0 0.0
        %2780 = vmatpush1.msra.mxu0 0.0
        %2781 = vmatprep.subr.mxu0 0.0
        %2782 = vmatpush1.msra.mxu0 0.0
        %2783 = vmatprep.subr.mxu0 0.0
        %2784 = vmatpush1.msra.mxu0 0.0
        %2785 = vmatprep.subr.mxu0 0.0
        %2786 = vmatpush1.msra.mxu0 0.0
        %2787 = vmatprep.subr.mxu0 0.0
        %2788 = vmatpush1.msra.mxu0 0.0
        %2789 = vmatprep.subr.mxu0 0.0
        %2790 = vmatpush1.msra.mxu0 0.0
        %2791 = vmatprep.subr.mxu0 0.0
        %2792 = vmatpush1.msra.mxu0 0.0
        %2793 = vmatprep.subr.mxu0 0.0
        %2794 = vmatpush1.msra.mxu0 0.0
        %2795 = vmatprep.subr.mxu0 0.0
        %2796 = vmatpush1.msra.mxu0 0.0
        %2797 = vmatprep.subr.mxu0 0.0
        %2798 = vmatpush1.msra.mxu0 0.0
        %2799 = vmatprep.subr.mxu0 0.0
        %2800 = vmatpush1.msra.mxu0 0.0
        %2801 = vmatprep.subr.mxu0 0.0
        %2802 = vmatpush1.msra.mxu0 0.0
        %2803 = vmatprep.subr.mxu0 0.0
        %2804 = vmatpush1.msra.mxu0 0.0
        %2805 = vmatprep.subr.mxu0 0.0
        %2806 = vmatpush1.msra.mxu0 0.0
        %2807 = vmatprep.subr.mxu0 0.0
        %2808 = vmatpush1.msra.mxu0 0.0
        %2809 = vmatprep.subr.mxu0 0.0
        %2810 = vmatpush1.msra.mxu0 0.0
        %2811 = vmatprep.subr.mxu0 0.0
        %2812 = vmatpush1.msra.mxu0 0.0
        %2813 = vmatprep.subr.mxu0 0.0
        %2814 = vmatpush1.msra.mxu0 0.0
        %2815 = vmatprep.mubr.f32.mxu0 0.0
        %2816 = vmatmul.mubr.f32.gmra.mrb[0].mxu0 %v2609
        %v2817 = vpop.f32.mrb[0].mxu0
        %v2818 = vadd.f32 %v2599, %v2817
        %v2819 = vpop.f32.mrb[0].mxu0
        %2820 = vdwg.mxu0
        %2821 = vmatprep.subr.mxu0 0.0
        %2822 = vmatpush1.msra.mxu0 %v2575
        %2823 = vmatprep.subr.mxu0 0.0
        %2824 = vmatpush1.msra.mxu0 %v2576
        %2825 = vmatprep.subr.mxu0 0.0
        %2826 = vmatpush1.msra.mxu0 %v2577
        %2827 = vmatprep.subr.mxu0 0.0
        %2828 = vmatpush1.msra.mxu0 %v2578
        %2829 = vmatprep.subr.mxu0 0.0
        %2830 = vmatpush1.msra.mxu0 0.0
        %2831 = vmatprep.subr.mxu0 0.0
        %2832 = vmatpush1.msra.mxu0 0.0
        %2833 = vmatprep.subr.mxu0 0.0
        %2834 = vmatpush1.msra.mxu0 0.0
        %2835 = vmatprep.subr.mxu0 0.0
        %2836 = vmatpush1.msra.mxu0 0.0
        %2837 = vmatprep.subr.mxu0 0.0
        %2838 = vmatpush1.msra.mxu0 0.0
        %2839 = vmatprep.subr.mxu0 0.0
        %2840 = vmatpush1.msra.mxu0 0.0
        %2841 = vmatprep.subr.mxu0 0.0
        %2842 = vmatpush1.msra.mxu0 0.0
        %2843 = vmatprep.subr.mxu0 0.0
        %2844 = vmatpush1.msra.mxu0 0.0
        %2845 = vmatprep.subr.mxu0 0.0
        %2846 = vmatpush1.msra.mxu0 0.0
        %2847 = vmatprep.subr.mxu0 0.0
        %2848 = vmatpush1.msra.mxu0 0.0
        %2849 = vmatprep.subr.mxu0 0.0
        %2850 = vmatpush1.msra.mxu0 0.0
        %2851 = vmatprep.subr.mxu0 0.0
        %2852 = vmatpush1.msra.mxu0 0.0
        %2853 = vmatprep.subr.mxu0 0.0
        %2854 = vmatpush1.msra.mxu0 0.0
        %2855 = vmatprep.subr.mxu0 0.0
        %2856 = vmatpush1.msra.mxu0 0.0
        %2857 = vmatprep.subr.mxu0 0.0
        %2858 = vmatpush1.msra.mxu0 0.0
        %2859 = vmatprep.subr.mxu0 0.0
        %2860 = vmatpush1.msra.mxu0 0.0
        %2861 = vmatprep.subr.mxu0 0.0
        %2862 = vmatpush1.msra.mxu0 0.0
        %2863 = vmatprep.subr.mxu0 0.0
        %2864 = vmatpush1.msra.mxu0 0.0
        %2865 = vmatprep.subr.mxu0 0.0
        %2866 = vmatpush1.msra.mxu0 0.0
        %2867 = vmatprep.subr.mxu0 0.0
        %2868 = vmatpush1.msra.mxu0 0.0
        %2869 = vmatprep.subr.mxu0 0.0
        %2870 = vmatpush1.msra.mxu0 0.0
        %2871 = vmatprep.subr.mxu0 0.0
        %2872 = vmatpush1.msra.mxu0 0.0
        %2873 = vmatprep.subr.mxu0 0.0
        %2874 = vmatpush1.msra.mxu0 0.0
        %2875 = vmatprep.subr.mxu0 0.0
        %2876 = vmatpush1.msra.mxu0 0.0
        %2877 = vmatprep.subr.mxu0 0.0
        %2878 = vmatpush1.msra.mxu0 0.0
        %2879 = vmatprep.subr.mxu0 0.0
        %2880 = vmatpush1.msra.mxu0 0.0
        %2881 = vmatprep.subr.mxu0 0.0
        %2882 = vmatpush1.msra.mxu0 0.0
        %2883 = vmatprep.subr.mxu0 0.0
        %2884 = vmatpush1.msra.mxu0 0.0
        %2885 = vmatprep.mubr.f32.mxu0 0.0
        %2886 = vmatmul.mubr.f32.gmra.mrb[0].mxu0 %v2609
        %v2887 = vpop.f32.mrb[0].mxu0
        %v2888 = vadd.f32 %v2603, %v2887
        %v2889 = vpop.f32.mrb[0].mxu0
        %2890 = vdwg.mxu0
        %s2891 = scalar_lea.vmem [#allocation11], 512
        %v2892 = vld [vmem:[%s2891] sm:$0xff]
        %v2893 = vld [vmem:[%s2891 + $0x8] sm:$0xff]
        %v2894 = vld [vmem:[%s2891 + $0x10] sm:$0xff]
        %v2895 = vld [vmem:[%s2891 + $0x18] sm:$0xff]
        %v2896 = vld [vmem:[%s2891 + $0x20] sm:$0xff]
        %v2897 = vld [vmem:[%s2891 + $0x28] sm:$0xff]
        %v2898 = vld [vmem:[%s2891 + $0x30] sm:$0xff]
        %v2899 = vld [vmem:[%s2891 + $0x38] sm:$0xff]
        %v2900 = vld [vmem:[%s2891 + $0x40] sm:$0xff]
        %v2901 = vld [vmem:[%s2891 + $0x48] sm:$0xff]
        %v2902 = vld [vmem:[%s2891 + $0x50] sm:$0xff]
        %v2903 = vld [vmem:[%s2891 + $0x58] sm:$0xff]
        %v2904 = vld [vmem:[%s2891 + $0x60] sm:$0xff]
        %v2905 = vld [vmem:[%s2891 + $0x68] sm:$0xff]
        %v2906 = vld [vmem:[%s2891 + $0x70] sm:$0xff]
        %v2907 = vld [vmem:[%s2891 + $0x78] sm:$0xff]
        %s2908 = scalar_lea.vmem [#allocation13], 16
        %v2909 = vld [vmem:[%s2908] sm:$0x1]
        %v2910 = vld [vmem:[%s2908 + $0x1] sm:$0x1]
        %v2911 = vld [vmem:[%s2908 + $0x2] sm:$0x1]
        %v2912 = vld [vmem:[%s2908 + $0x3] sm:$0x1]
        %v2917 = vlaneseq
        %v2918 = vshrl.u32 %v2917, 7
        %v2919 = vsub.s32 0, %v2918
        %v2920 = vrot.slane %v2909, %v2919
        %v2921 = vlaneseq
        %v2922 = vshrl.u32 %v2921, 7
        %v2923 = vsub.s32 0, %v2922
        %v2924 = vrot.slane %v2910, %v2923
        %v2925 = vlaneseq
        %v2926 = vshrl.u32 %v2925, 7
        %v2927 = vsub.s32 0, %v2926
        %v2928 = vrot.slane %v2911, %v2927
        %v2929 = vlaneseq
        %v2930 = vshrl.u32 %v2929, 7
        %v2931 = vsub.s32 0, %v2930
        %v2932 = vrot.slane %v2912, %v2931
        %v2938 = vsel %vm569, %v564, 0
        %2940 = vmatprep.subr.mxu0 0.0
        %2941 = vmatpush1.msra.mxu0 %v2892
        %2942 = vmatprep.subr.mxu0 0.0
        %2943 = vmatpush1.msra.mxu0 %v2893
        %2944 = vmatprep.subr.mxu0 0.0
        %2945 = vmatpush1.msra.mxu0 %v2894
        %2946 = vmatprep.subr.mxu0 0.0
        %2947 = vmatpush1.msra.mxu0 %v2895
        %2948 = vmatprep.subr.mxu0 0.0
        %2949 = vmatpush1.msra.mxu0 0.0
        %2950 = vmatprep.subr.mxu0 0.0
        %2951 = vmatpush1.msra.mxu0 0.0
        %2952 = vmatprep.subr.mxu0 0.0
        %2953 = vmatpush1.msra.mxu0 0.0
        %2954 = vmatprep.subr.mxu0 0.0
        %2955 = vmatpush1.msra.mxu0 0.0
        %2956 = vmatprep.subr.mxu0 0.0
        %2957 = vmatpush1.msra.mxu0 0.0
        %2958 = vmatprep.subr.mxu0 0.0
        %2959 = vmatpush1.msra.mxu0 0.0
        %2960 = vmatprep.subr.mxu0 0.0
        %2961 = vmatpush1.msra.mxu0 0.0
        %2962 = vmatprep.subr.mxu0 0.0
        %2963 = vmatpush1.msra.mxu0 0.0
        %2964 = vmatprep.subr.mxu0 0.0
        %2965 = vmatpush1.msra.mxu0 0.0
        %2966 = vmatprep.subr.mxu0 0.0
        %2967 = vmatpush1.msra.mxu0 0.0
        %2968 = vmatprep.subr.mxu0 0.0
        %2969 = vmatpush1.msra.mxu0 0.0
        %2970 = vmatprep.subr.mxu0 0.0
        %2971 = vmatpush1.msra.mxu0 0.0
        %2972 = vmatprep.subr.mxu0 0.0
        %2973 = vmatpush1.msra.mxu0 0.0
        %2974 = vmatprep.subr.mxu0 0.0
        %2975 = vmatpush1.msra.mxu0 0.0
        %2976 = vmatprep.subr.mxu0 0.0
        %2977 = vmatpush1.msra.mxu0 0.0
        %2978 = vmatprep.subr.mxu0 0.0
        %2979 = vmatpush1.msra.mxu0 0.0
        %2980 = vmatprep.subr.mxu0 0.0
        %2981 = vmatpush1.msra.mxu0 0.0
        %2982 = vmatprep.subr.mxu0 0.0
        %2983 = vmatpush1.msra.mxu0 0.0
        %2984 = vmatprep.subr.mxu0 0.0
        %2985 = vmatpush1.msra.mxu0 0.0
        %2986 = vmatprep.subr.mxu0 0.0
        %2987 = vmatpush1.msra.mxu0 0.0
        %2988 = vmatprep.subr.mxu0 0.0
        %2989 = vmatpush1.msra.mxu0 0.0
        %2990 = vmatprep.subr.mxu0 0.0
        %2991 = vmatpush1.msra.mxu0 0.0
        %2992 = vmatprep.subr.mxu0 0.0
        %2993 = vmatpush1.msra.mxu0 0.0
        %2994 = vmatprep.subr.mxu0 0.0
        %2995 = vmatpush1.msra.mxu0 0.0
        %2996 = vmatprep.subr.mxu0 0.0
        %2997 = vmatpush1.msra.mxu0 0.0
        %2998 = vmatprep.subr.mxu0 0.0
        %2999 = vmatpush1.msra.mxu0 0.0
        %3000 = vmatprep.subr.mxu0 0.0
        %3001 = vmatpush1.msra.mxu0 0.0
        %3002 = vmatprep.subr.mxu0 0.0
        %3003 = vmatpush1.msra.mxu0 0.0
        %3004 = vmatprep.mubr.f32.mxu0 0.0
        %3005 = vmatmul.mubr.f32.gmra.mrb[0].mxu0 %v2938
        %v3006 = vpop.f32.mrb[0].mxu0
        %v3007 = vadd.f32 %v2920, %v3006
        %v3008 = vpop.f32.mrb[0].mxu0
        %3009 = vdwg.mxu0
        %3010 = vmatprep.subr.mxu0 0.0
        %3011 = vmatpush1.msra.mxu0 %v2896
        %3012 = vmatprep.subr.mxu0 0.0
        %3013 = vmatpush1.msra.mxu0 %v2897
        %3014 = vmatprep.subr.mxu0 0.0
        %3015 = vmatpush1.msra.mxu0 %v2898
        %3016 = vmatprep.subr.mxu0 0.0
        %3017 = vmatpush1.msra.mxu0 %v2899
        %3018 = vmatprep.subr.mxu0 0.0
        %3019 = vmatpush1.msra.mxu0 0.0
        %3020 = vmatprep.subr.mxu0 0.0
        %3021 = vmatpush1.msra.mxu0 0.0
        %3022 = vmatprep.subr.mxu0 0.0
        %3023 = vmatpush1.msra.mxu0 0.0
        %3024 = vmatprep.subr.mxu0 0.0
        %3025 = vmatpush1.msra.mxu0 0.0
        %3026 = vmatprep.subr.mxu0 0.0
        %3027 = vmatpush1.msra.mxu0 0.0
        %3028 = vmatprep.subr.mxu0 0.0
        %3029 = vmatpush1.msra.mxu0 0.0
        %3030 = vmatprep.subr.mxu0 0.0
        %3031 = vmatpush1.msra.mxu0 0.0
        %3032 = vmatprep.subr.mxu0 0.0
        %3033 = vmatpush1.msra.mxu0 0.0
        %3034 = vmatprep.subr.mxu0 0.0
        %3035 = vmatpush1.msra.mxu0 0.0
        %3036 = vmatprep.subr.mxu0 0.0
        %3037 = vmatpush1.msra.mxu0 0.0
        %3038 = vmatprep.subr.mxu0 0.0
        %3039 = vmatpush1.msra.mxu0 0.0
        %3040 = vmatprep.subr.mxu0 0.0
        %3041 = vmatpush1.msra.mxu0 0.0
        %3042 = vmatprep.subr.mxu0 0.0
        %3043 = vmatpush1.msra.mxu0 0.0
        %3044 = vmatprep.subr.mxu0 0.0
        %3045 = vmatpush1.msra.mxu0 0.0
        %3046 = vmatprep.subr.mxu0 0.0
        %3047 = vmatpush1.msra.mxu0 0.0
        %3048 = vmatprep.subr.mxu0 0.0
        %3049 = vmatpush1.msra.mxu0 0.0
        %3050 = vmatprep.subr.mxu0 0.0
        %3051 = vmatpush1.msra.mxu0 0.0
        %3052 = vmatprep.subr.mxu0 0.0
        %3053 = vmatpush1.msra.mxu0 0.0
        %3054 = vmatprep.subr.mxu0 0.0
        %3055 = vmatpush1.msra.mxu0 0.0
        %3056 = vmatprep.subr.mxu0 0.0
        %3057 = vmatpush1.msra.mxu0 0.0
        %3058 = vmatprep.subr.mxu0 0.0
        %3059 = vmatpush1.msra.mxu0 0.0
        %3060 = vmatprep.subr.mxu0 0.0
        %3061 = vmatpush1.msra.mxu0 0.0
        %3062 = vmatprep.subr.mxu0 0.0
        %3063 = vmatpush1.msra.mxu0 0.0
        %3064 = vmatprep.subr.mxu0 0.0
        %3065 = vmatpush1.msra.mxu0 0.0
        %3066 = vmatprep.subr.mxu0 0.0
        %3067 = vmatpush1.msra.mxu0 0.0
        %3068 = vmatprep.subr.mxu0 0.0
        %3069 = vmatpush1.msra.mxu0 0.0
        %3070 = vmatprep.subr.mxu0 0.0
        %3071 = vmatpush1.msra.mxu0 0.0
        %3072 = vmatprep.subr.mxu0 0.0
        %3073 = vmatpush1.msra.mxu0 0.0
        %3074 = vmatprep.mubr.f32.mxu0 0.0
        %3075 = vmatmul.mubr.f32.gmra.mrb[0].mxu0 %v2938
        %v3076 = vpop.f32.mrb[0].mxu0
        %v3077 = vadd.f32 %v2924, %v3076
        %v3078 = vpop.f32.mrb[0].mxu0
        %3079 = vdwg.mxu0
        %3080 = vmatprep.subr.mxu0 0.0
        %3081 = vmatpush1.msra.mxu0 %v2900
        %3082 = vmatprep.subr.mxu0 0.0
        %3083 = vmatpush1.msra.mxu0 %v2901
        %3084 = vmatprep.subr.mxu0 0.0
        %3085 = vmatpush1.msra.mxu0 %v2902
        %3086 = vmatprep.subr.mxu0 0.0
        %3087 = vmatpush1.msra.mxu0 %v2903
        %3088 = vmatprep.subr.mxu0 0.0
        %3089 = vmatpush1.msra.mxu0 0.0
        %3090 = vmatprep.subr.mxu0 0.0
        %3091 = vmatpush1.msra.mxu0 0.0
        %3092 = vmatprep.subr.mxu0 0.0
        %3093 = vmatpush1.msra.mxu0 0.0
        %3094 = vmatprep.subr.mxu0 0.0
        %3095 = vmatpush1.msra.mxu0 0.0
        %3096 = vmatprep.subr.mxu0 0.0
        %3097 = vmatpush1.msra.mxu0 0.0
        %3098 = vmatprep.subr.mxu0 0.0
        %3099 = vmatpush1.msra.mxu0 0.0
        %3100 = vmatprep.subr.mxu0 0.0
        %3101 = vmatpush1.msra.mxu0 0.0
        %3102 = vmatprep.subr.mxu0 0.0
        %3103 = vmatpush1.msra.mxu0 0.0
        %3104 = vmatprep.subr.mxu0 0.0
        %3105 = vmatpush1.msra.mxu0 0.0
        %3106 = vmatprep.subr.mxu0 0.0
        %3107 = vmatpush1.msra.mxu0 0.0
        %3108 = vmatprep.subr.mxu0 0.0
        %3109 = vmatpush1.msra.mxu0 0.0
        %3110 = vmatprep.subr.mxu0 0.0
        %3111 = vmatpush1.msra.mxu0 0.0
        %3112 = vmatprep.subr.mxu0 0.0
        %3113 = vmatpush1.msra.mxu0 0.0
        %3114 = vmatprep.subr.mxu0 0.0
        %3115 = vmatpush1.msra.mxu0 0.0
        %3116 = vmatprep.subr.mxu0 0.0
        %3117 = vmatpush1.msra.mxu0 0.0
        %3118 = vmatprep.subr.mxu0 0.0
        %3119 = vmatpush1.msra.mxu0 0.0
        %3120 = vmatprep.subr.mxu0 0.0
        %3121 = vmatpush1.msra.mxu0 0.0
        %3122 = vmatprep.subr.mxu0 0.0
        %3123 = vmatpush1.msra.mxu0 0.0
        %3124 = vmatprep.subr.mxu0 0.0
        %3125 = vmatpush1.msra.mxu0 0.0
        %3126 = vmatprep.subr.mxu0 0.0
        %3127 = vmatpush1.msra.mxu0 0.0
        %3128 = vmatprep.subr.mxu0 0.0
        %3129 = vmatpush1.msra.mxu0 0.0
        %3130 = vmatprep.subr.mxu0 0.0
        %3131 = vmatpush1.msra.mxu0 0.0
        %3132 = vmatprep.subr.mxu0 0.0
        %3133 = vmatpush1.msra.mxu0 0.0
        %3134 = vmatprep.subr.mxu0 0.0
        %3135 = vmatpush1.msra.mxu0 0.0
        %3136 = vmatprep.subr.mxu0 0.0
        %3137 = vmatpush1.msra.mxu0 0.0
        %3138 = vmatprep.subr.mxu0 0.0
        %3139 = vmatpush1.msra.mxu0 0.0
        %3140 = vmatprep.subr.mxu0 0.0
        %3141 = vmatpush1.msra.mxu0 0.0
        %3142 = vmatprep.subr.mxu0 0.0
        %3143 = vmatpush1.msra.mxu0 0.0
        %3144 = vmatprep.mubr.f32.mxu0 0.0
        %3145 = vmatmul.mubr.f32.gmra.mrb[0].mxu0 %v2938
        %v3146 = vpop.f32.mrb[0].mxu0
        %v3147 = vadd.f32 %v2928, %v3146
        %v3148 = vpop.f32.mrb[0].mxu0
        %3149 = vdwg.mxu0
        %3150 = vmatprep.subr.mxu0 0.0
        %3151 = vmatpush1.msra.mxu0 %v2904
        %3152 = vmatprep.subr.mxu0 0.0
        %3153 = vmatpush1.msra.mxu0 %v2905
        %3154 = vmatprep.subr.mxu0 0.0
        %3155 = vmatpush1.msra.mxu0 %v2906
        %3156 = vmatprep.subr.mxu0 0.0
        %3157 = vmatpush1.msra.mxu0 %v2907
        %3158 = vmatprep.subr.mxu0 0.0
        %3159 = vmatpush1.msra.mxu0 0.0
        %3160 = vmatprep.subr.mxu0 0.0
        %3161 = vmatpush1.msra.mxu0 0.0
        %3162 = vmatprep.subr.mxu0 0.0
        %3163 = vmatpush1.msra.mxu0 0.0
        %3164 = vmatprep.subr.mxu0 0.0
        %3165 = vmatpush1.msra.mxu0 0.0
        %3166 = vmatprep.subr.mxu0 0.0
        %3167 = vmatpush1.msra.mxu0 0.0
        %3168 = vmatprep.subr.mxu0 0.0
        %3169 = vmatpush1.msra.mxu0 0.0
        %3170 = vmatprep.subr.mxu0 0.0
        %3171 = vmatpush1.msra.mxu0 0.0
        %3172 = vmatprep.subr.mxu0 0.0
        %3173 = vmatpush1.msra.mxu0 0.0
        %3174 = vmatprep.subr.mxu0 0.0
        %3175 = vmatpush1.msra.mxu0 0.0
        %3176 = vmatprep.subr.mxu0 0.0
        %3177 = vmatpush1.msra.mxu0 0.0
        %3178 = vmatprep.subr.mxu0 0.0
        %3179 = vmatpush1.msra.mxu0 0.0
        %3180 = vmatprep.subr.mxu0 0.0
        %3181 = vmatpush1.msra.mxu0 0.0
        %3182 = vmatprep.subr.mxu0 0.0
        %3183 = vmatpush1.msra.mxu0 0.0
        %3184 = vmatprep.subr.mxu0 0.0
        %3185 = vmatpush1.msra.mxu0 0.0
        %3186 = vmatprep.subr.mxu0 0.0
        %3187 = vmatpush1.msra.mxu0 0.0
        %3188 = vmatprep.subr.mxu0 0.0
        %3189 = vmatpush1.msra.mxu0 0.0
        %3190 = vmatprep.subr.mxu0 0.0
        %3191 = vmatpush1.msra.mxu0 0.0
        %3192 = vmatprep.subr.mxu0 0.0
        %3193 = vmatpush1.msra.mxu0 0.0
        %3194 = vmatprep.subr.mxu0 0.0
        %3195 = vmatpush1.msra.mxu0 0.0
        %3196 = vmatprep.subr.mxu0 0.0
        %3197 = vmatpush1.msra.mxu0 0.0
        %3198 = vmatprep.subr.mxu0 0.0
        %3199 = vmatpush1.msra.mxu0 0.0
        %3200 = vmatprep.subr.mxu0 0.0
        %3201 = vmatpush1.msra.mxu0 0.0
        %3202 = vmatprep.subr.mxu0 0.0
        %3203 = vmatpush1.msra.mxu0 0.0
        %3204 = vmatprep.subr.mxu0 0.0
        %3205 = vmatpush1.msra.mxu0 0.0
        %3206 = vmatprep.subr.mxu0 0.0
        %3207 = vmatpush1.msra.mxu0 0.0
        %3208 = vmatprep.subr.mxu0 0.0
        %3209 = vmatpush1.msra.mxu0 0.0
        %3210 = vmatprep.subr.mxu0 0.0
        %3211 = vmatpush1.msra.mxu0 0.0
        %3212 = vmatprep.subr.mxu0 0.0
        %3213 = vmatpush1.msra.mxu0 0.0
        %3214 = vmatprep.mubr.f32.mxu0 0.0
        %3215 = vmatmul.mubr.f32.gmra.mrb[0].mxu0 %v2938
        %v3216 = vpop.f32.mrb[0].mxu0
        %v3217 = vadd.f32 %v2932, %v3216
        %v3218 = vpop.f32.mrb[0].mxu0
        %3219 = vdwg.mxu0
        %s3220 = scalar_lea.vmem [#allocation11], 640
        %v3221 = vld [vmem:[%s3220] sm:$0xff]
        %v3222 = vld [vmem:[%s3220 + $0x8] sm:$0xff]
        %v3223 = vld [vmem:[%s3220 + $0x10] sm:$0xff]
        %v3224 = vld [vmem:[%s3220 + $0x18] sm:$0xff]
        %v3225 = vld [vmem:[%s3220 + $0x20] sm:$0xff]
        %v3226 = vld [vmem:[%s3220 + $0x28] sm:$0xff]
        %v3227 = vld [vmem:[%s3220 + $0x30] sm:$0xff]
        %v3228 = vld [vmem:[%s3220 + $0x38] sm:$0xff]
        %v3229 = vld [vmem:[%s3220 + $0x40] sm:$0xff]
        %v3230 = vld [vmem:[%s3220 + $0x48] sm:$0xff]
        %v3231 = vld [vmem:[%s3220 + $0x50] sm:$0xff]
        %v3232 = vld [vmem:[%s3220 + $0x58] sm:$0xff]
        %v3233 = vld [vmem:[%s3220 + $0x60] sm:$0xff]
        %v3234 = vld [vmem:[%s3220 + $0x68] sm:$0xff]
        %v3235 = vld [vmem:[%s3220 + $0x70] sm:$0xff]
        %v3236 = vld [vmem:[%s3220 + $0x78] sm:$0xff]
        %s3237 = scalar_lea.vmem [#allocation13], 20
        %v3238 = vld [vmem:[%s3237] sm:$0x1]
        %v3239 = vld [vmem:[%s3237 + $0x1] sm:$0x1]
        %v3240 = vld [vmem:[%s3237 + $0x2] sm:$0x1]
        %v3241 = vld [vmem:[%s3237 + $0x3] sm:$0x1]
        %v3246 = vlaneseq
        %v3247 = vshrl.u32 %v3246, 7
        %v3248 = vsub.s32 0, %v3247
        %v3249 = vrot.slane %v3238, %v3248
        %v3250 = vlaneseq
        %v3251 = vshrl.u32 %v3250, 7
        %v3252 = vsub.s32 0, %v3251
        %v3253 = vrot.slane %v3239, %v3252
        %v3254 = vlaneseq
        %v3255 = vshrl.u32 %v3254, 7
        %v3256 = vsub.s32 0, %v3255
        %v3257 = vrot.slane %v3240, %v3256
        %v3258 = vlaneseq
        %v3259 = vshrl.u32 %v3258, 7
        %v3260 = vsub.s32 0, %v3259
        %v3261 = vrot.slane %v3241, %v3260
        %3266 = vmatprep.subr.mxu0 0.0
        %3267 = vmatpush1.msra.mxu0 %v3221
        %3268 = vmatprep.subr.mxu0 0.0
        %3269 = vmatpush1.msra.mxu0 %v3222
        %3270 = vmatprep.subr.mxu0 0.0
        %3271 = vmatpush1.msra.mxu0 %v3223
        %3272 = vmatprep.subr.mxu0 0.0
        %3273 = vmatpush1.msra.mxu0 %v3224
        %3274 = vmatprep.subr.mxu0 0.0
        %3275 = vmatpush1.msra.mxu0 0.0
        %3276 = vmatprep.subr.mxu0 0.0
        %3277 = vmatpush1.msra.mxu0 0.0
        %3278 = vmatprep.subr.mxu0 0.0
        %3279 = vmatpush1.msra.mxu0 0.0
        %3280 = vmatprep.subr.mxu0 0.0
        %3281 = vmatpush1.msra.mxu0 0.0
        %3282 = vmatprep.subr.mxu0 0.0
        %3283 = vmatpush1.msra.mxu0 0.0
        %3284 = vmatprep.subr.mxu0 0.0
        %3285 = vmatpush1.msra.mxu0 0.0
        %3286 = vmatprep.subr.mxu0 0.0
        %3287 = vmatpush1.msra.mxu0 0.0
        %3288 = vmatprep.subr.mxu0 0.0
        %3289 = vmatpush1.msra.mxu0 0.0
        %3290 = vmatprep.subr.mxu0 0.0
        %3291 = vmatpush1.msra.mxu0 0.0
        %3292 = vmatprep.subr.mxu0 0.0
        %3293 = vmatpush1.msra.mxu0 0.0
        %3294 = vmatprep.subr.mxu0 0.0
        %3295 = vmatpush1.msra.mxu0 0.0
        %3296 = vmatprep.subr.mxu0 0.0
        %3297 = vmatpush1.msra.mxu0 0.0
        %3298 = vmatprep.subr.mxu0 0.0
        %3299 = vmatpush1.msra.mxu0 0.0
        %3300 = vmatprep.subr.mxu0 0.0
        %3301 = vmatpush1.msra.mxu0 0.0
        %3302 = vmatprep.subr.mxu0 0.0
        %3303 = vmatpush1.msra.mxu0 0.0
        %3304 = vmatprep.subr.mxu0 0.0
        %3305 = vmatpush1.msra.mxu0 0.0
        %3306 = vmatprep.subr.mxu0 0.0
        %3307 = vmatpush1.msra.mxu0 0.0
        %3308 = vmatprep.subr.mxu0 0.0
        %3309 = vmatpush1.msra.mxu0 0.0
        %3310 = vmatprep.subr.mxu0 0.0
        %3311 = vmatpush1.msra.mxu0 0.0
        %3312 = vmatprep.subr.mxu0 0.0
        %3313 = vmatpush1.msra.mxu0 0.0
        %3314 = vmatprep.subr.mxu0 0.0
        %3315 = vmatpush1.msra.mxu0 0.0
        %3316 = vmatprep.subr.mxu0 0.0
        %3317 = vmatpush1.msra.mxu0 0.0
        %3318 = vmatprep.subr.mxu0 0.0
        %3319 = vmatpush1.msra.mxu0 0.0
        %3320 = vmatprep.subr.mxu0 0.0
        %3321 = vmatpush1.msra.mxu0 0.0
        %3322 = vmatprep.subr.mxu0 0.0
        %3323 = vmatpush1.msra.mxu0 0.0
        %3324 = vmatprep.subr.mxu0 0.0
        %3325 = vmatpush1.msra.mxu0 0.0
        %3326 = vmatprep.subr.mxu0 0.0
        %3327 = vmatpush1.msra.mxu0 0.0
        %3328 = vmatprep.subr.mxu0 0.0
        %3329 = vmatpush1.msra.mxu0 0.0
        %3330 = vmatprep.mubr.f32.mxu0 0.0
        %3331 = vmatmul.mubr.f32.gmra.mrb[0].mxu0 %v2938
        %v3332 = vpop.f32.mrb[0].mxu0
        %v3333 = vadd.f32 %v3249, %v3332
        %v3334 = vpop.f32.mrb[0].mxu0
        %3335 = vdwg.mxu0
        %3336 = vmatprep.subr.mxu0 0.0
        %3337 = vmatpush1.msra.mxu0 %v3225
        %3338 = vmatprep.subr.mxu0 0.0
        %3339 = vmatpush1.msra.mxu0 %v3226
        %3340 = vmatprep.subr.mxu0 0.0
        %3341 = vmatpush1.msra.mxu0 %v3227
        %3342 = vmatprep.subr.mxu0 0.0
        %3343 = vmatpush1.msra.mxu0 %v3228
        %3344 = vmatprep.subr.mxu0 0.0
        %3345 = vmatpush1.msra.mxu0 0.0
        %3346 = vmatprep.subr.mxu0 0.0
        %3347 = vmatpush1.msra.mxu0 0.0
        %3348 = vmatprep.subr.mxu0 0.0
        %3349 = vmatpush1.msra.mxu0 0.0
        %3350 = vmatprep.subr.mxu0 0.0
        %3351 = vmatpush1.msra.mxu0 0.0
        %3352 = vmatprep.subr.mxu0 0.0
        %3353 = vmatpush1.msra.mxu0 0.0
        %3354 = vmatprep.subr.mxu0 0.0
        %3355 = vmatpush1.msra.mxu0 0.0
        %3356 = vmatprep.subr.mxu0 0.0
        %3357 = vmatpush1.msra.mxu0 0.0
        %3358 = vmatprep.subr.mxu0 0.0
        %3359 = vmatpush1.msra.mxu0 0.0
        %3360 = vmatprep.subr.mxu0 0.0
        %3361 = vmatpush1.msra.mxu0 0.0
        %3362 = vmatprep.subr.mxu0 0.0
        %3363 = vmatpush1.msra.mxu0 0.0
        %3364 = vmatprep.subr.mxu0 0.0
        %3365 = vmatpush1.msra.mxu0 0.0
        %3366 = vmatprep.subr.mxu0 0.0
        %3367 = vmatpush1.msra.mxu0 0.0
        %3368 = vmatprep.subr.mxu0 0.0
        %3369 = vmatpush1.msra.mxu0 0.0
        %3370 = vmatprep.subr.mxu0 0.0
        %3371 = vmatpush1.msra.mxu0 0.0
        %3372 = vmatprep.subr.mxu0 0.0
        %3373 = vmatpush1.msra.mxu0 0.0
        %3374 = vmatprep.subr.mxu0 0.0
        %3375 = vmatpush1.msra.mxu0 0.0
        %3376 = vmatprep.subr.mxu0 0.0
        %3377 = vmatpush1.msra.mxu0 0.0
        %3378 = vmatprep.subr.mxu0 0.0
        %3379 = vmatpush1.msra.mxu0 0.0
        %3380 = vmatprep.subr.mxu0 0.0
        %3381 = vmatpush1.msra.mxu0 0.0
        %3382 = vmatprep.subr.mxu0 0.0
        %3383 = vmatpush1.msra.mxu0 0.0
        %3384 = vmatprep.subr.mxu0 0.0
        %3385 = vmatpush1.msra.mxu0 0.0
        %3386 = vmatprep.subr.mxu0 0.0
        %3387 = vmatpush1.msra.mxu0 0.0
        %3388 = vmatprep.subr.mxu0 0.0
        %3389 = vmatpush1.msra.mxu0 0.0
        %3390 = vmatprep.subr.mxu0 0.0
        %3391 = vmatpush1.msra.mxu0 0.0
        %3392 = vmatprep.subr.mxu0 0.0
        %3393 = vmatpush1.msra.mxu0 0.0
        %3394 = vmatprep.subr.mxu0 0.0
        %3395 = vmatpush1.msra.mxu0 0.0
        %3396 = vmatprep.subr.mxu0 0.0
        %3397 = vmatpush1.msra.mxu0 0.0
        %3398 = vmatprep.subr.mxu0 0.0
        %3399 = vmatpush1.msra.mxu0 0.0
        %3400 = vmatprep.mubr.f32.mxu0 0.0
        %3401 = vmatmul.mubr.f32.gmra.mrb[0].mxu0 %v2938
        %v3402 = vpop.f32.mrb[0].mxu0
        %v3403 = vadd.f32 %v3253, %v3402
        %v3404 = vpop.f32.mrb[0].mxu0
        %3405 = vdwg.mxu0
        %3406 = vmatprep.subr.mxu0 0.0
        %3407 = vmatpush1.msra.mxu0 %v3229
        %3408 = vmatprep.subr.mxu0 0.0
        %3409 = vmatpush1.msra.mxu0 %v3230
        %3410 = vmatprep.subr.mxu0 0.0
        %3411 = vmatpush1.msra.mxu0 %v3231
        %3412 = vmatprep.subr.mxu0 0.0
        %3413 = vmatpush1.msra.mxu0 %v3232
        %3414 = vmatprep.subr.mxu0 0.0
        %3415 = vmatpush1.msra.mxu0 0.0
        %3416 = vmatprep.subr.mxu0 0.0
        %3417 = vmatpush1.msra.mxu0 0.0
        %3418 = vmatprep.subr.mxu0 0.0
        %3419 = vmatpush1.msra.mxu0 0.0
        %3420 = vmatprep.subr.mxu0 0.0
        %3421 = vmatpush1.msra.mxu0 0.0
        %3422 = vmatprep.subr.mxu0 0.0
        %3423 = vmatpush1.msra.mxu0 0.0
        %3424 = vmatprep.subr.mxu0 0.0
        %3425 = vmatpush1.msra.mxu0 0.0
        %3426 = vmatprep.subr.mxu0 0.0
        %3427 = vmatpush1.msra.mxu0 0.0
        %3428 = vmatprep.subr.mxu0 0.0
        %3429 = vmatpush1.msra.mxu0 0.0
        %3430 = vmatprep.subr.mxu0 0.0
        %3431 = vmatpush1.msra.mxu0 0.0
        %3432 = vmatprep.subr.mxu0 0.0
        %3433 = vmatpush1.msra.mxu0 0.0
        %3434 = vmatprep.subr.mxu0 0.0
        %3435 = vmatpush1.msra.mxu0 0.0
        %3436 = vmatprep.subr.mxu0 0.0
        %3437 = vmatpush1.msra.mxu0 0.0
        %3438 = vmatprep.subr.mxu0 0.0
        %3439 = vmatpush1.msra.mxu0 0.0
        %3440 = vmatprep.subr.mxu0 0.0
        %3441 = vmatpush1.msra.mxu0 0.0
        %3442 = vmatprep.subr.mxu0 0.0
        %3443 = vmatpush1.msra.mxu0 0.0
        %3444 = vmatprep.subr.mxu0 0.0
        %3445 = vmatpush1.msra.mxu0 0.0
        %3446 = vmatprep.subr.mxu0 0.0
        %3447 = vmatpush1.msra.mxu0 0.0
        %3448 = vmatprep.subr.mxu0 0.0
        %3449 = vmatpush1.msra.mxu0 0.0
        %3450 = vmatprep.subr.mxu0 0.0
        %3451 = vmatpush1.msra.mxu0 0.0
        %3452 = vmatprep.subr.mxu0 0.0
        %3453 = vmatpush1.msra.mxu0 0.0
        %3454 = vmatprep.subr.mxu0 0.0
        %3455 = vmatpush1.msra.mxu0 0.0
        %3456 = vmatprep.subr.mxu0 0.0
        %3457 = vmatpush1.msra.mxu0 0.0
        %3458 = vmatprep.subr.mxu0 0.0
        %3459 = vmatpush1.msra.mxu0 0.0
        %3460 = vmatprep.subr.mxu0 0.0
        %3461 = vmatpush1.msra.mxu0 0.0
        %3462 = vmatprep.subr.mxu0 0.0
        %3463 = vmatpush1.msra.mxu0 0.0
        %3464 = vmatprep.subr.mxu0 0.0
        %3465 = vmatpush1.msra.mxu0 0.0
        %3466 = vmatprep.subr.mxu0 0.0
        %3467 = vmatpush1.msra.mxu0 0.0
        %3468 = vmatprep.subr.mxu0 0.0
        %3469 = vmatpush1.msra.mxu0 0.0
        %3470 = vmatprep.mubr.f32.mxu0 0.0
        %3471 = vmatmul.mubr.f32.gmra.mrb[0].mxu0 %v2938
        %v3472 = vpop.f32.mrb[0].mxu0
        %v3473 = vadd.f32 %v3257, %v3472
        %v3474 = vpop.f32.mrb[0].mxu0
        %3475 = vdwg.mxu0
        %3476 = vmatprep.subr.mxu0 0.0
        %3477 = vmatpush1.msra.mxu0 %v3233
        %3478 = vmatprep.subr.mxu0 0.0
        %3479 = vmatpush1.msra.mxu0 %v3234
        %3480 = vmatprep.subr.mxu0 0.0
        %3481 = vmatpush1.msra.mxu0 %v3235
        %3482 = vmatprep.subr.mxu0 0.0
        %3483 = vmatpush1.msra.mxu0 %v3236
        %3484 = vmatprep.subr.mxu0 0.0
        %3485 = vmatpush1.msra.mxu0 0.0
        %3486 = vmatprep.subr.mxu0 0.0
        %3487 = vmatpush1.msra.mxu0 0.0
        %3488 = vmatprep.subr.mxu0 0.0
        %3489 = vmatpush1.msra.mxu0 0.0
        %3490 = vmatprep.subr.mxu0 0.0
        %3491 = vmatpush1.msra.mxu0 0.0
        %3492 = vmatprep.subr.mxu0 0.0
        %3493 = vmatpush1.msra.mxu0 0.0
        %3494 = vmatprep.subr.mxu0 0.0
        %3495 = vmatpush1.msra.mxu0 0.0
        %3496 = vmatprep.subr.mxu0 0.0
        %3497 = vmatpush1.msra.mxu0 0.0
        %3498 = vmatprep.subr.mxu0 0.0
        %3499 = vmatpush1.msra.mxu0 0.0
        %3500 = vmatprep.subr.mxu0 0.0
        %3501 = vmatpush1.msra.mxu0 0.0
        %3502 = vmatprep.subr.mxu0 0.0
        %3503 = vmatpush1.msra.mxu0 0.0
        %3504 = vmatprep.subr.mxu0 0.0
        %3505 = vmatpush1.msra.mxu0 0.0
        %3506 = vmatprep.subr.mxu0 0.0
        %3507 = vmatpush1.msra.mxu0 0.0
        %3508 = vmatprep.subr.mxu0 0.0
        %3509 = vmatpush1.msra.mxu0 0.0
        %3510 = vmatprep.subr.mxu0 0.0
        %3511 = vmatpush1.msra.mxu0 0.0
        %3512 = vmatprep.subr.mxu0 0.0
        %3513 = vmatpush1.msra.mxu0 0.0
        %3514 = vmatprep.subr.mxu0 0.0
        %3515 = vmatpush1.msra.mxu0 0.0
        %3516 = vmatprep.subr.mxu0 0.0
        %3517 = vmatpush1.msra.mxu0 0.0
        %3518 = vmatprep.subr.mxu0 0.0
        %3519 = vmatpush1.msra.mxu0 0.0
        %3520 = vmatprep.subr.mxu0 0.0
        %3521 = vmatpush1.msra.mxu0 0.0
        %3522 = vmatprep.subr.mxu0 0.0
        %3523 = vmatpush1.msra.mxu0 0.0
        %3524 = vmatprep.subr.mxu0 0.0
        %3525 = vmatpush1.msra.mxu0 0.0
        %3526 = vmatprep.subr.mxu0 0.0
        %3527 = vmatpush1.msra.mxu0 0.0
        %3528 = vmatprep.subr.mxu0 0.0
        %3529 = vmatpush1.msra.mxu0 0.0
        %3530 = vmatprep.subr.mxu0 0.0
        %3531 = vmatpush1.msra.mxu0 0.0
        %3532 = vmatprep.subr.mxu0 0.0
        %3533 = vmatpush1.msra.mxu0 0.0
        %3534 = vmatprep.subr.mxu0 0.0
        %3535 = vmatpush1.msra.mxu0 0.0
        %3536 = vmatprep.subr.mxu0 0.0
        %3537 = vmatpush1.msra.mxu0 0.0
        %3538 = vmatprep.subr.mxu0 0.0
        %3539 = vmatpush1.msra.mxu0 0.0
        %3540 = vmatprep.mubr.f32.mxu0 0.0
        %3541 = vmatmul.mubr.f32.gmra.mrb[0].mxu0 %v2938
        %v3542 = vpop.f32.mrb[0].mxu0
        %v3543 = vadd.f32 %v3261, %v3542
        %v3544 = vpop.f32.mrb[0].mxu0
        %3545 = vdwg.mxu0
        %v3547 = vsel %vm1581, %v2678, 0
        %v3550 = vsel %vm1581, %v3007, 0
        %3552 = vmatprep.subr.mxu0 0.0
        %3553 = vmatpush1.xpose.msra.mxu0 %v3550
        %3554 = vmatprep.subr.mxu0 0.0
        %3555 = vmatpush1.xpose.msra.mxu0 0.0
        %3556 = vmatprep.subr.mxu0 0.0
        %3557 = vmatpush1.xpose.msra.mxu0 0.0
        %3558 = vmatprep.subr.mxu0 0.0
        %3559 = vmatpush1.xpose.msra.mxu0 0.0
        %3560 = vmatprep.subr.mxu0 0.0
        %3561 = vmatpush1.xpose.msra.mxu0 0.0
        %3562 = vmatprep.subr.mxu0 0.0
        %3563 = vmatpush1.xpose.msra.mxu0 0.0
        %3564 = vmatprep.subr.mxu0 0.0
        %3565 = vmatpush1.xpose.msra.mxu0 0.0
        %3566 = vmatprep.subr.mxu0 0.0
        %3567 = vmatpush1.xpose.msra.mxu0 0.0
        %3568 = vmatprep.subr.mxu0 0.0
        %3569 = vmatpush1.xpose.msra.mxu0 0.0
        %3570 = vmatprep.subr.mxu0 0.0
        %3571 = vmatpush1.xpose.msra.mxu0 0.0
        %3572 = vmatprep.subr.mxu0 0.0
        %3573 = vmatpush1.xpose.msra.mxu0 0.0
        %3574 = vmatprep.subr.mxu0 0.0
        %3575 = vmatpush1.xpose.msra.mxu0 0.0
        %3576 = vmatprep.subr.mxu0 0.0
        %3577 = vmatpush1.xpose.msra.mxu0 0.0
        %3578 = vmatprep.subr.mxu0 0.0
        %3579 = vmatpush1.xpose.msra.mxu0 0.0
        %3580 = vmatprep.subr.mxu0 0.0
        %3581 = vmatpush1.xpose.msra.mxu0 0.0
        %3582 = vmatprep.subr.mxu0 0.0
        %3583 = vmatpush1.xpose.msra.mxu0 0.0
        %3584 = vmatprep.subr.mxu0 0.0
        %3585 = vmatpush1.xpose.msra.mxu0 0.0
        %3586 = vmatprep.subr.mxu0 0.0
        %3587 = vmatpush1.xpose.msra.mxu0 0.0
        %3588 = vmatprep.subr.mxu0 0.0
        %3589 = vmatpush1.xpose.msra.mxu0 0.0
        %3590 = vmatprep.subr.mxu0 0.0
        %3591 = vmatpush1.xpose.msra.mxu0 0.0
        %3592 = vmatprep.subr.mxu0 0.0
        %3593 = vmatpush1.xpose.msra.mxu0 0.0
        %3594 = vmatprep.subr.mxu0 0.0
        %3595 = vmatpush1.xpose.msra.mxu0 0.0
        %3596 = vmatprep.subr.mxu0 0.0
        %3597 = vmatpush1.xpose.msra.mxu0 0.0
        %3598 = vmatprep.subr.mxu0 0.0
        %3599 = vmatpush1.xpose.msra.mxu0 0.0
        %3600 = vmatprep.subr.mxu0 0.0
        %3601 = vmatpush1.xpose.msra.mxu0 0.0
        %3602 = vmatprep.subr.mxu0 0.0
        %3603 = vmatpush1.xpose.msra.mxu0 0.0
        %3604 = vmatprep.subr.mxu0 0.0
        %3605 = vmatpush1.xpose.msra.mxu0 0.0
        %3606 = vmatprep.subr.mxu0 0.0
        %3607 = vmatpush1.xpose.msra.mxu0 0.0
        %3608 = vmatprep.subr.mxu0 0.0
        %3609 = vmatpush1.xpose.msra.mxu0 0.0
        %3610 = vmatprep.subr.mxu0 0.0
        %3611 = vmatpush1.xpose.msra.mxu0 0.0
        %3612 = vmatprep.subr.mxu0 0.0
        %3613 = vmatpush1.xpose.msra.mxu0 0.0
        %3614 = vmatprep.subr.mxu0 0.0
        %3615 = vmatpush1.xpose.msra.mxu0 0.0
        %3616 = vmatprep.mubr.f32.mxu0 0.0
        %3617 = vmatmul.mubr.f32.gmra.mrb[0].mxu0 %v3547
        %v3618 = vpop.f32.mrb[0].mxu0
        %v3619 = vadd.f32 %v568, %v3618
        %v3620 = vpop.f32.mrb[0].mxu0
        %3621 = vdwg.mxu0
        %v3623 = vsel %vm1581, %v2748, 0
        %v3626 = vsel %vm1581, %v3077, 0
        %3628 = vmatprep.subr.mxu0 0.0
        %3629 = vmatpush1.xpose.msra.mxu0 %v3626
        %3630 = vmatprep.subr.mxu0 0.0
        %3631 = vmatpush1.xpose.msra.mxu0 0.0
        %3632 = vmatprep.subr.mxu0 0.0
        %3633 = vmatpush1.xpose.msra.mxu0 0.0
        %3634 = vmatprep.subr.mxu0 0.0
        %3635 = vmatpush1.xpose.msra.mxu0 0.0
        %3636 = vmatprep.subr.mxu0 0.0
        %3637 = vmatpush1.xpose.msra.mxu0 0.0
        %3638 = vmatprep.subr.mxu0 0.0
        %3639 = vmatpush1.xpose.msra.mxu0 0.0
        %3640 = vmatprep.subr.mxu0 0.0
        %3641 = vmatpush1.xpose.msra.mxu0 0.0
        %3642 = vmatprep.subr.mxu0 0.0
        %3643 = vmatpush1.xpose.msra.mxu0 0.0
        %3644 = vmatprep.subr.mxu0 0.0
        %3645 = vmatpush1.xpose.msra.mxu0 0.0
        %3646 = vmatprep.subr.mxu0 0.0
        %3647 = vmatpush1.xpose.msra.mxu0 0.0
        %3648 = vmatprep.subr.mxu0 0.0
        %3649 = vmatpush1.xpose.msra.mxu0 0.0
        %3650 = vmatprep.subr.mxu0 0.0
        %3651 = vmatpush1.xpose.msra.mxu0 0.0
        %3652 = vmatprep.subr.mxu0 0.0
        %3653 = vmatpush1.xpose.msra.mxu0 0.0
        %3654 = vmatprep.subr.mxu0 0.0
        %3655 = vmatpush1.xpose.msra.mxu0 0.0
        %3656 = vmatprep.subr.mxu0 0.0
        %3657 = vmatpush1.xpose.msra.mxu0 0.0
        %3658 = vmatprep.subr.mxu0 0.0
        %3659 = vmatpush1.xpose.msra.mxu0 0.0
        %3660 = vmatprep.subr.mxu0 0.0
        %3661 = vmatpush1.xpose.msra.mxu0 0.0
        %3662 = vmatprep.subr.mxu0 0.0
        %3663 = vmatpush1.xpose.msra.mxu0 0.0
        %3664 = vmatprep.subr.mxu0 0.0
        %3665 = vmatpush1.xpose.msra.mxu0 0.0
        %3666 = vmatprep.subr.mxu0 0.0
        %3667 = vmatpush1.xpose.msra.mxu0 0.0
        %3668 = vmatprep.subr.mxu0 0.0
        %3669 = vmatpush1.xpose.msra.mxu0 0.0
        %3670 = vmatprep.subr.mxu0 0.0
        %3671 = vmatpush1.xpose.msra.mxu0 0.0
        %3672 = vmatprep.subr.mxu0 0.0
        %3673 = vmatpush1.xpose.msra.mxu0 0.0
        %3674 = vmatprep.subr.mxu0 0.0
        %3675 = vmatpush1.xpose.msra.mxu0 0.0
        %3676 = vmatprep.subr.mxu0 0.0
        %3677 = vmatpush1.xpose.msra.mxu0 0.0
        %3678 = vmatprep.subr.mxu0 0.0
        %3679 = vmatpush1.xpose.msra.mxu0 0.0
        %3680 = vmatprep.subr.mxu0 0.0
        %3681 = vmatpush1.xpose.msra.mxu0 0.0
        %3682 = vmatprep.subr.mxu0 0.0
        %3683 = vmatpush1.xpose.msra.mxu0 0.0
        %3684 = vmatprep.subr.mxu0 0.0
        %3685 = vmatpush1.xpose.msra.mxu0 0.0
        %3686 = vmatprep.subr.mxu0 0.0
        %3687 = vmatpush1.xpose.msra.mxu0 0.0
        %3688 = vmatprep.subr.mxu0 0.0
        %3689 = vmatpush1.xpose.msra.mxu0 0.0
        %3690 = vmatprep.subr.mxu0 0.0
        %3691 = vmatpush1.xpose.msra.mxu0 0.0
        %3692 = vmatprep.mubr.f32.mxu0 0.0
        %3693 = vmatmul.mubr.f32.gmra.mrb[0].mxu0 %v3623
        %v3694 = vpop.f32.mrb[0].mxu0
        %v3695 = vadd.f32 %v568, %v3694
        %v3696 = vpop.f32.mrb[0].mxu0
        %3697 = vdwg.mxu0
        %v3699 = vsel %vm1581, %v2818, 0
        %v3702 = vsel %vm1581, %v3147, 0
        %3704 = vmatprep.subr.mxu0 0.0
        %3705 = vmatpush1.xpose.msra.mxu0 %v3702
        %3706 = vmatprep.subr.mxu0 0.0
        %3707 = vmatpush1.xpose.msra.mxu0 0.0
        %3708 = vmatprep.subr.mxu0 0.0
        %3709 = vmatpush1.xpose.msra.mxu0 0.0
        %3710 = vmatprep.subr.mxu0 0.0
        %3711 = vmatpush1.xpose.msra.mxu0 0.0
        %3712 = vmatprep.subr.mxu0 0.0
        %3713 = vmatpush1.xpose.msra.mxu0 0.0
        %3714 = vmatprep.subr.mxu0 0.0
        %3715 = vmatpush1.xpose.msra.mxu0 0.0
        %3716 = vmatprep.subr.mxu0 0.0
        %3717 = vmatpush1.xpose.msra.mxu0 0.0
        %3718 = vmatprep.subr.mxu0 0.0
        %3719 = vmatpush1.xpose.msra.mxu0 0.0
        %3720 = vmatprep.subr.mxu0 0.0
        %3721 = vmatpush1.xpose.msra.mxu0 0.0
        %3722 = vmatprep.subr.mxu0 0.0
        %3723 = vmatpush1.xpose.msra.mxu0 0.0
        %3724 = vmatprep.subr.mxu0 0.0
        %3725 = vmatpush1.xpose.msra.mxu0 0.0
        %3726 = vmatprep.subr.mxu0 0.0
        %3727 = vmatpush1.xpose.msra.mxu0 0.0
        %3728 = vmatprep.subr.mxu0 0.0
        %3729 = vmatpush1.xpose.msra.mxu0 0.0
        %3730 = vmatprep.subr.mxu0 0.0
        %3731 = vmatpush1.xpose.msra.mxu0 0.0
        %3732 = vmatprep.subr.mxu0 0.0
        %3733 = vmatpush1.xpose.msra.mxu0 0.0
        %3734 = vmatprep.subr.mxu0 0.0
        %3735 = vmatpush1.xpose.msra.mxu0 0.0
        %3736 = vmatprep.subr.mxu0 0.0
        %3737 = vmatpush1.xpose.msra.mxu0 0.0
        %3738 = vmatprep.subr.mxu0 0.0
        %3739 = vmatpush1.xpose.msra.mxu0 0.0
        %3740 = vmatprep.subr.mxu0 0.0
        %3741 = vmatpush1.xpose.msra.mxu0 0.0
        %3742 = vmatprep.subr.mxu0 0.0
        %3743 = vmatpush1.xpose.msra.mxu0 0.0
        %3744 = vmatprep.subr.mxu0 0.0
        %3745 = vmatpush1.xpose.msra.mxu0 0.0
        %3746 = vmatprep.subr.mxu0 0.0
        %3747 = vmatpush1.xpose.msra.mxu0 0.0
        %3748 = vmatprep.subr.mxu0 0.0
        %3749 = vmatpush1.xpose.msra.mxu0 0.0
        %3750 = vmatprep.subr.mxu0 0.0
        %3751 = vmatpush1.xpose.msra.mxu0 0.0
        %3752 = vmatprep.subr.mxu0 0.0
        %3753 = vmatpush1.xpose.msra.mxu0 0.0
        %3754 = vmatprep.subr.mxu0 0.0
        %3755 = vmatpush1.xpose.msra.mxu0 0.0
        %3756 = vmatprep.subr.mxu0 0.0
        %3757 = vmatpush1.xpose.msra.mxu0 0.0
        %3758 = vmatprep.subr.mxu0 0.0
        %3759 = vmatpush1.xpose.msra.mxu0 0.0
        %3760 = vmatprep.subr.mxu0 0.0
        %3761 = vmatpush1.xpose.msra.mxu0 0.0
        %3762 = vmatprep.subr.mxu0 0.0
        %3763 = vmatpush1.xpose.msra.mxu0 0.0
        %3764 = vmatprep.subr.mxu0 0.0
        %3765 = vmatpush1.xpose.msra.mxu0 0.0
        %3766 = vmatprep.subr.mxu0 0.0
        %3767 = vmatpush1.xpose.msra.mxu0 0.0
        %3768 = vmatprep.mubr.f32.mxu0 0.0
        %3769 = vmatmul.mubr.f32.gmra.mrb[0].mxu0 %v3699
        %v3770 = vpop.f32.mrb[0].mxu0
        %v3771 = vadd.f32 %v568, %v3770
        %v3772 = vpop.f32.mrb[0].mxu0
        %3773 = vdwg.mxu0
        %v3775 = vsel %vm1581, %v2888, 0
        %v3778 = vsel %vm1581, %v3217, 0
        %3780 = vmatprep.subr.mxu0 0.0
        %3781 = vmatpush1.xpose.msra.mxu0 %v3778
        %3782 = vmatprep.subr.mxu0 0.0
        %3783 = vmatpush1.xpose.msra.mxu0 0.0
        %3784 = vmatprep.subr.mxu0 0.0
        %3785 = vmatpush1.xpose.msra.mxu0 0.0
        %3786 = vmatprep.subr.mxu0 0.0
        %3787 = vmatpush1.xpose.msra.mxu0 0.0
        %3788 = vmatprep.subr.mxu0 0.0
        %3789 = vmatpush1.xpose.msra.mxu0 0.0
        %3790 = vmatprep.subr.mxu0 0.0
        %3791 = vmatpush1.xpose.msra.mxu0 0.0
        %3792 = vmatprep.subr.mxu0 0.0
        %3793 = vmatpush1.xpose.msra.mxu0 0.0
        %3794 = vmatprep.subr.mxu0 0.0
        %3795 = vmatpush1.xpose.msra.mxu0 0.0
        %3796 = vmatprep.subr.mxu0 0.0
        %3797 = vmatpush1.xpose.msra.mxu0 0.0
        %3798 = vmatprep.subr.mxu0 0.0
        %3799 = vmatpush1.xpose.msra.mxu0 0.0
        %3800 = vmatprep.subr.mxu0 0.0
        %3801 = vmatpush1.xpose.msra.mxu0 0.0
        %3802 = vmatprep.subr.mxu0 0.0
        %3803 = vmatpush1.xpose.msra.mxu0 0.0
        %3804 = vmatprep.subr.mxu0 0.0
        %3805 = vmatpush1.xpose.msra.mxu0 0.0
        %3806 = vmatprep.subr.mxu0 0.0
        %3807 = vmatpush1.xpose.msra.mxu0 0.0
        %3808 = vmatprep.subr.mxu0 0.0
        %3809 = vmatpush1.xpose.msra.mxu0 0.0
        %3810 = vmatprep.subr.mxu0 0.0
        %3811 = vmatpush1.xpose.msra.mxu0 0.0
        %3812 = vmatprep.subr.mxu0 0.0
        %3813 = vmatpush1.xpose.msra.mxu0 0.0
        %3814 = vmatprep.subr.mxu0 0.0
        %3815 = vmatpush1.xpose.msra.mxu0 0.0
        %3816 = vmatprep.subr.mxu0 0.0
        %3817 = vmatpush1.xpose.msra.mxu0 0.0
        %3818 = vmatprep.subr.mxu0 0.0
        %3819 = vmatpush1.xpose.msra.mxu0 0.0
        %3820 = vmatprep.subr.mxu0 0.0
        %3821 = vmatpush1.xpose.msra.mxu0 0.0
        %3822 = vmatprep.subr.mxu0 0.0
        %3823 = vmatpush1.xpose.msra.mxu0 0.0
        %3824 = vmatprep.subr.mxu0 0.0
        %3825 = vmatpush1.xpose.msra.mxu0 0.0
        %3826 = vmatprep.subr.mxu0 0.0
        %3827 = vmatpush1.xpose.msra.mxu0 0.0
        %3828 = vmatprep.subr.mxu0 0.0
        %3829 = vmatpush1.xpose.msra.mxu0 0.0
        %3830 = vmatprep.subr.mxu0 0.0
        %3831 = vmatpush1.xpose.msra.mxu0 0.0
        %3832 = vmatprep.subr.mxu0 0.0
        %3833 = vmatpush1.xpose.msra.mxu0 0.0
        %3834 = vmatprep.subr.mxu0 0.0
        %3835 = vmatpush1.xpose.msra.mxu0 0.0
        %3836 = vmatprep.subr.mxu0 0.0
        %3837 = vmatpush1.xpose.msra.mxu0 0.0
        %3838 = vmatprep.subr.mxu0 0.0
        %3839 = vmatpush1.xpose.msra.mxu0 0.0
        %3840 = vmatprep.subr.mxu0 0.0
        %3841 = vmatpush1.xpose.msra.mxu0 0.0
        %3842 = vmatprep.subr.mxu0 0.0
        %3843 = vmatpush1.xpose.msra.mxu0 0.0
        %3844 = vmatprep.mubr.f32.mxu0 0.0
        %3845 = vmatmul.mubr.f32.gmra.mrb[0].mxu0 %v3775
        %v3846 = vpop.f32.mrb[0].mxu0
        %v3847 = vadd.f32 %v568, %v3846
        %v3848 = vpop.f32.mrb[0].mxu0
        %3849 = vdwg.mxu0
        %v3850 = vsel %vm1581, %v3619, -inf
        %3851 = vmax.xlane.f32.xlu0 %v3850
        %v3852 = vpop.xlane.xlu0 %3851
        %v3853 = vsel %vm1581, %v3695, -inf
        %3854 = vmax.xlane.f32.xlu0 %v3853
        %v3855 = vpop.xlane.xlu0 %3854
        %v3856 = vsel %vm1581, %v3771, -inf
        %3857 = vmax.xlane.f32.xlu0 %v3856
        %v3858 = vpop.xlane.xlu0 %3857
        %v3859 = vsel %vm1581, %v3847, -inf
        %3860 = vmax.xlane.f32.xlu0 %v3859
        %v3861 = vpop.xlane.xlu0 %3860
        %v3862 = vsub.f32 %v3619, %v3852
        %v3863 = vsub.f32 %v3695, %v3855
        %v3864 = vsub.f32 %v3771, %v3858
        %v3865 = vsub.f32 %v3847, %v3861
        %v3866 = vmul.f32 %v3862, 1.442695
        %v3867 = vpow.pop %v3866
        %v3868 = vmul.f32 %v3863, 1.442695
        %v3869 = vpow.pop %v3868
        %v3870 = vmul.f32 %v3864, 1.442695
        %v3871 = vpow.pop %v3870
        %v3872 = vmul.f32 %v3865, 1.442695
        %v3873 = vpow.pop %v3872
        %v3874 = vsel %vm1581, %v3867, 0.0
        %3875 = vadd.xlane.f32.xlu0 %v3874
        %v3876 = vpop.xlane.xlu0 %3875
        %v3877 = vsel %vm1581, %v3869, 0.0
        %3878 = vadd.xlane.f32.xlu0 %v3877
        %v3879 = vpop.xlane.xlu0 %3878
        %v3880 = vsel %vm1581, %v3871, 0.0
        %3881 = vadd.xlane.f32.xlu0 %v3880
        %v3882 = vpop.xlane.xlu0 %3881
        %v3883 = vsel %vm1581, %v3873, 0.0
        %3884 = vadd.xlane.f32.xlu0 %v3883
        %v3885 = vpop.xlane.xlu0 %3884
        %v3886 = vrcp.pop %v3876
        %v3887 = vmul.f32 %v3867, %v3886
        %v3888 = vrcp.pop %v3879
        %v3889 = vmul.f32 %v3869, %v3888
        %v3890 = vrcp.pop %v3882
        %v3891 = vmul.f32 %v3871, %v3890
        %v3892 = vrcp.pop %v3885
        %v3893 = vmul.f32 %v3873, %v3892
        %v3895 = vsel %vm1581, %v3887, 0
        %3897 = vmatprep.subr.mxu0 0.0
        %3898 = vmatpush1.msra.mxu0 %v3333
        %3899 = vmatprep.subr.mxu0 0.0
        %3900 = vmatpush1.msra.mxu0 0.0
        %3901 = vmatprep.subr.mxu0 0.0
        %3902 = vmatpush1.msra.mxu0 0.0
        %3903 = vmatprep.subr.mxu0 0.0
        %3904 = vmatpush1.msra.mxu0 0.0
        %3905 = vmatprep.subr.mxu0 0.0
        %3906 = vmatpush1.msra.mxu0 0.0
        %3907 = vmatprep.subr.mxu0 0.0
        %3908 = vmatpush1.msra.mxu0 0.0
        %3909 = vmatprep.subr.mxu0 0.0
        %3910 = vmatpush1.msra.mxu0 0.0
        %3911 = vmatprep.subr.mxu0 0.0
        %3912 = vmatpush1.msra.mxu0 0.0
        %3913 = vmatprep.subr.mxu0 0.0
        %3914 = vmatpush1.msra.mxu0 0.0
        %3915 = vmatprep.subr.mxu0 0.0
        %3916 = vmatpush1.msra.mxu0 0.0
        %3917 = vmatprep.subr.mxu0 0.0
        %3918 = vmatpush1.msra.mxu0 0.0
        %3919 = vmatprep.subr.mxu0 0.0
        %3920 = vmatpush1.msra.mxu0 0.0
        %3921 = vmatprep.subr.mxu0 0.0
        %3922 = vmatpush1.msra.mxu0 0.0
        %3923 = vmatprep.subr.mxu0 0.0
        %3924 = vmatpush1.msra.mxu0 0.0
        %3925 = vmatprep.subr.mxu0 0.0
        %3926 = vmatpush1.msra.mxu0 0.0
        %3927 = vmatprep.subr.mxu0 0.0
        %3928 = vmatpush1.msra.mxu0 0.0
        %3929 = vmatprep.subr.mxu0 0.0
        %3930 = vmatpush1.msra.mxu0 0.0
        %3931 = vmatprep.subr.mxu0 0.0
        %3932 = vmatpush1.msra.mxu0 0.0
        %3933 = vmatprep.subr.mxu0 0.0
        %3934 = vmatpush1.msra.mxu0 0.0
        %3935 = vmatprep.subr.mxu0 0.0
        %3936 = vmatpush1.msra.mxu0 0.0
        %3937 = vmatprep.subr.mxu0 0.0
        %3938 = vmatpush1.msra.mxu0 0.0
        %3939 = vmatprep.subr.mxu0 0.0
        %3940 = vmatpush1.msra.mxu0 0.0
        %3941 = vmatprep.subr.mxu0 0.0
        %3942 = vmatpush1.msra.mxu0 0.0
        %3943 = vmatprep.subr.mxu0 0.0
        %3944 = vmatpush1.msra.mxu0 0.0
        %3945 = vmatprep.subr.mxu0 0.0
        %3946 = vmatpush1.msra.mxu0 0.0
        %3947 = vmatprep.subr.mxu0 0.0
        %3948 = vmatpush1.msra.mxu0 0.0
        %3949 = vmatprep.subr.mxu0 0.0
        %3950 = vmatpush1.msra.mxu0 0.0
        %3951 = vmatprep.subr.mxu0 0.0
        %3952 = vmatpush1.msra.mxu0 0.0
        %3953 = vmatprep.subr.mxu0 0.0
        %3954 = vmatpush1.msra.mxu0 0.0
        %3955 = vmatprep.subr.mxu0 0.0
        %3956 = vmatpush1.msra.mxu0 0.0
        %3957 = vmatprep.subr.mxu0 0.0
        %3958 = vmatpush1.msra.mxu0 0.0
        %3959 = vmatprep.subr.mxu0 0.0
        %3960 = vmatpush1.msra.mxu0 0.0
        %3961 = vmatprep.mubr.f32.mxu0 0.0
        %3962 = vmatmul.mubr.f32.gmra.mrb[0].mxu0 %v3895
        %v3963 = vpop.f32.mrb[0].mxu0
        %v3964 = vadd.f32 0.0, %v3963
        %v3965 = vpop.f32.mrb[0].mxu0
        %3966 = vdwg.mxu0
        %v3968 = vsel %vm1581, %v3889, 0
        %3970 = vmatprep.subr.mxu0 0.0
        %3971 = vmatpush1.msra.mxu0 %v3403
        %3972 = vmatprep.subr.mxu0 0.0
        %3973 = vmatpush1.msra.mxu0 0.0
        %3974 = vmatprep.subr.mxu0 0.0
        %3975 = vmatpush1.msra.mxu0 0.0
        %3976 = vmatprep.subr.mxu0 0.0
        %3977 = vmatpush1.msra.mxu0 0.0
        %3978 = vmatprep.subr.mxu0 0.0
        %3979 = vmatpush1.msra.mxu0 0.0
        %3980 = vmatprep.subr.mxu0 0.0
        %3981 = vmatpush1.msra.mxu0 0.0
        %3982 = vmatprep.subr.mxu0 0.0
        %3983 = vmatpush1.msra.mxu0 0.0
        %3984 = vmatprep.subr.mxu0 0.0
        %3985 = vmatpush1.msra.mxu0 0.0
        %3986 = vmatprep.subr.mxu0 0.0
        %3987 = vmatpush1.msra.mxu0 0.0
        %3988 = vmatprep.subr.mxu0 0.0
        %3989 = vmatpush1.msra.mxu0 0.0
        %3990 = vmatprep.subr.mxu0 0.0
        %3991 = vmatpush1.msra.mxu0 0.0
        %3992 = vmatprep.subr.mxu0 0.0
        %3993 = vmatpush1.msra.mxu0 0.0
        %3994 = vmatprep.subr.mxu0 0.0
        %3995 = vmatpush1.msra.mxu0 0.0
        %3996 = vmatprep.subr.mxu0 0.0
        %3997 = vmatpush1.msra.mxu0 0.0
        %3998 = vmatprep.subr.mxu0 0.0
        %3999 = vmatpush1.msra.mxu0 0.0
        %4000 = vmatprep.subr.mxu0 0.0
        %4001 = vmatpush1.msra.mxu0 0.0
        %4002 = vmatprep.subr.mxu0 0.0
        %4003 = vmatpush1.msra.mxu0 0.0
        %4004 = vmatprep.subr.mxu0 0.0
        %4005 = vmatpush1.msra.mxu0 0.0
        %4006 = vmatprep.subr.mxu0 0.0
        %4007 = vmatpush1.msra.mxu0 0.0
        %4008 = vmatprep.subr.mxu0 0.0
        %4009 = vmatpush1.msra.mxu0 0.0
        %4010 = vmatprep.subr.mxu0 0.0
        %4011 = vmatpush1.msra.mxu0 0.0
        %4012 = vmatprep.subr.mxu0 0.0
        %4013 = vmatpush1.msra.mxu0 0.0
        %4014 = vmatprep.subr.mxu0 0.0
        %4015 = vmatpush1.msra.mxu0 0.0
        %4016 = vmatprep.subr.mxu0 0.0
        %4017 = vmatpush1.msra.mxu0 0.0
        %4018 = vmatprep.subr.mxu0 0.0
        %4019 = vmatpush1.msra.mxu0 0.0
        %4020 = vmatprep.subr.mxu0 0.0
        %4021 = vmatpush1.msra.mxu0 0.0
        %4022 = vmatprep.subr.mxu0 0.0
        %4023 = vmatpush1.msra.mxu0 0.0
        %4024 = vmatprep.subr.mxu0 0.0
        %4025 = vmatpush1.msra.mxu0 0.0
        %4026 = vmatprep.subr.mxu0 0.0
        %4027 = vmatpush1.msra.mxu0 0.0
        %4028 = vmatprep.subr.mxu0 0.0
        %4029 = vmatpush1.msra.mxu0 0.0
        %4030 = vmatprep.subr.mxu0 0.0
        %4031 = vmatpush1.msra.mxu0 0.0
        %4032 = vmatprep.subr.mxu0 0.0
        %4033 = vmatpush1.msra.mxu0 0.0
        %4034 = vmatprep.mubr.f32.mxu0 0.0
        %4035 = vmatmul.mubr.f32.gmra.mrb[0].mxu0 %v3968
        %v4036 = vpop.f32.mrb[0].mxu0
        %v4037 = vadd.f32 0.0, %v4036
        %v4038 = vpop.f32.mrb[0].mxu0
        %4039 = vdwg.mxu0
        %v4041 = vsel %vm1581, %v3891, 0
        %4043 = vmatprep.subr.mxu0 0.0
        %4044 = vmatpush1.msra.mxu0 %v3473
        %4045 = vmatprep.subr.mxu0 0.0
        %4046 = vmatpush1.msra.mxu0 0.0
        %4047 = vmatprep.subr.mxu0 0.0
        %4048 = vmatpush1.msra.mxu0 0.0
        %4049 = vmatprep.subr.mxu0 0.0
        %4050 = vmatpush1.msra.mxu0 0.0
        %4051 = vmatprep.subr.mxu0 0.0
        %4052 = vmatpush1.msra.mxu0 0.0
        %4053 = vmatprep.subr.mxu0 0.0
        %4054 = vmatpush1.msra.mxu0 0.0
        %4055 = vmatprep.subr.mxu0 0.0
        %4056 = vmatpush1.msra.mxu0 0.0
        %4057 = vmatprep.subr.mxu0 0.0
        %4058 = vmatpush1.msra.mxu0 0.0
        %4059 = vmatprep.subr.mxu0 0.0
        %4060 = vmatpush1.msra.mxu0 0.0
        %4061 = vmatprep.subr.mxu0 0.0
        %4062 = vmatpush1.msra.mxu0 0.0
        %4063 = vmatprep.subr.mxu0 0.0
        %4064 = vmatpush1.msra.mxu0 0.0
        %4065 = vmatprep.subr.mxu0 0.0
        %4066 = vmatpush1.msra.mxu0 0.0
        %4067 = vmatprep.subr.mxu0 0.0
        %4068 = vmatpush1.msra.mxu0 0.0
        %4069 = vmatprep.subr.mxu0 0.0
        %4070 = vmatpush1.msra.mxu0 0.0
        %4071 = vmatprep.subr.mxu0 0.0
        %4072 = vmatpush1.msra.mxu0 0.0
        %4073 = vmatprep.subr.mxu0 0.0
        %4074 = vmatpush1.msra.mxu0 0.0
        %4075 = vmatprep.subr.mxu0 0.0
        %4076 = vmatpush1.msra.mxu0 0.0
        %4077 = vmatprep.subr.mxu0 0.0
        %4078 = vmatpush1.msra.mxu0 0.0
        %4079 = vmatprep.subr.mxu0 0.0
        %4080 = vmatpush1.msra.mxu0 0.0
        %4081 = vmatprep.subr.mxu0 0.0
        %4082 = vmatpush1.msra.mxu0 0.0
        %4083 = vmatprep.subr.mxu0 0.0
        %4084 = vmatpush1.msra.mxu0 0.0
        %4085 = vmatprep.subr.mxu0 0.0
        %4086 = vmatpush1.msra.mxu0 0.0
        %4087 = vmatprep.subr.mxu0 0.0
        %4088 = vmatpush1.msra.mxu0 0.0
        %4089 = vmatprep.subr.mxu0 0.0
        %4090 = vmatpush1.msra.mxu0 0.0
        %4091 = vmatprep.subr.mxu0 0.0
        %4092 = vmatpush1.msra.mxu0 0.0
        %4093 = vmatprep.subr.mxu0 0.0
        %4094 = vmatpush1.msra.mxu0 0.0
        %4095 = vmatprep.subr.mxu0 0.0
        %4096 = vmatpush1.msra.mxu0 0.0
        %4097 = vmatprep.subr.mxu0 0.0
        %4098 = vmatpush1.msra.mxu0 0.0
        %4099 = vmatprep.subr.mxu0 0.0
        %4100 = vmatpush1.msra.mxu0 0.0
        %4101 = vmatprep.subr.mxu0 0.0
        %4102 = vmatpush1.msra.mxu0 0.0
        %4103 = vmatprep.subr.mxu0 0.0
        %4104 = vmatpush1.msra.mxu0 0.0
        %4105 = vmatprep.subr.mxu0 0.0
        %4106 = vmatpush1.msra.mxu0 0.0
        %4107 = vmatprep.mubr.f32.mxu0 0.0
        %4108 = vmatmul.mubr.f32.gmra.mrb[0].mxu0 %v4041
        %v4109 = vpop.f32.mrb[0].mxu0
        %v4110 = vadd.f32 0.0, %v4109
        %v4111 = vpop.f32.mrb[0].mxu0
        %4112 = vdwg.mxu0
        %v4114 = vsel %vm1581, %v3893, 0
        %4116 = vmatprep.subr.mxu0 0.0
        %4117 = vmatpush1.msra.mxu0 %v3543
        %4118 = vmatprep.subr.mxu0 0.0
        %4119 = vmatpush1.msra.mxu0 0.0
        %4120 = vmatprep.subr.mxu0 0.0
        %4121 = vmatpush1.msra.mxu0 0.0
        %4122 = vmatprep.subr.mxu0 0.0
        %4123 = vmatpush1.msra.mxu0 0.0
        %4124 = vmatprep.subr.mxu0 0.0
        %4125 = vmatpush1.msra.mxu0 0.0
        %4126 = vmatprep.subr.mxu0 0.0
        %4127 = vmatpush1.msra.mxu0 0.0
        %4128 = vmatprep.subr.mxu0 0.0
        %4129 = vmatpush1.msra.mxu0 0.0
        %4130 = vmatprep.subr.mxu0 0.0
        %4131 = vmatpush1.msra.mxu0 0.0
        %4132 = vmatprep.subr.mxu0 0.0
        %4133 = vmatpush1.msra.mxu0 0.0
        %4134 = vmatprep.subr.mxu0 0.0
        %4135 = vmatpush1.msra.mxu0 0.0
        %4136 = vmatprep.subr.mxu0 0.0
        %4137 = vmatpush1.msra.mxu0 0.0
        %4138 = vmatprep.subr.mxu0 0.0
        %4139 = vmatpush1.msra.mxu0 0.0
        %4140 = vmatprep.subr.mxu0 0.0
        %4141 = vmatpush1.msra.mxu0 0.0
        %4142 = vmatprep.subr.mxu0 0.0
        %4143 = vmatpush1.msra.mxu0 0.0
        %4144 = vmatprep.subr.mxu0 0.0
        %4145 = vmatpush1.msra.mxu0 0.0
        %4146 = vmatprep.subr.mxu0 0.0
        %4147 = vmatpush1.msra.mxu0 0.0
        %4148 = vmatprep.subr.mxu0 0.0
        %4149 = vmatpush1.msra.mxu0 0.0
        %4150 = vmatprep.subr.mxu0 0.0
        %4151 = vmatpush1.msra.mxu0 0.0
        %4152 = vmatprep.subr.mxu0 0.0
        %4153 = vmatpush1.msra.mxu0 0.0
        %4154 = vmatprep.subr.mxu0 0.0
        %4155 = vmatpush1.msra.mxu0 0.0
        %4156 = vmatprep.subr.mxu0 0.0
        %4157 = vmatpush1.msra.mxu0 0.0
        %4158 = vmatprep.subr.mxu0 0.0
        %4159 = vmatpush1.msra.mxu0 0.0
        %4160 = vmatprep.subr.mxu0 0.0
        %4161 = vmatpush1.msra.mxu0 0.0
        %4162 = vmatprep.subr.mxu0 0.0
        %4163 = vmatpush1.msra.mxu0 0.0
        %4164 = vmatprep.subr.mxu0 0.0
        %4165 = vmatpush1.msra.mxu0 0.0
        %4166 = vmatprep.subr.mxu0 0.0
        %4167 = vmatpush1.msra.mxu0 0.0
        %4168 = vmatprep.subr.mxu0 0.0
        %4169 = vmatpush1.msra.mxu0 0.0
        %4170 = vmatprep.subr.mxu0 0.0
        %4171 = vmatpush1.msra.mxu0 0.0
        %4172 = vmatprep.subr.mxu0 0.0
        %4173 = vmatpush1.msra.mxu0 0.0
        %4174 = vmatprep.subr.mxu0 0.0
        %4175 = vmatpush1.msra.mxu0 0.0
        %4176 = vmatprep.subr.mxu0 0.0
        %4177 = vmatpush1.msra.mxu0 0.0
        %4178 = vmatprep.subr.mxu0 0.0
        %4179 = vmatpush1.msra.mxu0 0.0
        %4180 = vmatprep.mubr.f32.mxu0 0.0
        %4181 = vmatmul.mubr.f32.gmra.mrb[0].mxu0 %v4114
        %v4182 = vpop.f32.mrb[0].mxu0
        %v4183 = vadd.f32 0.0, %v4182
        %v4184 = vpop.f32.mrb[0].mxu0
        %4185 = vdwg.mxu0
        %s4186 = scalar_lea.vmem [#allocation14], 32
        %v4187 = vld [vmem:[%s4186] sm:$0xff]
        %v4188 = vld [vmem:[%s4186 + $0x8] sm:$0xff]
        %v4189 = vld [vmem:[%s4186 + $0x10] sm:$0xff]
        %v4190 = vld [vmem:[%s4186 + $0x18] sm:$0xff]
        %v4192 = vsel %vm1581, %v3964, 0
        %4194 = vmatprep.subr.mxu0 0.0
        %4195 = vmatpush1.msra.mxu0 %v4187
        %4196 = vmatprep.subr.mxu0 0.0
        %4197 = vmatpush1.msra.mxu0 0.0
        %4198 = vmatprep.subr.mxu0 0.0
        %4199 = vmatpush1.msra.mxu0 0.0
        %4200 = vmatprep.subr.mxu0 0.0
        %4201 = vmatpush1.msra.mxu0 0.0
        %4202 = vmatprep.subr.mxu0 0.0
        %4203 = vmatpush1.msra.mxu0 0.0
        %4204 = vmatprep.subr.mxu0 0.0
        %4205 = vmatpush1.msra.mxu0 0.0
        %4206 = vmatprep.subr.mxu0 0.0
        %4207 = vmatpush1.msra.mxu0 0.0
        %4208 = vmatprep.subr.mxu0 0.0
        %4209 = vmatpush1.msra.mxu0 0.0
        %4210 = vmatprep.subr.mxu0 0.0
        %4211 = vmatpush1.msra.mxu0 0.0
        %4212 = vmatprep.subr.mxu0 0.0
        %4213 = vmatpush1.msra.mxu0 0.0
        %4214 = vmatprep.subr.mxu0 0.0
        %4215 = vmatpush1.msra.mxu0 0.0
        %4216 = vmatprep.subr.mxu0 0.0
        %4217 = vmatpush1.msra.mxu0 0.0
        %4218 = vmatprep.subr.mxu0 0.0
        %4219 = vmatpush1.msra.mxu0 0.0
        %4220 = vmatprep.subr.mxu0 0.0
        %4221 = vmatpush1.msra.mxu0 0.0
        %4222 = vmatprep.subr.mxu0 0.0
        %4223 = vmatpush1.msra.mxu0 0.0
        %4224 = vmatprep.subr.mxu0 0.0
        %4225 = vmatpush1.msra.mxu0 0.0
        %4226 = vmatprep.subr.mxu0 0.0
        %4227 = vmatpush1.msra.mxu0 0.0
        %4228 = vmatprep.subr.mxu0 0.0
        %4229 = vmatpush1.msra.mxu0 0.0
        %4230 = vmatprep.subr.mxu0 0.0
        %4231 = vmatpush1.msra.mxu0 0.0
        %4232 = vmatprep.subr.mxu0 0.0
        %4233 = vmatpush1.msra.mxu0 0.0
        %4234 = vmatprep.subr.mxu0 0.0
        %4235 = vmatpush1.msra.mxu0 0.0
        %4236 = vmatprep.subr.mxu0 0.0
        %4237 = vmatpush1.msra.mxu0 0.0
        %4238 = vmatprep.subr.mxu0 0.0
        %4239 = vmatpush1.msra.mxu0 0.0
        %4240 = vmatprep.subr.mxu0 0.0
        %4241 = vmatpush1.msra.mxu0 0.0
        %4242 = vmatprep.subr.mxu0 0.0
        %4243 = vmatpush1.msra.mxu0 0.0
        %4244 = vmatprep.subr.mxu0 0.0
        %4245 = vmatpush1.msra.mxu0 0.0
        %4246 = vmatprep.subr.mxu0 0.0
        %4247 = vmatpush1.msra.mxu0 0.0
        %4248 = vmatprep.subr.mxu0 0.0
        %4249 = vmatpush1.msra.mxu0 0.0
        %4250 = vmatprep.subr.mxu0 0.0
        %4251 = vmatpush1.msra.mxu0 0.0
        %4252 = vmatprep.subr.mxu0 0.0
        %4253 = vmatpush1.msra.mxu0 0.0
        %4254 = vmatprep.subr.mxu0 0.0
        %4255 = vmatpush1.msra.mxu0 0.0
        %4256 = vmatprep.subr.mxu0 0.0
        %4257 = vmatpush1.msra.mxu0 0.0
        %4258 = vmatprep.mubr.f32.mxu0 0.0
        %4259 = vmatmul.mubr.f32.gmra.mrb[0].mxu0 %v4192
        %v4260 = vpop.f32.mrb[0].mxu0
        %v4261 = vadd.f32 0.0, %v4260
        %v4262 = vpop.f32.mrb[0].mxu0
        %4263 = vdwg.mxu0
        %v4265 = vsel %vm1581, %v4037, 0
        %4267 = vmatprep.subr.mxu0 0.0
        %4268 = vmatpush1.msra.mxu0 %v4188
        %4269 = vmatprep.subr.mxu0 0.0
        %4270 = vmatpush1.msra.mxu0 0.0
        %4271 = vmatprep.subr.mxu0 0.0
        %4272 = vmatpush1.msra.mxu0 0.0
        %4273 = vmatprep.subr.mxu0 0.0
        %4274 = vmatpush1.msra.mxu0 0.0
        %4275 = vmatprep.subr.mxu0 0.0
        %4276 = vmatpush1.msra.mxu0 0.0
        %4277 = vmatprep.subr.mxu0 0.0
        %4278 = vmatpush1.msra.mxu0 0.0
        %4279 = vmatprep.subr.mxu0 0.0
        %4280 = vmatpush1.msra.mxu0 0.0
        %4281 = vmatprep.subr.mxu0 0.0
        %4282 = vmatpush1.msra.mxu0 0.0
        %4283 = vmatprep.subr.mxu0 0.0
        %4284 = vmatpush1.msra.mxu0 0.0
        %4285 = vmatprep.subr.mxu0 0.0
        %4286 = vmatpush1.msra.mxu0 0.0
        %4287 = vmatprep.subr.mxu0 0.0
        %4288 = vmatpush1.msra.mxu0 0.0
        %4289 = vmatprep.subr.mxu0 0.0
        %4290 = vmatpush1.msra.mxu0 0.0
        %4291 = vmatprep.subr.mxu0 0.0
        %4292 = vmatpush1.msra.mxu0 0.0
        %4293 = vmatprep.subr.mxu0 0.0
        %4294 = vmatpush1.msra.mxu0 0.0
        %4295 = vmatprep.subr.mxu0 0.0
        %4296 = vmatpush1.msra.mxu0 0.0
        %4297 = vmatprep.subr.mxu0 0.0
        %4298 = vmatpush1.msra.mxu0 0.0
        %4299 = vmatprep.subr.mxu0 0.0
        %4300 = vmatpush1.msra.mxu0 0.0
        %4301 = vmatprep.subr.mxu0 0.0
        %4302 = vmatpush1.msra.mxu0 0.0
        %4303 = vmatprep.subr.mxu0 0.0
        %4304 = vmatpush1.msra.mxu0 0.0
        %4305 = vmatprep.subr.mxu0 0.0
        %4306 = vmatpush1.msra.mxu0 0.0
        %4307 = vmatprep.subr.mxu0 0.0
        %4308 = vmatpush1.msra.mxu0 0.0
        %4309 = vmatprep.subr.mxu0 0.0
        %4310 = vmatpush1.msra.mxu0 0.0
        %4311 = vmatprep.subr.mxu0 0.0
        %4312 = vmatpush1.msra.mxu0 0.0
        %4313 = vmatprep.subr.mxu0 0.0
        %4314 = vmatpush1.msra.mxu0 0.0
        %4315 = vmatprep.subr.mxu0 0.0
        %4316 = vmatpush1.msra.mxu0 0.0
        %4317 = vmatprep.subr.mxu0 0.0
        %4318 = vmatpush1.msra.mxu0 0.0
        %4319 = vmatprep.subr.mxu0 0.0
        %4320 = vmatpush1.msra.mxu0 0.0
        %4321 = vmatprep.subr.mxu0 0.0
        %4322 = vmatpush1.msra.mxu0 0.0
        %4323 = vmatprep.subr.mxu0 0.0
        %4324 = vmatpush1.msra.mxu0 0.0
        %4325 = vmatprep.subr.mxu0 0.0
        %4326 = vmatpush1.msra.mxu0 0.0
        %4327 = vmatprep.subr.mxu0 0.0
        %4328 = vmatpush1.msra.mxu0 0.0
        %4329 = vmatprep.subr.mxu0 0.0
        %4330 = vmatpush1.msra.mxu0 0.0
        %4331 = vmatprep.mubr.f32.mxu0 0.0
        %4332 = vmatmul.mubr.f32.gmra.mrb[0].mxu0 %v4265
        %v4333 = vpop.f32.mrb[0].mxu0
        %v4334 = vadd.f32 0.0, %v4333
        %v4335 = vpop.f32.mrb[0].mxu0
        %4336 = vdwg.mxu0
        %v4338 = vsel %vm1581, %v4110, 0
        %4340 = vmatprep.subr.mxu0 0.0
        %4341 = vmatpush1.msra.mxu0 %v4189
        %4342 = vmatprep.subr.mxu0 0.0
        %4343 = vmatpush1.msra.mxu0 0.0
        %4344 = vmatprep.subr.mxu0 0.0
        %4345 = vmatpush1.msra.mxu0 0.0
        %4346 = vmatprep.subr.mxu0 0.0
        %4347 = vmatpush1.msra.mxu0 0.0
        %4348 = vmatprep.subr.mxu0 0.0
        %4349 = vmatpush1.msra.mxu0 0.0
        %4350 = vmatprep.subr.mxu0 0.0
        %4351 = vmatpush1.msra.mxu0 0.0
        %4352 = vmatprep.subr.mxu0 0.0
        %4353 = vmatpush1.msra.mxu0 0.0
        %4354 = vmatprep.subr.mxu0 0.0
        %4355 = vmatpush1.msra.mxu0 0.0
        %4356 = vmatprep.subr.mxu0 0.0
        %4357 = vmatpush1.msra.mxu0 0.0
        %4358 = vmatprep.subr.mxu0 0.0
        %4359 = vmatpush1.msra.mxu0 0.0
        %4360 = vmatprep.subr.mxu0 0.0
        %4361 = vmatpush1.msra.mxu0 0.0
        %4362 = vmatprep.subr.mxu0 0.0
        %4363 = vmatpush1.msra.mxu0 0.0
        %4364 = vmatprep.subr.mxu0 0.0
        %4365 = vmatpush1.msra.mxu0 0.0
        %4366 = vmatprep.subr.mxu0 0.0
        %4367 = vmatpush1.msra.mxu0 0.0
        %4368 = vmatprep.subr.mxu0 0.0
        %4369 = vmatpush1.msra.mxu0 0.0
        %4370 = vmatprep.subr.mxu0 0.0
        %4371 = vmatpush1.msra.mxu0 0.0
        %4372 = vmatprep.subr.mxu0 0.0
        %4373 = vmatpush1.msra.mxu0 0.0
        %4374 = vmatprep.subr.mxu0 0.0
        %4375 = vmatpush1.msra.mxu0 0.0
        %4376 = vmatprep.subr.mxu0 0.0
        %4377 = vmatpush1.msra.mxu0 0.0
        %4378 = vmatprep.subr.mxu0 0.0
        %4379 = vmatpush1.msra.mxu0 0.0
        %4380 = vmatprep.subr.mxu0 0.0
        %4381 = vmatpush1.msra.mxu0 0.0
        %4382 = vmatprep.subr.mxu0 0.0
        %4383 = vmatpush1.msra.mxu0 0.0
        %4384 = vmatprep.subr.mxu0 0.0
        %4385 = vmatpush1.msra.mxu0 0.0
        %4386 = vmatprep.subr.mxu0 0.0
        %4387 = vmatpush1.msra.mxu0 0.0
        %4388 = vmatprep.subr.mxu0 0.0
        %4389 = vmatpush1.msra.mxu0 0.0
        %4390 = vmatprep.subr.mxu0 0.0
        %4391 = vmatpush1.msra.mxu0 0.0
        %4392 = vmatprep.subr.mxu0 0.0
        %4393 = vmatpush1.msra.mxu0 0.0
        %4394 = vmatprep.subr.mxu0 0.0
        %4395 = vmatpush1.msra.mxu0 0.0
        %4396 = vmatprep.subr.mxu0 0.0
        %4397 = vmatpush1.msra.mxu0 0.0
        %4398 = vmatprep.subr.mxu0 0.0
        %4399 = vmatpush1.msra.mxu0 0.0
        %4400 = vmatprep.subr.mxu0 0.0
        %4401 = vmatpush1.msra.mxu0 0.0
        %4402 = vmatprep.subr.mxu0 0.0
        %4403 = vmatpush1.msra.mxu0 0.0
        %4404 = vmatprep.mubr.f32.mxu0 0.0
        %4405 = vmatmul.mubr.f32.gmra.mrb[0].mxu0 %v4338
        %v4406 = vpop.f32.mrb[0].mxu0
        %v4407 = vadd.f32 0.0, %v4406
        %v4408 = vpop.f32.mrb[0].mxu0
        %4409 = vdwg.mxu0
        %v4411 = vsel %vm1581, %v4183, 0
        %4413 = vmatprep.subr.mxu0 0.0
        %4414 = vmatpush1.msra.mxu0 %v4190
        %4415 = vmatprep.subr.mxu0 0.0
        %4416 = vmatpush1.msra.mxu0 0.0
        %4417 = vmatprep.subr.mxu0 0.0
        %4418 = vmatpush1.msra.mxu0 0.0
        %4419 = vmatprep.subr.mxu0 0.0
        %4420 = vmatpush1.msra.mxu0 0.0
        %4421 = vmatprep.subr.mxu0 0.0
        %4422 = vmatpush1.msra.mxu0 0.0
        %4423 = vmatprep.subr.mxu0 0.0
        %4424 = vmatpush1.msra.mxu0 0.0
        %4425 = vmatprep.subr.mxu0 0.0
        %4426 = vmatpush1.msra.mxu0 0.0
        %4427 = vmatprep.subr.mxu0 0.0
        %4428 = vmatpush1.msra.mxu0 0.0
        %4429 = vmatprep.subr.mxu0 0.0
        %4430 = vmatpush1.msra.mxu0 0.0
        %4431 = vmatprep.subr.mxu0 0.0
        %4432 = vmatpush1.msra.mxu0 0.0
        %4433 = vmatprep.subr.mxu0 0.0
        %4434 = vmatpush1.msra.mxu0 0.0
        %4435 = vmatprep.subr.mxu0 0.0
        %4436 = vmatpush1.msra.mxu0 0.0
        %4437 = vmatprep.subr.mxu0 0.0
        %4438 = vmatpush1.msra.mxu0 0.0
        %4439 = vmatprep.subr.mxu0 0.0
        %4440 = vmatpush1.msra.mxu0 0.0
        %4441 = vmatprep.subr.mxu0 0.0
        %4442 = vmatpush1.msra.mxu0 0.0
        %4443 = vmatprep.subr.mxu0 0.0
        %4444 = vmatpush1.msra.mxu0 0.0
        %4445 = vmatprep.subr.mxu0 0.0
        %4446 = vmatpush1.msra.mxu0 0.0
        %4447 = vmatprep.subr.mxu0 0.0
        %4448 = vmatpush1.msra.mxu0 0.0
        %4449 = vmatprep.subr.mxu0 0.0
        %4450 = vmatpush1.msra.mxu0 0.0
        %4451 = vmatprep.subr.mxu0 0.0
        %4452 = vmatpush1.msra.mxu0 0.0
        %4453 = vmatprep.subr.mxu0 0.0
        %4454 = vmatpush1.msra.mxu0 0.0
        %4455 = vmatprep.subr.mxu0 0.0
        %4456 = vmatpush1.msra.mxu0 0.0
        %4457 = vmatprep.subr.mxu0 0.0
        %4458 = vmatpush1.msra.mxu0 0.0
        %4459 = vmatprep.subr.mxu0 0.0
        %4460 = vmatpush1.msra.mxu0 0.0
        %4461 = vmatprep.subr.mxu0 0.0
        %4462 = vmatpush1.msra.mxu0 0.0
        %4463 = vmatprep.subr.mxu0 0.0
        %4464 = vmatpush1.msra.mxu0 0.0
        %4465 = vmatprep.subr.mxu0 0.0
        %4466 = vmatpush1.msra.mxu0 0.0
        %4467 = vmatprep.subr.mxu0 0.0
        %4468 = vmatpush1.msra.mxu0 0.0
        %4469 = vmatprep.subr.mxu0 0.0
        %4470 = vmatpush1.msra.mxu0 0.0
        %4471 = vmatprep.subr.mxu0 0.0
        %4472 = vmatpush1.msra.mxu0 0.0
        %4473 = vmatprep.subr.mxu0 0.0
        %4474 = vmatpush1.msra.mxu0 0.0
        %4475 = vmatprep.subr.mxu0 0.0
        %4476 = vmatpush1.msra.mxu0 0.0
        %4477 = vmatprep.mubr.f32.mxu0 0.0
        %4478 = vmatmul.mubr.f32.gmra.mrb[0].mxu0 %v4411
        %v4479 = vpop.f32.mrb[0].mxu0
        %v4480 = vadd.f32 0.0, %v4479
        %v4481 = vpop.f32.mrb[0].mxu0
        %4482 = vdwg.mxu0
        %v4483 = vsel %vm569, %v4261, 0.0
        %v4484 = vsel %vm569, %v4334, 0.0
        %v4485 = vadd.f32 %v4483, %v4484
        %v4486 = vsel %vm569, %v4407, 0.0
        %v4487 = vadd.f32 %v4485, %v4486
        %v4488 = vsel %vm569, %v4480, 0.0
        %v4489 = vadd.f32 %v4487, %v4488
        %v4490 = vlaneseq
        %v4491 = vshrl.u32 %v4490, 7
        %v4492 = vsub.s32 7, %v4491
        %v4493 = vrot.slane %v565, %v4492
        %v4494 = vadd.f32 %v4489, %v4493
        %v4495 = vadd.f32 %v2530, %v4494
        %v4496 = vsel %vm569, %v4495, 0.0
        %4497 = vadd.xlane.f32.xlu0 %v4496
        %v4498 = vpop.xlane.xlu0 %4497
        %v4499 = vmul.f32 %v4498, %v573
        %v4500 = vsub.f32 %v4495, %v4499
        %v4501 = vmul.f32 %v4500, %v4500
        %v4502 = vsel %vm569, %v4501, 0.0
        %4503 = vadd.xlane.f32.xlu0 %v4502
        %v4504 = vpop.xlane.xlu0 %4503
        %v4505 = vmul.f32 %v4504, 0.032258064
        %v4506 = vrsqrt.pop %v4505
        %v4507 = vmul.f32 %v4505, %v4506
        %vm4508 = vcmp.eq.f32.partialorder %v4505, inf
        %v4509 = vsel %vm4508, %v4505, %v4507
        %vm4510 = vcmp.eq.f32.partialorder %v4505, 0.0
        %v4511 = vand.u32 %v4505, 2147483648
        %v4512 = vsel %vm4510, %v4511, %v4509
        %v4513 = vadd.f32 %v4512, 1e-06
        %v4514 = vrcp.pop %v4513
        %v4515 = vmul.f32 1.0, %v4514
        %v4516 = vmul.f32 %v4500, %v4515
        %v4517 = vlaneseq
        %v4518 = vshrl.u32 %v4517, 7
        %v4519 = vsub.s32 4, %v4518
        %v4520 = vrot.slane %v565, %v4519
        %v4521 = vmul.f32 %v4520, %v4516
        %v4522 = vlaneseq
        %v4523 = vshrl.u32 %v4522, 7
        %v4524 = vsub.s32 5, %v4523
        %v4525 = vrot.slane %v565, %v4524
        %v4526 = vadd.f32 %v4521, %v4525
        %v4527 = vld [vmem:[#allocation16] sm:$0xff]
        %v4528 = vld [vmem:[#allocation16 + $0x8] sm:$0xff]
        %v4529 = vld [vmem:[#allocation16 + $0x10] sm:$0xff]
        %v4530 = vld [vmem:[#allocation16 + $0x18] sm:$0xff]
        %v4531 = vld [vmem:[#allocation17] sm:$0x1]
        %v4533 = vlaneseq
        %v4534 = vshrl.u32 %v4533, 7
        %v4535 = vsub.s32 0, %v4534
        %v4536 = vrot.slane %v4531, %v4535
        %v4539 = vsel %vm569, %v4526, 0
        %4541 = vmatprep.subr.mxu0 0.0
        %4542 = vmatpush1.msra.mxu0 %v4527
        %4543 = vmatprep.subr.mxu0 0.0
        %4544 = vmatpush1.msra.mxu0 %v4528
        %4545 = vmatprep.subr.mxu0 0.0
        %4546 = vmatpush1.msra.mxu0 %v4529
        %4547 = vmatprep.subr.mxu0 0.0
        %4548 = vmatpush1.msra.mxu0 %v4530
        %4549 = vmatprep.subr.mxu0 0.0
        %4550 = vmatpush1.msra.mxu0 0.0
        %4551 = vmatprep.subr.mxu0 0.0
        %4552 = vmatpush1.msra.mxu0 0.0
        %4553 = vmatprep.subr.mxu0 0.0
        %4554 = vmatpush1.msra.mxu0 0.0
        %4555 = vmatprep.subr.mxu0 0.0
        %4556 = vmatpush1.msra.mxu0 0.0
        %4557 = vmatprep.subr.mxu0 0.0
        %4558 = vmatpush1.msra.mxu0 0.0
        %4559 = vmatprep.subr.mxu0 0.0
        %4560 = vmatpush1.msra.mxu0 0.0
        %4561 = vmatprep.subr.mxu0 0.0
        %4562 = vmatpush1.msra.mxu0 0.0
        %4563 = vmatprep.subr.mxu0 0.0
        %4564 = vmatpush1.msra.mxu0 0.0
        %4565 = vmatprep.subr.mxu0 0.0
        %4566 = vmatpush1.msra.mxu0 0.0
        %4567 = vmatprep.subr.mxu0 0.0
        %4568 = vmatpush1.msra.mxu0 0.0
        %4569 = vmatprep.subr.mxu0 0.0
        %4570 = vmatpush1.msra.mxu0 0.0
        %4571 = vmatprep.subr.mxu0 0.0
        %4572 = vmatpush1.msra.mxu0 0.0
        %4573 = vmatprep.subr.mxu0 0.0
        %4574 = vmatpush1.msra.mxu0 0.0
        %4575 = vmatprep.subr.mxu0 0.0
        %4576 = vmatpush1.msra.mxu0 0.0
        %4577 = vmatprep.subr.mxu0 0.0
        %4578 = vmatpush1.msra.mxu0 0.0
        %4579 = vmatprep.subr.mxu0 0.0
        %4580 = vmatpush1.msra.mxu0 0.0
        %4581 = vmatprep.subr.mxu0 0.0
        %4582 = vmatpush1.msra.mxu0 0.0
        %4583 = vmatprep.subr.mxu0 0.0
        %4584 = vmatpush1.msra.mxu0 0.0
        %4585 = vmatprep.subr.mxu0 0.0
        %4586 = vmatpush1.msra.mxu0 0.0
        %4587 = vmatprep.subr.mxu0 0.0
        %4588 = vmatpush1.msra.mxu0 0.0
        %4589 = vmatprep.subr.mxu0 0.0
        %4590 = vmatpush1.msra.mxu0 0.0
        %4591 = vmatprep.subr.mxu0 0.0
        %4592 = vmatpush1.msra.mxu0 0.0
        %4593 = vmatprep.subr.mxu0 0.0
        %4594 = vmatpush1.msra.mxu0 0.0
        %4595 = vmatprep.subr.mxu0 0.0
        %4596 = vmatpush1.msra.mxu0 0.0
        %4597 = vmatprep.subr.mxu0 0.0
        %4598 = vmatpush1.msra.mxu0 0.0
        %4599 = vmatprep.subr.mxu0 0.0
        %4600 = vmatpush1.msra.mxu0 0.0
        %4601 = vmatprep.subr.mxu0 0.0
        %4602 = vmatpush1.msra.mxu0 0.0
        %4603 = vmatprep.subr.mxu0 0.0
        %4604 = vmatpush1.msra.mxu0 0.0
        %4605 = vmatprep.mubr.f32.mxu0 0.0
        %4606 = vmatmul.mubr.f32.gmra.mrb[0].mxu0 %v4539
        %v4607 = vpop.f32.mrb[0].mxu0
        %v4608 = vadd.f32 %v4536, %v4607
        %v4609 = vpop.f32.mrb[0].mxu0
        %4610 = vdwg.mxu0
        %v4611 = vmax.f32 %v4608, 0.0
        %v4612 = vld [vmem:[#allocation19] sm:$0xff]
        %v4613 = vld [vmem:[#allocation19 + $0x8] sm:$0xff]
        %v4614 = vld [vmem:[#allocation19 + $0x10] sm:$0xff]
        %v4615 = vld [vmem:[#allocation19 + $0x18] sm:$0xff]
        %v4616 = vld [vmem:[#allocation19 + $0x20] sm:$0xff]
        %v4617 = vld [vmem:[#allocation19 + $0x28] sm:$0xff]
        %v4618 = vld [vmem:[#allocation19 + $0x30] sm:$0xff]
        %v4619 = vld [vmem:[#allocation19 + $0x38] sm:$0xff]
        %v4620 = vlaneseq
        %v4621 = vshrl.u32 %v4620, 7
        %v4622 = vsub.s32 0, %v4621
        %v4623 = vrot.slane %v566, %v4622
        %vm4624 = vcmask 523264
        %v4626 = vsel %vm4624, %v4611, 0
        %4628 = vmatprep.subr.mxu0 0.0
        %4629 = vmatpush1.msra.mxu0 %v4612
        %4630 = vmatprep.subr.mxu0 0.0
        %4631 = vmatpush1.msra.mxu0 %v4613
        %4632 = vmatprep.subr.mxu0 0.0
        %4633 = vmatpush1.msra.mxu0 %v4614
        %4634 = vmatprep.subr.mxu0 0.0
        %4635 = vmatpush1.msra.mxu0 %v4615
        %4636 = vmatprep.subr.mxu0 0.0
        %4637 = vmatpush1.msra.mxu0 %v4616
        %4638 = vmatprep.subr.mxu0 0.0
        %4639 = vmatpush1.msra.mxu0 %v4617
        %4640 = vmatprep.subr.mxu0 0.0
        %4641 = vmatpush1.msra.mxu0 %v4618
        %4642 = vmatprep.subr.mxu0 0.0
        %4643 = vmatpush1.msra.mxu0 %v4619
        %4644 = vmatprep.subr.mxu0 0.0
        %4645 = vmatpush1.msra.mxu0 0.0
        %4646 = vmatprep.subr.mxu0 0.0
        %4647 = vmatpush1.msra.mxu0 0.0
        %4648 = vmatprep.subr.mxu0 0.0
        %4649 = vmatpush1.msra.mxu0 0.0
        %4650 = vmatprep.subr.mxu0 0.0
        %4651 = vmatpush1.msra.mxu0 0.0
        %4652 = vmatprep.subr.mxu0 0.0
        %4653 = vmatpush1.msra.mxu0 0.0
        %4654 = vmatprep.subr.mxu0 0.0
        %4655 = vmatpush1.msra.mxu0 0.0
        %4656 = vmatprep.subr.mxu0 0.0
        %4657 = vmatpush1.msra.mxu0 0.0
        %4658 = vmatprep.subr.mxu0 0.0
        %4659 = vmatpush1.msra.mxu0 0.0
        %4660 = vmatprep.subr.mxu0 0.0
        %4661 = vmatpush1.msra.mxu0 0.0
        %4662 = vmatprep.subr.mxu0 0.0
        %4663 = vmatpush1.msra.mxu0 0.0
        %4664 = vmatprep.subr.mxu0 0.0
        %4665 = vmatpush1.msra.mxu0 0.0
        %4666 = vmatprep.subr.mxu0 0.0
        %4667 = vmatpush1.msra.mxu0 0.0
        %4668 = vmatprep.subr.mxu0 0.0
        %4669 = vmatpush1.msra.mxu0 0.0
        %4670 = vmatprep.subr.mxu0 0.0
        %4671 = vmatpush1.msra.mxu0 0.0
        %4672 = vmatprep.subr.mxu0 0.0
        %4673 = vmatpush1.msra.mxu0 0.0
        %4674 = vmatprep.subr.mxu0 0.0
        %4675 = vmatpush1.msra.mxu0 0.0
        %4676 = vmatprep.subr.mxu0 0.0
        %4677 = vmatpush1.msra.mxu0 0.0
        %4678 = vmatprep.subr.mxu0 0.0
        %4679 = vmatpush1.msra.mxu0 0.0
        %4680 = vmatprep.subr.mxu0 0.0
        %4681 = vmatpush1.msra.mxu0 0.0
        %4682 = vmatprep.subr.mxu0 0.0
        %4683 = vmatpush1.msra.mxu0 0.0
        %4684 = vmatprep.subr.mxu0 0.0
        %4685 = vmatpush1.msra.mxu0 0.0
        %4686 = vmatprep.subr.mxu0 0.0
        %4687 = vmatpush1.msra.mxu0 0.0
        %4688 = vmatprep.subr.mxu0 0.0
        %4689 = vmatpush1.msra.mxu0 0.0
        %4690 = vmatprep.subr.mxu0 0.0
        %4691 = vmatpush1.msra.mxu0 0.0
        %4692 = vmatprep.mubr.f32.mxu0 0.0
        %4693 = vmatmul.mubr.f32.gmra.mrb[0].mxu0 %v4626
        %v4694 = vpop.f32.mrb[0].mxu0
        %v4695 = vadd.f32 %v4623, %v4694
        %v4696 = vpop.f32.mrb[0].mxu0
        %4697 = vdwg.mxu0
        %v4698 = vadd.f32 %v4495, %v4695
        %4699 = vst.msk [vmem:[%s562] sm:$0xff] %vm569, %v4698
        %s4700 = sand.u32 %s284, 1
        %s4701 = scalar_lea.sflag [#allocation4], %s4700
        %s4702 = sand.u32 %s284, 1
        %s4703 = smul.addr %s4702, 8
        %s4704 = scalar_lea.vmem [#allocation20], %s4703
        // Predicated region
        $region109: #{tpu_custom_call.1} parent=63 // pred_check
          %p4705 = pneg %p294
        $region110: #{tpu_custom_call.1} parent=63 // pred_check_branch
          %4707 = sbr.rel (%p4705) target = $region112
        $region111: #{tpu_custom_call.1} parent=63 // pred_region
          %s4709 = ssub.s32 128, 128
          %4710 = vsyncadd %s4701, %s4709
          %s4711 = smul.addr %s35, 128
          %s4712 = scalar_lea.hbm %s11, %s4711
          %s4714 = sshll.u32 %s4704, 4
          %s4715 = int_to_ptr.vmem [resolvable:$true] %s4714
          %4717 = dma.vmem_to_hbm [thread:$0]  %s4715, 128, %s4712, %s4701
        $region112: #{tpu_custom_call.1} parent=63 // pred_fallthru
          _
      $region64: #{tpu_custom_call.1} parent=5 // pred_fallthru
        _
      %p4718 = scmp.le.s32.totalorder 2, %s30
      // Predicated region
      $region113: #{tpu_custom_call.1} parent=5 // pred_check
        %p4719 = pneg %p4718
      $region114: #{tpu_custom_call.1} parent=5 // pred_check_branch
        %4721 = sbr.rel (%p4719) target = $region116
      $region115: #{tpu_custom_call.1} parent=5 // pred_region
        %s4722 = ssub.s32 %s30, 2
        // Predicated region
        $region117: #{tpu_custom_call.1} parent=115 // pred_check
          %p4723 = pneg %p300
        $region118: #{tpu_custom_call.1} parent=115 // pred_check_branch
          %4725 = sbr.rel (%p4723) target = $region120
        $region119: #{tpu_custom_call.1} parent=115 // pred_region
          %s4726 = sand.u32 %s285, 1
          %s4727 = scalar_lea.sflag [#allocation4], %s4726
          %s4728 = sand.u32 %s285, 1
          %s4729 = smul.addr %s4728, 8
          %s4730 = scalar_lea.vmem [#allocation20], %s4729
          %4731 = dma.done %s4727, 128
        $region120: #{tpu_custom_call.1} parent=115 // pred_fallthru
          _
      $region116: #{tpu_custom_call.1} parent=5 // pred_fallthru
        _
    $region6: #{tpu_custom_call.1} parent=1 // loop_footer
      %s34 = sadd.s32 1, %s30
    $region7: #{tpu_custom_call.1} parent=1 // loop_footer_branch
      %29 = sbr.rel target = $region3
    $region8: #{tpu_custom_call.1} parent=1 // loop_exit
      _
    %4732 = vsyncpa [#allocation3], 1
    %s4733 = scalar_lea.sflag [#allocation3], 1
    %4734 = vsyncpa %s4733, 1
    %4735 = vsyncpa [#allocation6], 1
    %s4736 = scalar_lea.sflag [#allocation6], 1
    %4737 = vsyncpa %s4736, 1
    %4738 = vsyncpa [#allocation9], 1
    %4739 = vsyncpa [#allocation12], 1
    %4740 = vsyncpa [#allocation15], 1
    %4741 = vsyncpa [#allocation18], 1
    %4742 = vsyncpa [#allocation4], 1
    %s4743 = scalar_lea.sflag [#allocation4], 1
    %4744 = vsyncpa %s4743, 1

</llo_original>
